<compile_context>
chip_gen: v7x
topology: tpu7x:2x2x1
jax: 0.10.0
libtpu: 0.0.40
codegen_flags: <defaults>
</compile_context>

<pallas_src>
import functools
import math

import jax
import jax.numpy as jnp
from jax import lax
from jax.experimental import pallas as pl
from jax.experimental.pallas import tpu as pltpu

_MIB = 1024 * 1024


# ---------------------------------------------------------------------------
# Tiling / VMEM helpers
# ---------------------------------------------------------------------------
def _pos_tile(num_pos):
    """Largest lane tile (multiple of 128) that still leaves >= 4 grid steps."""
    for tile in (2048, 1024, 512, 256, 128):
        if num_pos >= 4 * tile:
            return tile
    return 128


def _vmem_limit(step_bytes, resident_bytes):
    """Double-buffered per-step blocks + resident weights, with headroom.

    Clamped to 48 MiB so it stays well inside v7x's 64 MiB physical VMEM while
    still letting v5e/v6e use larger windows than the scoped default.
    """
    need = 2 * step_bytes + resident_bytes
    return int(min(48 * _MIB, max(8 * _MIB, 4 * need)))


# ---------------------------------------------------------------------------
# Kernel 1: transform (Linear + PReLU) fused with ALL per-head Q/K/V 1x1 convs
# (+ReLU + per-head LayerNorm).  Feature-major: x block is (N, TP), outputs are
# (H, att_dim, TP) / (H, dh, TP) bf16 slabs -- all stores lane-dense.
# ---------------------------------------------------------------------------
def _transform_qkv_kernel(x_ref, wtr_ref, btr_ref, wqk_ref, bqk_ref, gqk_ref,
                          beqk_ref, wv_ref, bv_ref, gv_ref, bev_ref,
                          q_ref, k_ref, v_ref,
                          *, n_heads, att_dim, dh, a_tr, eps, store_dtype):
    x = x_ref[...]                                                   # (N, TP) f32
    h = jnp.dot(wtr_ref[...], x, preferred_element_type=jnp.float32) + btr_ref[...]
    h = jnp.where(h >= 0.0, h, a_tr * h)                             # transform PReLU

    def seg_layernorm(seg, gamma, beta):                             # LN over features
        mu = jnp.mean(seg, axis=0, keepdims=True)
        var = jnp.mean((seg - mu) ** 2, axis=0, keepdims=True)
        return (seg - mu) * lax.rsqrt(var + eps) * gamma + beta

    # All heads' Q and K projections in one MXU pass; per-head LN via sublane slabs.
    qk = jnp.dot(wqk_ref[...], h, preferred_element_type=jnp.float32) + bqk_ref[...]
    qk = jnp.maximum(qk, 0.0)                                        # ReLU
    gqk, beqk = gqk_ref[...], beqk_ref[...]
    for s in range(2 * n_heads):
        r0 = s * att_dim
        seg = seg_layernorm(qk[r0:r0 + att_dim, :],
                            gqk[r0:r0 + att_dim, :], beqk[r0:r0 + att_dim, :])
        if s < n_heads:
            q_ref[s, :, :] = seg.astype(store_dtype)
        else:
            k_ref[s - n_heads, :, :] = seg.astype(store_dtype)

    # All heads' V projections; per-head LN.
    v = jnp.dot(wv_ref[...], h, preferred_element_type=jnp.float32) + bv_ref[...]
    v = jnp.maximum(v, 0.0)
    gv, bev = gv_ref[...], bev_ref[...]
    for hh in range(n_heads):
        r0 = hh * dh
        seg = seg_layernorm(v[r0:r0 + dh, :],
                            gv[r0:r0 + dh, :], bev[r0:r0 + dh, :])
        v_ref[hh, :, :] = seg.astype(store_dtype)


def transform_and_project(x_fm, p, *, n_heads, att_dim, dh, pos_tile,
                          a_tr, eps, store_dtype):
    n_in, p_pad = x_fm.shape
    hidden = p["w_tr"].shape[0]
    dqk = 2 * n_heads * att_dim
    dv = n_heads * dh

    weights = (p["w_tr"], p["b_tr"], p["w_qk"], p["b_qk"], p["g_qk"], p["be_qk"],
               p["w_v"], p["b_v"], p["g_v"], p["be_v"])
    resident_bytes = 4 * sum(int(w.size) for w in weights)
    step_bytes = (4 * n_in + 2 * (dqk + dv) + 4 * (hidden + dqk + dv)) * pos_tile
    flops = 2 * p_pad * hidden * (n_in + dqk + dv)
    bytes_accessed = 4 * n_in * p_pad + 2 * (dqk + dv) * p_pad + resident_bytes

    kernel = functools.partial(
        _transform_qkv_kernel, n_heads=n_heads, att_dim=att_dim, dh=dh,
        a_tr=a_tr, eps=eps, store_dtype=store_dtype)

    return pl.pallas_call(
        kernel,
        out_shape=(jax.ShapeDtypeStruct((n_heads, att_dim, p_pad), store_dtype),
                   jax.ShapeDtypeStruct((n_heads, att_dim, p_pad), store_dtype),
                   jax.ShapeDtypeStruct((n_heads, dh, p_pad), store_dtype)),
        grid_spec=pltpu.PrefetchScalarGridSpec(
            num_scalar_prefetch=0,
            grid=(p_pad // pos_tile,),
            in_specs=[
                pl.BlockSpec((n_in, pos_tile), lambda i: (0, i)),
                pl.BlockSpec((hidden, n_in), lambda i: (0, 0)),
                pl.BlockSpec((hidden, 1), lambda i: (0, 0)),
                pl.BlockSpec((dqk, hidden), lambda i: (0, 0)),
                pl.BlockSpec((dqk, 1), lambda i: (0, 0)),
                pl.BlockSpec((dqk, 1), lambda i: (0, 0)),
                pl.BlockSpec((dqk, 1), lambda i: (0, 0)),
                pl.BlockSpec((dv, hidden), lambda i: (0, 0)),
                pl.BlockSpec((dv, 1), lambda i: (0, 0)),
                pl.BlockSpec((dv, 1), lambda i: (0, 0)),
                pl.BlockSpec((dv, 1), lambda i: (0, 0)),
            ],
            out_specs=[
                pl.BlockSpec((n_heads, att_dim, pos_tile), lambda i: (0, 0, i)),
                pl.BlockSpec((n_heads, att_dim, pos_tile), lambda i: (0, 0, i)),
                pl.BlockSpec((n_heads, dh, pos_tile), lambda i: (0, 0, i)),
            ],
        ),
        compiler_params=pltpu.CompilerParams(
            dimension_semantics=("parallel",),
            vmem_limit_bytes=_vmem_limit(step_bytes, resident_bytes)),
        cost_estimate=pl.CostEstimate(
            flops=int(flops), transcendentals=int(3 * n_heads * p_pad),
            bytes_accessed=int(bytes_accessed)),
    )(x_fm, p["w_tr"], p["b_tr"].reshape(hidden, 1),
      p["w_qk"], p["b_qk"].reshape(dqk, 1), p["g_qk"].reshape(dqk, 1),
      p["be_qk"].reshape(dqk, 1),
      p["w_v"], p["b_v"].reshape(dv, 1), p["g_v"].reshape(dv, 1),
      p["be_v"].reshape(dv, 1))


# ---------------------------------------------------------------------------
# Kernel 2: per-(head, batch) channel self-attention.  One grid step = one
# (h, b) group of C channel tokens; the per-channel embedding is the flattened
# (att_dim, F, T) block (matching the reference flatten(start_dim=2)).  Since C
# is tiny, scores/combine are C^2 Frobenius dots + scalar-weighted adds on the
# VPU -- data stays in the exact feature-major layout written by kernel 1
# (no -inf mask, no XLA transposes, no full K/V resident in VMEM).
# ---------------------------------------------------------------------------
def _chan_attn_kernel(q_ref, k_ref, v_ref, o_ref, *, n_chan, seg_len, scale,
                      store_dtype):
    q = q_ref[...].astype(jnp.float32)                     # (att_dim, C*FT)
    k = k_ref[...].astype(jnp.float32)
    v = v_ref[...].astype(jnp.float32)                     # (dh,      C*FT)

    qs = [q[:, c * seg_len:(c + 1) * seg_len] for c in range(n_chan)]
    ks = [k[:, c * seg_len:(c + 1) * seg_len] for c in range(n_chan)]
    vs = [v[:, c * seg_len:(c + 1) * seg_len] for c in range(n_chan)]

    outs = []
    for c in range(n_chan):
        scores = [jnp.sum(qs[c] * ks[c2], keepdims=True) * scale
                  for c2 in range(n_chan)]                 # C (1,1) f32 scalars
        m = scores[0]
        for s in scores[1:]:
            m = jnp.maximum(m, s)
        expo = [jnp.exp(s - m) for s in scores]
        den = expo[0]
        for e in expo[1:]:
            den = den + e
        acc = (expo[0] / den) * vs[0]
        for c2 in range(1, n_chan):
            acc = acc + (expo[c2] / den) * vs[c2]
        outs.append(acc)
    o_ref[...] = jnp.concatenate(outs, axis=1).astype(store_dtype)


def channel_attention_core(q, k, v, *, n_batch, n_chan, seg_len, scale,
                           store_dtype):
    n_heads, att_dim, p_pad = q.shape
    dh = v.shape[1]
    group = n_chan * seg_len
    assert group % 128 == 0, (
        "C * freq * time must be a multiple of 128 for the lane-dense "
        "attention BlockSpec (got %d)" % group)

    step_bytes = (2 + 4) * (2 * att_dim + 2 * dh) * group
    flops = 2 * n_heads * n_batch * n_chan * n_chan * (att_dim + dh) * seg_len
    bytes_accessed = 2 * (2 * att_dim + 2 * dh) * n_heads * n_batch * group

    kernel = functools.partial(_chan_attn_kernel, n_chan=n_chan, seg_len=seg_len,
                               scale=scale, store_dtype=store_dtype)
    # NOTE: columns >= B*C*FT of the output (position padding, if any) are never
    # written; kernel 3 only propagates them into padded lanes that get sliced off.
    return pl.pallas_call(
        kernel,
        out_shape=jax.ShapeDtypeStruct((n_heads, dh, p_pad), store_dtype),
        grid_spec=pltpu.PrefetchScalarGridSpec(
            num_scalar_prefetch=0,
            grid=(n_heads, n_batch),
            in_specs=[
                pl.BlockSpec((None, att_dim, group), lambda h, b: (h, 0, b)),
                pl.BlockSpec((None, att_dim, group), lambda h, b: (h, 0, b)),
                pl.BlockSpec((None, dh, group), lambda h, b: (h, 0, b)),
            ],
            out_specs=pl.BlockSpec((None, dh, group), lambda h, b: (h, 0, b)),
        ),
        compiler_params=pltpu.CompilerParams(
            dimension_semantics=("parallel", "parallel"),
            vmem_limit_bytes=_vmem_limit(step_bytes, 0)),
        cost_estimate=pl.CostEstimate(
            flops=int(flops),
            transcendentals=int(n_heads * n_batch * n_chan * n_chan),
            bytes_accessed=int(bytes_accessed)),
    )(q, k, v)


# ---------------------------------------------------------------------------
# Kernel 3: recomputed transform + attn_concat_proj (conv+ReLU+LN) + outer
# PReLU + single K=2*hidden concat-Linear + PReLU + LN + residual add.
# Feature-major, lane-dense (N, TP) output.
# ---------------------------------------------------------------------------
def _concat_output_kernel(x_ref, v_ref, wtr_ref, btr_ref, wproj_ref, bproj_ref,
                          gp_ref, bep_ref, wcat_ref, bcat_ref, gc_ref, bec_ref,
                          o_ref, *, n_heads, a_tr, a_att, a_cat, eps):
    x = x_ref[...]                                                   # (N, TP) f32

    # Recompute the transform output instead of round-tripping it via HBM.
    h = jnp.dot(wtr_ref[...], x, preferred_element_type=jnp.float32) + btr_ref[...]
    h = jnp.where(h >= 0.0, h, a_tr * h)

    # attn_concat_proj: 1x1 conv + ReLU + LayerNorm over hidden features.
    vcat = jnp.concatenate(
        [v_ref[hh, :, :].astype(jnp.float32) for hh in range(n_heads)], axis=0)
    att = (jnp.dot(wproj_ref[...], vcat, preferred_element_type=jnp.float32)
           + bproj_ref[...])
    att = jnp.maximum(att, 0.0)
    mu = jnp.mean(att, axis=0, keepdims=True)
    var = jnp.mean((att - mu) ** 2, axis=0, keepdims=True)
    att = (att - mu) * lax.rsqrt(var + eps) * gp_ref[...] + bep_ref[...]
    att = jnp.where(att >= 0.0, att, a_att * att)                    # attention-branch PReLU

    # concat Linear as a single K = 2*hidden dot + PReLU + LN + residual.
    cat = jnp.concatenate([h, att], axis=0)                          # (2*hidden, TP)
    y = jnp.dot(wcat_ref[...], cat, preferred_element_type=jnp.float32) + bcat_ref[...]
    y = jnp.where(y >= 0.0, y, a_cat * y)
    mu = jnp.mean(y, axis=0, keepdims=True)
    var = jnp.mean((y - mu) ** 2, axis=0, keepdims=True)
    y = (y - mu) * lax.rsqrt(var + eps) * gc_ref[...] + bec_ref[...]
    o_ref[...] = y + x                                               # fused residual


def concat_and_output(x_fm, v_att, p, *, n_heads, pos_tile, a_tr, a_att, a_cat, eps):
    n_in, p_pad = x_fm.shape
    hidden = p["w_tr"].shape[0]
    dh = v_att.shape[1]

    weights = (p["w_tr"], p["b_tr"], p["w_proj"], p["b_proj"], p["g_p"], p["be_p"],
               p["w_cat"], p["b_cat"], p["g_c"], p["be_c"])
    resident_bytes = 4 * sum(int(w.size) for w in weights)
    step_bytes = (4 * 2 * n_in + 2 * n_heads * dh + 4 * 4 * hidden) * pos_tile
    flops = 2 * p_pad * (n_in * hidden + hidden * hidden + 2 * hidden * n_in)
    bytes_accessed = (4 * 2 * n_in + 2 * n_heads * dh) * p_pad + resident_bytes

    kernel = functools.partial(_concat_output_kernel, n_heads=n_heads,
                               a_tr=a_tr, a_att=a_att, a_cat=a_cat, eps=eps)
    return pl.pallas_call(
        kernel,
        out_shape=jax.ShapeDtypeStruct((n_in, p_pad), jnp.float32),
        grid_spec=pltpu.PrefetchScalarGridSpec(
            num_scalar_prefetch=0,
            grid=(p_pad // pos_tile,),
            in_specs=[
                pl.BlockSpec((n_in, pos_tile), lambda i: (0, i)),
                pl.BlockSpec((n_heads, dh, pos_tile), lambda i: (0, 0, i)),
                pl.BlockSpec((hidden, n_in), lambda i: (0, 0)),
                pl.BlockSpec((hidden, 1), lambda i: (0, 0)),
                pl.BlockSpec((hidden, hidden), lambda i: (0, 0)),
                pl.BlockSpec((hidden, 1), lambda i: (0, 0)),
                pl.BlockSpec((hidden, 1), lambda i: (0, 0)),
                pl.BlockSpec((hidden, 1), lambda i: (0, 0)),
                pl.BlockSpec((n_in, 2 * hidden), lambda i: (0, 0)),
                pl.BlockSpec((n_in, 1), lambda i: (0, 0)),
                pl.BlockSpec((n_in, 1), lambda i: (0, 0)),
                pl.BlockSpec((n_in, 1), lambda i: (0, 0)),
            ],
            out_specs=pl.BlockSpec((n_in, pos_tile), lambda i: (0, i)),
        ),
        compiler_params=pltpu.CompilerParams(
            dimension_semantics=("parallel",),
            vmem_limit_bytes=_vmem_limit(step_bytes, resident_bytes)),
        cost_estimate=pl.CostEstimate(
            flops=int(flops), transcendentals=int(2 * p_pad),
            bytes_accessed=int(bytes_accessed)),
    )(x_fm, v_att, p["w_tr"], p["b_tr"].reshape(hidden, 1),
      p["w_proj"], p["b_proj"].reshape(hidden, 1), p["g_p"].reshape(hidden, 1),
      p["be_p"].reshape(hidden, 1), p["w_cat"], p["b_cat"].reshape(n_in, 1),
      p["g_c"].reshape(n_in, 1), p["be_c"].reshape(n_in, 1))


# ---------------------------------------------------------------------------
# Parameters (deterministic, synthetic).  Weights use the torch (out, in)
# convention so the feature-major kernels compute W @ x directly.  Per-head
# Q/K conv weights are stacked row-wise as [Q_0..Q_{H-1} | K_0..K_{H-1}];
# V weights as [V_0..V_{H-1}].  LayerNorm gamma/beta = ones/zeros and PReLU
# slopes = 0.25 as in the PyTorch __init__.
# ---------------------------------------------------------------------------
def init_params(key, input_dim, att_heads, att_dim):
    hidden = 3 * input_dim
    dh = hidden // att_heads
    ks = jax.random.split(key, 12)

    def rnd(k, shape, scale=0.1):
        return scale * jax.random.normal(k, shape, jnp.float32)

    wq = rnd(ks[2], (att_heads, att_dim, hidden))
    bq = rnd(ks[3], (att_heads, att_dim))
    wk = rnd(ks[4], (att_heads, att_dim, hidden))
    bk = rnd(ks[5], (att_heads, att_dim))
    wv = rnd(ks[6], (att_heads, dh, hidden))
    bv = rnd(ks[7], (att_heads, dh))

    w_qk = jnp.concatenate([wq.reshape(att_heads * att_dim, hidden),
                            wk.reshape(att_heads * att_dim, hidden)], axis=0)
    b_qk = jnp.concatenate([bq.reshape(-1), bk.reshape(-1)])
    dqk = 2 * att_heads * att_dim
    dv = att_heads * dh

    return {
        "w_tr": rnd(ks[0], (hidden, input_dim)), "b_tr": rnd(ks[1], (hidden,)),
        "w_qk": w_qk, "b_qk": b_qk,
        "g_qk": jnp.ones((dqk,), jnp.float32), "be_qk": jnp.zeros((dqk,), jnp.float32),
        "w_v": wv.reshape(dv, hidden), "b_v": bv.reshape(-1),
        "g_v": jnp.ones((dv,), jnp.float32), "be_v": jnp.zeros((dv,), jnp.float32),
        "w_proj": rnd(ks[8], (hidden, hidden)), "b_proj": rnd(ks[9], (hidden,)),
        "g_p": jnp.ones((hidden,), jnp.float32), "be_p": jnp.zeros((hidden,), jnp.float32),
        "w_cat": rnd(ks[10], (input_dim, 2 * hidden)), "b_cat": rnd(ks[11], (input_dim,)),
        "g_c": jnp.ones((input_dim,), jnp.float32), "be_c": jnp.zeros((input_dim,), jnp.float32),
    }


# ---------------------------------------------------------------------------
# Full forward:  x (B, C, N, F, T)  ->  out (B, C, N, F, T)
# ---------------------------------------------------------------------------
def channel_attention_tac(x, p, *, att_heads, att_dim,
                          a_tr=0.25, a_att=0.25, a_cat=0.25, eps=1e-5,
                          store_dtype=jnp.bfloat16):
    # TODO(synk): PReLU slopes are trainable nn.Parameters in PyTorch; they are
    # baked in as static constants (init value 0.25) per the perf feedback.
    B, C, N, Fr, T = x.shape
    hidden = 3 * N
    dh = hidden // att_heads
    FT = Fr * T
    P = B * C * FT

    # Feature-major layout: features on sublanes, positions (b, c, f, t) on lanes.
    x_fm = jnp.transpose(x, (2, 0, 1, 3, 4)).reshape(N, P)

    pos_tile = _pos_tile(P)
    p_pad = -(-P // pos_tile) * pos_tile
    if p_pad != P:
        x_fm = jnp.pad(x_fm, ((0, 0), (0, p_pad - P)))

    # Kernel 1: transform + all per-head Q/K/V 1x1 convs (+ReLU + per-head LN).
    q, k, v = transform_and_project(
        x_fm, p, n_heads=att_heads, att_dim=att_dim, dh=dh, pos_tile=pos_tile,
        a_tr=a_tr, eps=eps, store_dtype=store_dtype)

    # Kernel 2: softmax(Q K^T / sqrt(emb_dim)) over mic channels, emb_dim = att_dim*F*T.
    v_att = channel_attention_core(
        q, k, v, n_batch=B, n_chan=C, seg_len=FT,
        scale=1.0 / math.sqrt(att_dim * FT), store_dtype=store_dtype)

    # Kernel 3: attn_concat_proj + PReLU + concat-Linear + PReLU + LN + residual.
    y_fm = concat_and_output(
        x_fm, v_att, p, n_heads=att_heads, pos_tile=pos_tile,
        a_tr=a_tr, a_att=a_att, a_cat=a_cat, eps=eps)

    y = y_fm[:, :P].reshape(N, B, C, Fr, T)
    return jnp.transpose(y, (1, 2, 0, 3, 4))


if __name__ == "__main__":
    # small shapes: batch=2, mics C=4, feature N=8, freq=8, time=8
    B, C, N, Fr, T = 2, 4, 8, 8, 8
    ATT_HEADS, ATT_DIM = 4, 16          # hidden = 3*N = 24, divisible by heads

    key = jax.random.PRNGKey(0)
    kx, kp = jax.random.split(key)
    x = jax.random.normal(kx, (B, C, N, Fr, T), jnp.float32)
    params = init_params(kp, N, ATT_HEADS, ATT_DIM)

    fwd = jax.jit(functools.partial(channel_attention_tac,
                                    att_heads=ATT_HEADS, att_dim=ATT_DIM))
    y = fwd(x, params)
    jax.block_until_ready(y)

    assert y.shape == x.shape and y.dtype == jnp.float32
    assert bool(jnp.all(jnp.isfinite(y)))
    print("KERNEL_OK")
</pallas_src>

<mosaic_0001>
module attributes {stable_mosaic.version = 11 : i64} {
  func.func @_chan_attn_kernel(%arg0: i32, %arg1: i32, %arg2: memref<1x16x256xbf16, #tpu.memory_space<vmem>>, %arg3: memref<1x16x256xbf16, #tpu.memory_space<vmem>>, %arg4: memref<1x6x256xbf16, #tpu.memory_space<vmem>>, %arg5: memref<1x6x256xbf16, #tpu.memory_space<vmem>>) attributes {dimension_semantics = [#tpu.dimension_semantics<parallel>, #tpu.dimension_semantics<parallel>], iteration_bounds = array<i64: 4, 2>, scalar_prefetch = 0 : i64, scratch_operands = 0 : i64, tpu.core_type = #tpu.core_type<tc>, window_params = [{transform_indices = @transform_0, window_bounds = array<i64: 1, 16, 256>}, {transform_indices = @transform_1, window_bounds = array<i64: 1, 16, 256>}, {transform_indices = @transform_2, window_bounds = array<i64: 1, 6, 256>}, {transform_indices = @transform_3, window_bounds = array<i64: 1, 6, 256>}]} {
    %c0 = arith.constant 0 : index
    %c0_0 = arith.constant 0 : index
    %c0_1 = arith.constant 0 : index
    %0 = vector.load %arg2[%c0, %c0_0, %c0_1] : memref<1x16x256xbf16, #tpu.memory_space<vmem>>, vector<1x16x256xbf16>
    %1 = vector.shape_cast %0 : vector<1x16x256xbf16> to vector<16x256xbf16>
    %2 = arith.extf %1 : vector<16x256xbf16> to vector<16x256xf32>
    %c0_2 = arith.constant 0 : index
    %c0_3 = arith.constant 0 : index
    %c0_4 = arith.constant 0 : index
    %3 = vector.load %arg3[%c0_2, %c0_3, %c0_4] : memref<1x16x256xbf16, #tpu.memory_space<vmem>>, vector<1x16x256xbf16>
    %4 = vector.shape_cast %3 : vector<1x16x256xbf16> to vector<16x256xbf16>
    %5 = arith.extf %4 : vector<16x256xbf16> to vector<16x256xf32>
    %c0_5 = arith.constant 0 : index
    %c0_6 = arith.constant 0 : index
    %c0_7 = arith.constant 0 : index
    %6 = vector.load %arg4[%c0_5, %c0_6, %c0_7] : memref<1x6x256xbf16, #tpu.memory_space<vmem>>, vector<1x6x256xbf16>
    %7 = vector.shape_cast %6 : vector<1x6x256xbf16> to vector<6x256xbf16>
    %8 = arith.extf %7 : vector<6x256xbf16> to vector<6x256xf32>
    %9 = vector.extract_strided_slice %2 {offsets = [0, 0], sizes = [16, 64], strides = [1, 1]} : vector<16x256xf32> to vector<16x64xf32>
    %10 = vector.extract_strided_slice %2 {offsets = [0, 64], sizes = [16, 64], strides = [1, 1]} : vector<16x256xf32> to vector<16x64xf32>
    %11 = vector.extract_strided_slice %2 {offsets = [0, 128], sizes = [16, 64], strides = [1, 1]} : vector<16x256xf32> to vector<16x64xf32>
    %12 = vector.extract_strided_slice %2 {offsets = [0, 192], sizes = [16, 64], strides = [1, 1]} : vector<16x256xf32> to vector<16x64xf32>
    %13 = vector.extract_strided_slice %5 {offsets = [0, 0], sizes = [16, 64], strides = [1, 1]} : vector<16x256xf32> to vector<16x64xf32>
    %14 = vector.extract_strided_slice %5 {offsets = [0, 64], sizes = [16, 64], strides = [1, 1]} : vector<16x256xf32> to vector<16x64xf32>
    %15 = vector.extract_strided_slice %5 {offsets = [0, 128], sizes = [16, 64], strides = [1, 1]} : vector<16x256xf32> to vector<16x64xf32>
    %16 = vector.extract_strided_slice %5 {offsets = [0, 192], sizes = [16, 64], strides = [1, 1]} : vector<16x256xf32> to vector<16x64xf32>
    %17 = vector.extract_strided_slice %8 {offsets = [0, 0], sizes = [6, 64], strides = [1, 1]} : vector<6x256xf32> to vector<6x64xf32>
    %18 = vector.extract_strided_slice %8 {offsets = [0, 64], sizes = [6, 64], strides = [1, 1]} : vector<6x256xf32> to vector<6x64xf32>
    %19 = vector.extract_strided_slice %8 {offsets = [0, 128], sizes = [6, 64], strides = [1, 1]} : vector<6x256xf32> to vector<6x64xf32>
    %20 = vector.extract_strided_slice %8 {offsets = [0, 192], sizes = [6, 64], strides = [1, 1]} : vector<6x256xf32> to vector<6x64xf32>
    %21 = arith.mulf %9, %13 : vector<16x64xf32>
    %22 = vector.shape_cast %21 : vector<16x64xf32> to vector<1x16x64xf32>
    %cst = arith.constant dense<0.000000e+00> : vector<1xf32>
    %23 = vector.multi_reduction <add>, %22, %cst [1, 2] : vector<1x16x64xf32> to vector<1xf32>
    %24 = vector.shape_cast %23 : vector<1xf32> to vector<1x1x1xf32>
    %25 = vector.extract %24[0, 0, 0] : f32 from vector<1x1x1xf32>
    %26 = vector.broadcast %25 : f32 to vector<1x1xf32>
    %cst_8 = arith.constant 3.125000e-02 : f32
    %27 = vector.broadcast %cst_8 : f32 to vector<1x1xf32>
    %28 = arith.mulf %26, %27 : vector<1x1xf32>
    %29 = arith.mulf %9, %14 : vector<16x64xf32>
    %30 = vector.shape_cast %29 : vector<16x64xf32> to vector<1x16x64xf32>
    %cst_9 = arith.constant dense<0.000000e+00> : vector<1xf32>
    %31 = vector.multi_reduction <add>, %30, %cst_9 [1, 2] : vector<1x16x64xf32> to vector<1xf32>
    %32 = vector.shape_cast %31 : vector<1xf32> to vector<1x1x1xf32>
    %33 = vector.extract %32[0, 0, 0] : f32 from vector<1x1x1xf32>
    %34 = vector.broadcast %33 : f32 to vector<1x1xf32>
    %cst_10 = arith.constant 3.125000e-02 : f32
    %35 = vector.broadcast %cst_10 : f32 to vector<1x1xf32>
    %36 = arith.mulf %34, %35 : vector<1x1xf32>
    %37 = arith.mulf %9, %15 : vector<16x64xf32>
    %38 = vector.shape_cast %37 : vector<16x64xf32> to vector<1x16x64xf32>
    %cst_11 = arith.constant dense<0.000000e+00> : vector<1xf32>
    %39 = vector.multi_reduction <add>, %38, %cst_11 [1, 2] : vector<1x16x64xf32> to vector<1xf32>
    %40 = vector.shape_cast %39 : vector<1xf32> to vector<1x1x1xf32>
    %41 = vector.extract %40[0, 0, 0] : f32 from vector<1x1x1xf32>
    %42 = vector.broadcast %41 : f32 to vector<1x1xf32>
    %cst_12 = arith.constant 3.125000e-02 : f32
    %43 = vector.broadcast %cst_12 : f32 to vector<1x1xf32>
    %44 = arith.mulf %42, %43 : vector<1x1xf32>
    %45 = arith.mulf %9, %16 : vector<16x64xf32>
    %46 = vector.shape_cast %45 : vector<16x64xf32> to vector<1x16x64xf32>
    %cst_13 = arith.constant dense<0.000000e+00> : vector<1xf32>
    %47 = vector.multi_reduction <add>, %46, %cst_13 [1, 2] : vector<1x16x64xf32> to vector<1xf32>
    %48 = vector.shape_cast %47 : vector<1xf32> to vector<1x1x1xf32>
    %49 = vector.extract %48[0, 0, 0] : f32 from vector<1x1x1xf32>
    %50 = vector.broadcast %49 : f32 to vector<1x1xf32>
    %cst_14 = arith.constant 3.125000e-02 : f32
    %51 = vector.broadcast %cst_14 : f32 to vector<1x1xf32>
    %52 = arith.mulf %50, %51 : vector<1x1xf32>
    %53 = arith.maximumf %28, %36 : vector<1x1xf32>
    %54 = arith.maximumf %53, %44 : vector<1x1xf32>
    %55 = arith.maximumf %54, %52 : vector<1x1xf32>
    %56 = arith.subf %28, %55 : vector<1x1xf32>
    %57 = math.exp %56 : vector<1x1xf32>
    %58 = arith.subf %36, %55 : vector<1x1xf32>
    %59 = math.exp %58 : vector<1x1xf32>
    %60 = arith.subf %44, %55 : vector<1x1xf32>
    %61 = math.exp %60 : vector<1x1xf32>
    %62 = arith.subf %52, %55 : vector<1x1xf32>
    %63 = math.exp %62 : vector<1x1xf32>
    %64 = arith.addf %57, %59 : vector<1x1xf32>
    %65 = arith.addf %64, %61 : vector<1x1xf32>
    %66 = arith.addf %65, %63 : vector<1x1xf32>
    %67 = arith.divf %57, %66 : vector<1x1xf32>
    %68 = vector.broadcast %67 : vector<1x1xf32> to vector<6x64xf32>
    %69 = arith.mulf %68, %17 : vector<6x64xf32>
    %70 = arith.divf %59, %66 : vector<1x1xf32>
    %71 = vector.broadcast %70 : vector<1x1xf32> to vector<6x64xf32>
    %72 = arith.mulf %71, %18 : vector<6x64xf32>
    %73 = arith.addf %69, %72 : vector<6x64xf32>
    %74 = arith.divf %61, %66 : vector<1x1xf32>
    %75 = vector.broadcast %74 : vector<1x1xf32> to vector<6x64xf32>
    %76 = arith.mulf %75, %19 : vector<6x64xf32>
    %77 = arith.addf %73, %76 : vector<6x64xf32>
    %78 = arith.divf %63, %66 : vector<1x1xf32>
    %79 = vector.broadcast %78 : vector<1x1xf32> to vector<6x64xf32>
    %80 = arith.mulf %79, %20 : vector<6x64xf32>
    %81 = arith.addf %77, %80 : vector<6x64xf32>
    %82 = arith.mulf %10, %13 : vector<16x64xf32>
    %83 = vector.shape_cast %82 : vector<16x64xf32> to vector<1x16x64xf32>
    %cst_15 = arith.constant dense<0.000000e+00> : vector<1xf32>
    %84 = vector.multi_reduction <add>, %83, %cst_15 [1, 2] : vector<1x16x64xf32> to vector<1xf32>
    %85 = vector.shape_cast %84 : vector<1xf32> to vector<1x1x1xf32>
    %86 = vector.extract %85[0, 0, 0] : f32 from vector<1x1x1xf32>
    %87 = vector.broadcast %86 : f32 to vector<1x1xf32>
    %cst_16 = arith.constant 3.125000e-02 : f32
    %88 = vector.broadcast %cst_16 : f32 to vector<1x1xf32>
    %89 = arith.mulf %87, %88 : vector<1x1xf32>
    %90 = arith.mulf %10, %14 : vector<16x64xf32>
    %91 = vector.shape_cast %90 : vector<16x64xf32> to vector<1x16x64xf32>
    %cst_17 = arith.constant dense<0.000000e+00> : vector<1xf32>
    %92 = vector.multi_reduction <add>, %91, %cst_17 [1, 2] : vector<1x16x64xf32> to vector<1xf32>
    %93 = vector.shape_cast %92 : vector<1xf32> to vector<1x1x1xf32>
    %94 = vector.extract %93[0, 0, 0] : f32 from vector<1x1x1xf32>
    %95 = vector.broadcast %94 : f32 to vector<1x1xf32>
    %cst_18 = arith.constant 3.125000e-02 : f32
    %96 = vector.broadcast %cst_18 : f32 to vector<1x1xf32>
    %97 = arith.mulf %95, %96 : vector<1x1xf32>
    %98 = arith.mulf %10, %15 : vector<16x64xf32>
    %99 = vector.shape_cast %98 : vector<16x64xf32> to vector<1x16x64xf32>
    %cst_19 = arith.constant dense<0.000000e+00> : vector<1xf32>
    %100 = vector.multi_reduction <add>, %99, %cst_19 [1, 2] : vector<1x16x64xf32> to vector<1xf32>
    %101 = vector.shape_cast %100 : vector<1xf32> to vector<1x1x1xf32>
    %102 = vector.extract %101[0, 0, 0] : f32 from vector<1x1x1xf32>
    %103 = vector.broadcast %102 : f32 to vector<1x1xf32>
    %cst_20 = arith.constant 3.125000e-02 : f32
    %104 = vector.broadcast %cst_20 : f32 to vector<1x1xf32>
    %105 = arith.mulf %103, %104 : vector<1x1xf32>
    %106 = arith.mulf %10, %16 : vector<16x64xf32>
    %107 = vector.shape_cast %106 : vector<16x64xf32> to vector<1x16x64xf32>
    %cst_21 = arith.constant dense<0.000000e+00> : vector<1xf32>
    %108 = vector.multi_reduction <add>, %107, %cst_21 [1, 2] : vector<1x16x64xf32> to vector<1xf32>
    %109 = vector.shape_cast %108 : vector<1xf32> to vector<1x1x1xf32>
    %110 = vector.extract %109[0, 0, 0] : f32 from vector<1x1x1xf32>
    %111 = vector.broadcast %110 : f32 to vector<1x1xf32>
    %cst_22 = arith.constant 3.125000e-02 : f32
    %112 = vector.broadcast %cst_22 : f32 to vector<1x1xf32>
    %113 = arith.mulf %111, %112 : vector<1x1xf32>
    %114 = arith.maximumf %89, %97 : vector<1x1xf32>
    %115 = arith.maximumf %114, %105 : vector<1x1xf32>
    %116 = arith.maximumf %115, %113 : vector<1x1xf32>
    %117 = arith.subf %89, %116 : vector<1x1xf32>
    %118 = math.exp %117 : vector<1x1xf32>
    %119 = arith.subf %97, %116 : vector<1x1xf32>
    %120 = math.exp %119 : vector<1x1xf32>
    %121 = arith.subf %105, %116 : vector<1x1xf32>
    %122 = math.exp %121 : vector<1x1xf32>
    %123 = arith.subf %113, %116 : vector<1x1xf32>
    %124 = math.exp %123 : vector<1x1xf32>
    %125 = arith.addf %118, %120 : vector<1x1xf32>
    %126 = arith.addf %125, %122 : vector<1x1xf32>
    %127 = arith.addf %126, %124 : vector<1x1xf32>
    %128 = arith.divf %118, %127 : vector<1x1xf32>
    %129 = vector.broadcast %128 : vector<1x1xf32> to vector<6x64xf32>
    %130 = arith.mulf %129, %17 : vector<6x64xf32>
    %131 = arith.divf %120, %127 : vector<1x1xf32>
    %132 = vector.broadcast %131 : vector<1x1xf32> to vector<6x64xf32>
    %133 = arith.mulf %132, %18 : vector<6x64xf32>
    %134 = arith.addf %130, %133 : vector<6x64xf32>
    %135 = arith.divf %122, %127 : vector<1x1xf32>
    %136 = vector.broadcast %135 : vector<1x1xf32> to vector<6x64xf32>
    %137 = arith.mulf %136, %19 : vector<6x64xf32>
    %138 = arith.addf %134, %137 : vector<6x64xf32>
    %139 = arith.divf %124, %127 : vector<1x1xf32>
    %140 = vector.broadcast %139 : vector<1x1xf32> to vector<6x64xf32>
    %141 = arith.mulf %140, %20 : vector<6x64xf32>
    %142 = arith.addf %138, %141 : vector<6x64xf32>
    %143 = arith.mulf %11, %13 : vector<16x64xf32>
    %144 = vector.shape_cast %143 : vector<16x64xf32> to vector<1x16x64xf32>
    %cst_23 = arith.constant dense<0.000000e+00> : vector<1xf32>
    %145 = vector.multi_reduction <add>, %144, %cst_23 [1, 2] : vector<1x16x64xf32> to vector<1xf32>
    %146 = vector.shape_cast %145 : vector<1xf32> to vector<1x1x1xf32>
    %147 = vector.extract %146[0, 0, 0] : f32 from vector<1x1x1xf32>
    %148 = vector.broadcast %147 : f32 to vector<1x1xf32>
    %cst_24 = arith.constant 3.125000e-02 : f32
    %149 = vector.broadcast %cst_24 : f32 to vector<1x1xf32>
    %150 = arith.mulf %148, %149 : vector<1x1xf32>
    %151 = arith.mulf %11, %14 : vector<16x64xf32>
    %152 = vector.shape_cast %151 : vector<16x64xf32> to vector<1x16x64xf32>
    %cst_25 = arith.constant dense<0.000000e+00> : vector<1xf32>
    %153 = vector.multi_reduction <add>, %152, %cst_25 [1, 2] : vector<1x16x64xf32> to vector<1xf32>
    %154 = vector.shape_cast %153 : vector<1xf32> to vector<1x1x1xf32>
    %155 = vector.extract %154[0, 0, 0] : f32 from vector<1x1x1xf32>
    %156 = vector.broadcast %155 : f32 to vector<1x1xf32>
    %cst_26 = arith.constant 3.125000e-02 : f32
    %157 = vector.broadcast %cst_26 : f32 to vector<1x1xf32>
    %158 = arith.mulf %156, %157 : vector<1x1xf32>
    %159 = arith.mulf %11, %15 : vector<16x64xf32>
    %160 = vector.shape_cast %159 : vector<16x64xf32> to vector<1x16x64xf32>
    %cst_27 = arith.constant dense<0.000000e+00> : vector<1xf32>
    %161 = vector.multi_reduction <add>, %160, %cst_27 [1, 2] : vector<1x16x64xf32> to vector<1xf32>
    %162 = vector.shape_cast %161 : vector<1xf32> to vector<1x1x1xf32>
    %163 = vector.extract %162[0, 0, 0] : f32 from vector<1x1x1xf32>
    %164 = vector.broadcast %163 : f32 to vector<1x1xf32>
    %cst_28 = arith.constant 3.125000e-02 : f32
    %165 = vector.broadcast %cst_28 : f32 to vector<1x1xf32>
    %166 = arith.mulf %164, %165 : vector<1x1xf32>
    %167 = arith.mulf %11, %16 : vector<16x64xf32>
    %168 = vector.shape_cast %167 : vector<16x64xf32> to vector<1x16x64xf32>
    %cst_29 = arith.constant dense<0.000000e+00> : vector<1xf32>
    %169 = vector.multi_reduction <add>, %168, %cst_29 [1, 2] : vector<1x16x64xf32> to vector<1xf32>
    %170 = vector.shape_cast %169 : vector<1xf32> to vector<1x1x1xf32>
    %171 = vector.extract %170[0, 0, 0] : f32 from vector<1x1x1xf32>
    %172 = vector.broadcast %171 : f32 to vector<1x1xf32>
    %cst_30 = arith.constant 3.125000e-02 : f32
    %173 = vector.broadcast %cst_30 : f32 to vector<1x1xf32>
    %174 = arith.mulf %172, %173 : vector<1x1xf32>
    %175 = arith.maximumf %150, %158 : vector<1x1xf32>
    %176 = arith.maximumf %175, %166 : vector<1x1xf32>
    %177 = arith.maximumf %176, %174 : vector<1x1xf32>
    %178 = arith.subf %150, %177 : vector<1x1xf32>
    %179 = math.exp %178 : vector<1x1xf32>
    %180 = arith.subf %158, %177 : vector<1x1xf32>
    %181 = math.exp %180 : vector<1x1xf32>
    %182 = arith.subf %166, %177 : vector<1x1xf32>
    %183 = math.exp %182 : vector<1x1xf32>
    %184 = arith.subf %174, %177 : vector<1x1xf32>
    %185 = math.exp %184 : vector<1x1xf32>
    %186 = arith.addf %179, %181 : vector<1x1xf32>
    %187 = arith.addf %186, %183 : vector<1x1xf32>
    %188 = arith.addf %187, %185 : vector<1x1xf32>
    %189 = arith.divf %179, %188 : vector<1x1xf32>
    %190 = vector.broadcast %189 : vector<1x1xf32> to vector<6x64xf32>
    %191 = arith.mulf %190, %17 : vector<6x64xf32>
    %192 = arith.divf %181, %188 : vector<1x1xf32>
    %193 = vector.broadcast %192 : vector<1x1xf32> to vector<6x64xf32>
    %194 = arith.mulf %193, %18 : vector<6x64xf32>
    %195 = arith.addf %191, %194 : vector<6x64xf32>
    %196 = arith.divf %183, %188 : vector<1x1xf32>
    %197 = vector.broadcast %196 : vector<1x1xf32> to vector<6x64xf32>
    %198 = arith.mulf %197, %19 : vector<6x64xf32>
    %199 = arith.addf %195, %198 : vector<6x64xf32>
    %200 = arith.divf %185, %188 : vector<1x1xf32>
    %201 = vector.broadcast %200 : vector<1x1xf32> to vector<6x64xf32>
    %202 = arith.mulf %201, %20 : vector<6x64xf32>
    %203 = arith.addf %199, %202 : vector<6x64xf32>
    %204 = arith.mulf %12, %13 : vector<16x64xf32>
    %205 = vector.shape_cast %204 : vector<16x64xf32> to vector<1x16x64xf32>
    %cst_31 = arith.constant dense<0.000000e+00> : vector<1xf32>
    %206 = vector.multi_reduction <add>, %205, %cst_31 [1, 2] : vector<1x16x64xf32> to vector<1xf32>
    %207 = vector.shape_cast %206 : vector<1xf32> to vector<1x1x1xf32>
    %208 = vector.extract %207[0, 0, 0] : f32 from vector<1x1x1xf32>
    %209 = vector.broadcast %208 : f32 to vector<1x1xf32>
    %cst_32 = arith.constant 3.125000e-02 : f32
    %210 = vector.broadcast %cst_32 : f32 to vector<1x1xf32>
    %211 = arith.mulf %209, %210 : vector<1x1xf32>
    %212 = arith.mulf %12, %14 : vector<16x64xf32>
    %213 = vector.shape_cast %212 : vector<16x64xf32> to vector<1x16x64xf32>
    %cst_33 = arith.constant dense<0.000000e+00> : vector<1xf32>
    %214 = vector.multi_reduction <add>, %213, %cst_33 [1, 2] : vector<1x16x64xf32> to vector<1xf32>
    %215 = vector.shape_cast %214 : vector<1xf32> to vector<1x1x1xf32>
    %216 = vector.extract %215[0, 0, 0] : f32 from vector<1x1x1xf32>
    %217 = vector.broadcast %216 : f32 to vector<1x1xf32>
    %cst_34 = arith.constant 3.125000e-02 : f32
    %218 = vector.broadcast %cst_34 : f32 to vector<1x1xf32>
    %219 = arith.mulf %217, %218 : vector<1x1xf32>
    %220 = arith.mulf %12, %15 : vector<16x64xf32>
    %221 = vector.shape_cast %220 : vector<16x64xf32> to vector<1x16x64xf32>
    %cst_35 = arith.constant dense<0.000000e+00> : vector<1xf32>
    %222 = vector.multi_reduction <add>, %221, %cst_35 [1, 2] : vector<1x16x64xf32> to vector<1xf32>
    %223 = vector.shape_cast %222 : vector<1xf32> to vector<1x1x1xf32>
    %224 = vector.extract %223[0, 0, 0] : f32 from vector<1x1x1xf32>
    %225 = vector.broadcast %224 : f32 to vector<1x1xf32>
    %cst_36 = arith.constant 3.125000e-02 : f32
    %226 = vector.broadcast %cst_36 : f32 to vector<1x1xf32>
    %227 = arith.mulf %225, %226 : vector<1x1xf32>
    %228 = arith.mulf %12, %16 : vector<16x64xf32>
    %229 = vector.shape_cast %228 : vector<16x64xf32> to vector<1x16x64xf32>
    %cst_37 = arith.constant dense<0.000000e+00> : vector<1xf32>
    %230 = vector.multi_reduction <add>, %229, %cst_37 [1, 2] : vector<1x16x64xf32> to vector<1xf32>
    %231 = vector.shape_cast %230 : vector<1xf32> to vector<1x1x1xf32>
    %232 = vector.extract %231[0, 0, 0] : f32 from vector<1x1x1xf32>
    %233 = vector.broadcast %232 : f32 to vector<1x1xf32>
    %cst_38 = arith.constant 3.125000e-02 : f32
    %234 = vector.broadcast %cst_38 : f32 to vector<1x1xf32>
    %235 = arith.mulf %233, %234 : vector<1x1xf32>
    %236 = arith.maximumf %211, %219 : vector<1x1xf32>
    %237 = arith.maximumf %236, %227 : vector<1x1xf32>
    %238 = arith.maximumf %237, %235 : vector<1x1xf32>
    %239 = arith.subf %211, %238 : vector<1x1xf32>
    %240 = math.exp %239 : vector<1x1xf32>
    %241 = arith.subf %219, %238 : vector<1x1xf32>
    %242 = math.exp %241 : vector<1x1xf32>
    %243 = arith.subf %227, %238 : vector<1x1xf32>
    %244 = math.exp %243 : vector<1x1xf32>
    %245 = arith.subf %235, %238 : vector<1x1xf32>
    %246 = math.exp %245 : vector<1x1xf32>
    %247 = arith.addf %240, %242 : vector<1x1xf32>
    %248 = arith.addf %247, %244 : vector<1x1xf32>
    %249 = arith.addf %248, %246 : vector<1x1xf32>
    %250 = arith.divf %240, %249 : vector<1x1xf32>
    %251 = vector.broadcast %250 : vector<1x1xf32> to vector<6x64xf32>
    %252 = arith.mulf %251, %17 : vector<6x64xf32>
    %253 = arith.divf %242, %249 : vector<1x1xf32>
    %254 = vector.broadcast %253 : vector<1x1xf32> to vector<6x64xf32>
    %255 = arith.mulf %254, %18 : vector<6x64xf32>
    %256 = arith.addf %252, %255 : vector<6x64xf32>
    %257 = arith.divf %244, %249 : vector<1x1xf32>
    %258 = vector.broadcast %257 : vector<1x1xf32> to vector<6x64xf32>
    %259 = arith.mulf %258, %19 : vector<6x64xf32>
    %260 = arith.addf %256, %259 : vector<6x64xf32>
    %261 = arith.divf %246, %249 : vector<1x1xf32>
    %262 = vector.broadcast %261 : vector<1x1xf32> to vector<6x64xf32>
    %263 = arith.mulf %262, %20 : vector<6x64xf32>
    %264 = arith.addf %260, %263 : vector<6x64xf32>
    %265 = tpu.concatenate %81, %142, %203, %264 in 1 : vector<6x64xf32>, vector<6x64xf32>, vector<6x64xf32>, vector<6x64xf32> -> vector<6x256xf32>
    %266 = arith.truncf %265 : vector<6x256xf32> to vector<6x256xbf16>
    %c0_39 = arith.constant 0 : index
    %c0_40 = arith.constant 0 : index
    %c0_41 = arith.constant 0 : index
    %267 = vector.load %arg5[%c0_39, %c0_40, %c0_41] : memref<1x6x256xbf16, #tpu.memory_space<vmem>>, vector<1x6x256xbf16>
    %268 = vector.shape_cast %267 : vector<1x6x256xbf16> to vector<6x256xbf16>
    %269 = vector.shape_cast %266 : vector<6x256xbf16> to vector<1x6x256xbf16>
    tpu.vector_store %arg5[%c0_39, %c0_40, %c0_41], %269 {strides = array<i32>} : memref<1x6x256xbf16, #tpu.memory_space<vmem>>, vector<1x6x256xbf16>,
    return
  }
  func.func @transform_0(%arg0: i32, %arg1: i32) -> (i32, i32, i32) {
    %c0_i32 = arith.constant 0 : i32
    %c0_i32_0 = arith.constant 0 : i32
    return %arg0, %c0_i32, %arg1 : i32, i32, i32
  }
  func.func @transform_1(%arg0: i32, %arg1: i32) -> (i32, i32, i32) {
    %c0_i32 = arith.constant 0 : i32
    %c0_i32_0 = arith.constant 0 : i32
    return %arg0, %c0_i32, %arg1 : i32, i32, i32
  }
  func.func @transform_2(%arg0: i32, %arg1: i32) -> (i32, i32, i32) {
    %c0_i32 = arith.constant 0 : i32
    %c0_i32_0 = arith.constant 0 : i32
    return %arg0, %c0_i32, %arg1 : i32, i32, i32
  }
  func.func @transform_3(%arg0: i32, %arg1: i32) -> (i32, i32, i32) {
    %c0_i32 = arith.constant 0 : i32
    %c0_i32_0 = arith.constant 0 : i32
    return %arg0, %c0_i32, %arg1 : i32, i32, i32
  }
}

module attributes {stable_mosaic.version = 11 : i64} {
  func.func @_concat_output_kernel(%arg0: i32, %arg1: memref<8x128xf32, #tpu.memory_space<vmem>>, %arg2: memref<4x6x128xbf16, #tpu.memory_space<vmem>>, %arg3: memref<24x8xf32, #tpu.memory_space<vmem>>, %arg4: memref<24x1xf32, #tpu.memory_space<vmem>>, %arg5: memref<24x24xf32, #tpu.memory_space<vmem>>, %arg6: memref<24x1xf32, #tpu.memory_space<vmem>>, %arg7: memref<24x1xf32, #tpu.memory_space<vmem>>, %arg8: memref<24x1xf32, #tpu.memory_space<vmem>>, %arg9: memref<8x48xf32, #tpu.memory_space<vmem>>, %arg10: memref<8x1xf32, #tpu.memory_space<vmem>>, %arg11: memref<8x1xf32, #tpu.memory_space<vmem>>, %arg12: memref<8x1xf32, #tpu.memory_space<vmem>>, %arg13: memref<8x128xf32, #tpu.memory_space<vmem>>) attributes {dimension_semantics = [#tpu.dimension_semantics<parallel>], iteration_bounds = array<i64: 4>, scalar_prefetch = 0 : i64, scratch_operands = 0 : i64, tpu.core_type = #tpu.core_type<tc>, window_params = [{transform_indices = @transform_0, window_bounds = array<i64: 8, 128>}, {transform_indices = @transform_1, window_bounds = array<i64: 4, 6, 128>}, {pipeline_mode = #tpu.pipeline_mode<synchronous>, transform_indices = @transform_2, window_bounds = array<i64: 24, 8>}, {pipeline_mode = #tpu.pipeline_mode<synchronous>, transform_indices = @transform_3, window_bounds = array<i64: 24, 1>}, {pipeline_mode = #tpu.pipeline_mode<synchronous>, transform_indices = @transform_4, window_bounds = array<i64: 24, 24>}, {pipeline_mode = #tpu.pipeline_mode<synchronous>, transform_indices = @transform_5, window_bounds = array<i64: 24, 1>}, {pipeline_mode = #tpu.pipeline_mode<synchronous>, transform_indices = @transform_6, window_bounds = array<i64: 24, 1>}, {pipeline_mode = #tpu.pipeline_mode<synchronous>, transform_indices = @transform_7, window_bounds = array<i64: 24, 1>}, {pipeline_mode = #tpu.pipeline_mode<synchronous>, transform_indices = @transform_8, window_bounds = array<i64: 8, 48>}, {pipeline_mode = #tpu.pipeline_mode<synchronous>, transform_indices = @transform_9, window_bounds = array<i64: 8, 1>}, {pipeline_mode = #tpu.pipeline_mode<synchronous>, transform_indices = @transform_10, window_bounds = array<i64: 8, 1>}, {pipeline_mode = #tpu.pipeline_mode<synchronous>, transform_indices = @transform_11, window_bounds = array<i64: 8, 1>}, {transform_indices = @transform_12, window_bounds = array<i64: 8, 128>}]} {
    %c0 = arith.constant 0 : index
    %c0_0 = arith.constant 0 : index
    %0 = vector.load %arg1[%c0, %c0_0] : memref<8x128xf32, #tpu.memory_space<vmem>>, vector<8x128xf32>
    %c0_1 = arith.constant 0 : index
    %c0_2 = arith.constant 0 : index
    %1 = vector.load %arg3[%c0_1, %c0_2] : memref<24x8xf32, #tpu.memory_space<vmem>>, vector<24x8xf32>
    %cst = arith.constant dense<0.000000e+00> : vector<24x128xf32>
    %2 = tpu.matmul %1, %0, %cst {dimension_numbers = #tpu.dot_dimension_numbers<[1], [0], [0], [1], [0, 0, 1, 1], [], []>} : vector<24x8xf32>, vector<8x128xf32>, vector<24x128xf32> -> vector<24x128xf32>
    %c0_3 = arith.constant 0 : index
    %c0_4 = arith.constant 0 : index
    %3 = vector.load %arg4[%c0_3, %c0_4] : memref<24x1xf32, #tpu.memory_space<vmem>>, vector<24x1xf32>
    %4 = vector.broadcast %3 : vector<24x1xf32> to vector<24x128xf32>
    %5 = arith.addf %2, %4 : vector<24x128xf32>
    %cst_5 = arith.constant 0.000000e+00 : f32
    %6 = vector.broadcast %cst_5 : f32 to vector<24x128xf32>
    %7 = arith.cmpf oge, %5, %6 : vector<24x128xf32>
    %cst_6 = arith.constant 2.500000e-01 : f32
    %8 = vector.broadcast %cst_6 : f32 to vector<24x128xf32>
    %9 = arith.mulf %8, %5 : vector<24x128xf32>
    %10 = arith.select %7, %5, %9 : vector<24x128xi1>, vector<24x128xf32>
    %c0_7 = arith.constant 0 : index
    %c0_8 = arith.constant 0 : index
    %c0_9 = arith.constant 0 : index
    %11 = vector.load %arg2[%c0_7, %c0_8, %c0_9] : memref<4x6x128xbf16, #tpu.memory_space<vmem>>, vector<1x6x128xbf16>
    %12 = vector.shape_cast %11 : vector<1x6x128xbf16> to vector<6x128xbf16>
    %13 = arith.extf %12 : vector<6x128xbf16> to vector<6x128xf32>
    %c1 = arith.constant 1 : index
    %c0_10 = arith.constant 0 : index
    %c0_11 = arith.constant 0 : index
    %14 = vector.load %arg2[%c1, %c0_10, %c0_11] : memref<4x6x128xbf16, #tpu.memory_space<vmem>>, vector<1x6x128xbf16>
    %15 = vector.shape_cast %14 : vector<1x6x128xbf16> to vector<6x128xbf16>
    %16 = arith.extf %15 : vector<6x128xbf16> to vector<6x128xf32>
    %c2 = arith.constant 2 : index
    %c0_12 = arith.constant 0 : index
    %c0_13 = arith.constant 0 : index
    %17 = vector.load %arg2[%c2, %c0_12, %c0_13] : memref<4x6x128xbf16, #tpu.memory_space<vmem>>, vector<1x6x128xbf16>
    %18 = vector.shape_cast %17 : vector<1x6x128xbf16> to vector<6x128xbf16>
    %19 = arith.extf %18 : vector<6x128xbf16> to vector<6x128xf32>
    %c3 = arith.constant 3 : index
    %c0_14 = arith.constant 0 : index
    %c0_15 = arith.constant 0 : index
    %20 = vector.load %arg2[%c3, %c0_14, %c0_15] : memref<4x6x128xbf16, #tpu.memory_space<vmem>>, vector<1x6x128xbf16>
    %21 = vector.shape_cast %20 : vector<1x6x128xbf16> to vector<6x128xbf16>
    %22 = arith.extf %21 : vector<6x128xbf16> to vector<6x128xf32>
    %23 = tpu.concatenate %13, %16, %19, %22 in 0 : vector<6x128xf32>, vector<6x128xf32>, vector<6x128xf32>, vector<6x128xf32> -> vector<24x128xf32>
    %c0_16 = arith.constant 0 : index
    %c0_17 = arith.constant 0 : index
    %24 = vector.load %arg5[%c0_16, %c0_17] : memref<24x24xf32, #tpu.memory_space<vmem>>, vector<24x24xf32>
    %cst_18 = arith.constant dense<0.000000e+00> : vector<24x128xf32>
    %25 = tpu.matmul %24, %23, %cst_18 {dimension_numbers = #tpu.dot_dimension_numbers<[1], [0], [0], [1], [0, 0, 1, 1], [], []>} : vector<24x24xf32>, vector<24x128xf32>, vector<24x128xf32> -> vector<24x128xf32>
    %c0_19 = arith.constant 0 : index
    %c0_20 = arith.constant 0 : index
    %26 = vector.load %arg6[%c0_19, %c0_20] : memref<24x1xf32, #tpu.memory_space<vmem>>, vector<24x1xf32>
    %27 = vector.broadcast %26 : vector<24x1xf32> to vector<24x128xf32>
    %28 = arith.addf %25, %27 : vector<24x128xf32>
    %cst_21 = arith.constant 0.000000e+00 : f32
    %29 = vector.broadcast %cst_21 : f32 to vector<24x128xf32>
    %30 = arith.maximumf %28, %29 : vector<24x128xf32>
    %cst_22 = arith.constant dense<0.000000e+00> : vector<128xf32>
    %31 = vector.multi_reduction <add>, %30, %cst_22 [0] : vector<24x128xf32> to vector<128xf32>
    %32 = vector.shape_cast %31 : vector<128xf32> to vector<1x128xf32>
    %cst_23 = arith.constant 2.400000e+01 : f32
    %33 = vector.broadcast %cst_23 : f32 to vector<1x128xf32>
    %34 = arith.divf %32, %33 : vector<1x128xf32>
    %35 = vector.broadcast %34 : vector<1x128xf32> to vector<24x128xf32>
    %36 = arith.subf %30, %35 : vector<24x128xf32>
    %37 = arith.mulf %36, %36 : vector<24x128xf32>
    %cst_24 = arith.constant dense<0.000000e+00> : vector<128xf32>
    %38 = vector.multi_reduction <add>, %37, %cst_24 [0] : vector<24x128xf32> to vector<128xf32>
    %39 = vector.shape_cast %38 : vector<128xf32> to vector<1x128xf32>
    %cst_25 = arith.constant 2.400000e+01 : f32
    %40 = vector.broadcast %cst_25 : f32 to vector<1x128xf32>
    %41 = arith.divf %39, %40 : vector<1x128xf32>
    %42 = vector.broadcast %34 : vector<1x128xf32> to vector<24x128xf32>
    %43 = arith.subf %30, %42 : vector<24x128xf32>
    %cst_26 = arith.constant 9.99999974E-6 : f32
    %44 = vector.broadcast %cst_26 : f32 to vector<1x128xf32>
    %45 = arith.addf %41, %44 : vector<1x128xf32>
    %46 = math.rsqrt %45 : vector<1x128xf32>
    %47 = vector.broadcast %46 : vector<1x128xf32> to vector<24x128xf32>
    %48 = arith.mulf %43, %47 : vector<24x128xf32>
    %c0_27 = arith.constant 0 : index
    %c0_28 = arith.constant 0 : index
    %49 = vector.load %arg7[%c0_27, %c0_28] : memref<24x1xf32, #tpu.memory_space<vmem>>, vector<24x1xf32>
    %50 = vector.broadcast %49 : vector<24x1xf32> to vector<24x128xf32>
    %51 = arith.mulf %48, %50 : vector<24x128xf32>
    %c0_29 = arith.constant 0 : index
    %c0_30 = arith.constant 0 : index
    %52 = vector.load %arg8[%c0_29, %c0_30] : memref<24x1xf32, #tpu.memory_space<vmem>>, vector<24x1xf32>
    %53 = vector.broadcast %52 : vector<24x1xf32> to vector<24x128xf32>
    %54 = arith.addf %51, %53 : vector<24x128xf32>
    %cst_31 = arith.constant 0.000000e+00 : f32
    %55 = vector.broadcast %cst_31 : f32 to vector<24x128xf32>
    %56 = arith.cmpf oge, %54, %55 : vector<24x128xf32>
    %cst_32 = arith.constant 2.500000e-01 : f32
    %57 = vector.broadcast %cst_32 : f32 to vector<24x128xf32>
    %58 = arith.mulf %57, %54 : vector<24x128xf32>
    %59 = arith.select %56, %54, %58 : vector<24x128xi1>, vector<24x128xf32>
    %60 = tpu.concatenate %10, %59 in 0 : vector<24x128xf32>, vector<24x128xf32> -> vector<48x128xf32>
    %c0_33 = arith.constant 0 : index
    %c0_34 = arith.constant 0 : index
    %61 = vector.load %arg9[%c0_33, %c0_34] : memref<8x48xf32, #tpu.memory_space<vmem>>, vector<8x48xf32>
    %cst_35 = arith.constant dense<0.000000e+00> : vector<8x128xf32>
    %62 = tpu.matmul %61, %60, %cst_35 {dimension_numbers = #tpu.dot_dimension_numbers<[1], [0], [0], [1], [0, 0, 1, 1], [], []>} : vector<8x48xf32>, vector<48x128xf32>, vector<8x128xf32> -> vector<8x128xf32>
    %c0_36 = arith.constant 0 : index
    %c0_37 = arith.constant 0 : index
    %63 = vector.load %arg10[%c0_36, %c0_37] : memref<8x1xf32, #tpu.memory_space<vmem>>, vector<8x1xf32>
    %64 = vector.broadcast %63 : vector<8x1xf32> to vector<8x128xf32>
    %65 = arith.addf %62, %64 : vector<8x128xf32>
    %cst_38 = arith.constant 0.000000e+00 : f32
    %66 = vector.broadcast %cst_38 : f32 to vector<8x128xf32>
    %67 = arith.cmpf oge, %65, %66 : vector<8x128xf32>
    %cst_39 = arith.constant 2.500000e-01 : f32
    %68 = vector.broadcast %cst_39 : f32 to vector<8x128xf32>
    %69 = arith.mulf %68, %65 : vector<8x128xf32>
    %70 = arith.select %67, %65, %69 : vector<8x128xi1>, vector<8x128xf32>
    %cst_40 = arith.constant dense<0.000000e+00> : vector<128xf32>
    %71 = vector.multi_reduction <add>, %70, %cst_40 [0] : vector<8x128xf32> to vector<128xf32>
    %72 = vector.shape_cast %71 : vector<128xf32> to vector<1x128xf32>
    %cst_41 = arith.constant 8.000000e+00 : f32
    %73 = vector.broadcast %cst_41 : f32 to vector<1x128xf32>
    %74 = arith.divf %72, %73 : vector<1x128xf32>
    %75 = vector.broadcast %74 : vector<1x128xf32> to vector<8x128xf32>
    %76 = arith.subf %70, %75 : vector<8x128xf32>
    %77 = arith.mulf %76, %76 : vector<8x128xf32>
    %cst_42 = arith.constant dense<0.000000e+00> : vector<128xf32>
    %78 = vector.multi_reduction <add>, %77, %cst_42 [0] : vector<8x128xf32> to vector<128xf32>
    %79 = vector.shape_cast %78 : vector<128xf32> to vector<1x128xf32>
    %cst_43 = arith.constant 8.000000e+00 : f32
    %80 = vector.broadcast %cst_43 : f32 to vector<1x128xf32>
    %81 = arith.divf %79, %80 : vector<1x128xf32>
    %82 = vector.broadcast %74 : vector<1x128xf32> to vector<8x128xf32>
    %83 = arith.subf %70, %82 : vector<8x128xf32>
    %cst_44 = arith.constant 9.99999974E-6 : f32
    %84 = vector.broadcast %cst_44 : f32 to vector<1x128xf32>
    %85 = arith.addf %81, %84 : vector<1x128xf32>
    %86 = math.rsqrt %85 : vector<1x128xf32>
    %87 = vector.broadcast %86 : vector<1x128xf32> to vector<8x128xf32>
    %88 = arith.mulf %83, %87 : vector<8x128xf32>
    %c0_45 = arith.constant 0 : index
    %c0_46 = arith.constant 0 : index
    %89 = vector.load %arg11[%c0_45, %c0_46] : memref<8x1xf32, #tpu.memory_space<vmem>>, vector<8x1xf32>
    %90 = vector.broadcast %89 : vector<8x1xf32> to vector<8x128xf32>
    %91 = arith.mulf %88, %90 : vector<8x128xf32>
    %c0_47 = arith.constant 0 : index
    %c0_48 = arith.constant 0 : index
    %92 = vector.load %arg12[%c0_47, %c0_48] : memref<8x1xf32, #tpu.memory_space<vmem>>, vector<8x1xf32>
    %93 = vector.broadcast %92 : vector<8x1xf32> to vector<8x128xf32>
    %94 = arith.addf %91, %93 : vector<8x128xf32>
    %95 = arith.addf %94, %0 : vector<8x128xf32>
    %c0_49 = arith.constant 0 : index
    %c0_50 = arith.constant 0 : index
    %96 = vector.load %arg13[%c0_49, %c0_50] : memref<8x128xf32, #tpu.memory_space<vmem>>, vector<8x128xf32>
    tpu.vector_store %arg13[%c0_49, %c0_50], %95 {strides = array<i32>} : memref<8x128xf32, #tpu.memory_space<vmem>>, vector<8x128xf32>,
    return
  }
  func.func @transform_0(%arg0: i32) -> (i32, i32) {
    %c0_i32 = arith.constant 0 : i32
    %c0_i32_0 = arith.constant 0 : i32
    return %c0_i32, %arg0 : i32, i32
  }
  func.func @transform_1(%arg0: i32) -> (i32, i32, i32) {
    %c0_i32 = arith.constant 0 : i32
    %c0_i32_0 = arith.constant 0 : i32
    %c0_i32_1 = arith.constant 0 : i32
    return %c0_i32, %c0_i32_0, %arg0 : i32, i32, i32
  }
  func.func @transform_2(%arg0: i32) -> (i32, i32) {
    %c0_i32 = arith.constant 0 : i32
    %c0_i32_0 = arith.constant 0 : i32
    %c0_i32_1 = arith.constant 0 : i32
    return %c0_i32, %c0_i32_0 : i32, i32
  }
  func.func @transform_3(%arg0: i32) -> (i32, i32) {
    %c0_i32 = arith.constant 0 : i32
    %c0_i32_0 = arith.constant 0 : i32
    %c0_i32_1 = arith.constant 0 : i32
    return %c0_i32, %c0_i32_0 : i32, i32
  }
  func.func @transform_4(%arg0: i32) -> (i32, i32) {
    %c0_i32 = arith.constant 0 : i32
    %c0_i32_0 = arith.constant 0 : i32
    %c0_i32_1 = arith.constant 0 : i32
    return %c0_i32, %c0_i32_0 : i32, i32
  }
  func.func @transform_5(%arg0: i32) -> (i32, i32) {
    %c0_i32 = arith.constant 0 : i32
    %c0_i32_0 = arith.constant 0 : i32
    %c0_i32_1 = arith.constant 0 : i32
    return %c0_i32, %c0_i32_0 : i32, i32
  }
  func.func @transform_6(%arg0: i32) -> (i32, i32) {
    %c0_i32 = arith.constant 0 : i32
    %c0_i32_0 = arith.constant 0 : i32
    %c0_i32_1 = arith.constant 0 : i32
    return %c0_i32, %c0_i32_0 : i32, i32
  }
  func.func @transform_7(%arg0: i32) -> (i32, i32) {
    %c0_i32 = arith.constant 0 : i32
    %c0_i32_0 = arith.constant 0 : i32
    %c0_i32_1 = arith.constant 0 : i32
    return %c0_i32, %c0_i32_0 : i32, i32
  }
  func.func @transform_8(%arg0: i32) -> (i32, i32) {
    %c0_i32 = arith.constant 0 : i32
    %c0_i32_0 = arith.constant 0 : i32
    %c0_i32_1 = arith.constant 0 : i32
    return %c0_i32, %c0_i32_0 : i32, i32
  }
  func.func @transform_9(%arg0: i32) -> (i32, i32) {
    %c0_i32 = arith.constant 0 : i32
    %c0_i32_0 = arith.constant 0 : i32
    %c0_i32_1 = arith.constant 0 : i32
    return %c0_i32, %c0_i32_0 : i32, i32
  }
  func.func @transform_10(%arg0: i32) -> (i32, i32) {
    %c0_i32 = arith.constant 0 : i32
    %c0_i32_0 = arith.constant 0 : i32
    %c0_i32_1 = arith.constant 0 : i32
    return %c0_i32, %c0_i32_0 : i32, i32
  }
  func.func @transform_11(%arg0: i32) -> (i32, i32) {
    %c0_i32 = arith.constant 0 : i32
    %c0_i32_0 = arith.constant 0 : i32
    %c0_i32_1 = arith.constant 0 : i32
    return %c0_i32, %c0_i32_0 : i32, i32
  }
  func.func @transform_12(%arg0: i32) -> (i32, i32) {
    %c0_i32 = arith.constant 0 : i32
    %c0_i32_0 = arith.constant 0 : i32
    return %c0_i32, %arg0 : i32, i32
  }
}

module attributes {stable_mosaic.version = 11 : i64} {
  func.func @_transform_qkv_kernel(%arg0: i32, %arg1: memref<8x128xf32, #tpu.memory_space<vmem>>, %arg2: memref<24x8xf32, #tpu.memory_space<vmem>>, %arg3: memref<24x1xf32, #tpu.memory_space<vmem>>, %arg4: memref<128x24xf32, #tpu.memory_space<vmem>>, %arg5: memref<128x1xf32, #tpu.memory_space<vmem>>, %arg6: memref<128x1xf32, #tpu.memory_space<vmem>>, %arg7: memref<128x1xf32, #tpu.memory_space<vmem>>, %arg8: memref<24x24xf32, #tpu.memory_space<vmem>>, %arg9: memref<24x1xf32, #tpu.memory_space<vmem>>, %arg10: memref<24x1xf32, #tpu.memory_space<vmem>>, %arg11: memref<24x1xf32, #tpu.memory_space<vmem>>, %arg12: memref<4x16x128xbf16, #tpu.memory_space<vmem>>, %arg13: memref<4x16x128xbf16, #tpu.memory_space<vmem>>, %arg14: memref<4x6x128xbf16, #tpu.memory_space<vmem>>) attributes {dimension_semantics = [#tpu.dimension_semantics<parallel>], iteration_bounds = array<i64: 4>, scalar_prefetch = 0 : i64, scratch_operands = 0 : i64, tpu.core_type = #tpu.core_type<tc>, window_params = [{transform_indices = @transform_0, window_bounds = array<i64: 8, 128>}, {pipeline_mode = #tpu.pipeline_mode<synchronous>, transform_indices = @transform_1, window_bounds = array<i64: 24, 8>}, {pipeline_mode = #tpu.pipeline_mode<synchronous>, transform_indices = @transform_2, window_bounds = array<i64: 24, 1>}, {pipeline_mode = #tpu.pipeline_mode<synchronous>, transform_indices = @transform_3, window_bounds = array<i64: 128, 24>}, {pipeline_mode = #tpu.pipeline_mode<synchronous>, transform_indices = @transform_4, window_bounds = array<i64: 128, 1>}, {pipeline_mode = #tpu.pipeline_mode<synchronous>, transform_indices = @transform_5, window_bounds = array<i64: 128, 1>}, {pipeline_mode = #tpu.pipeline_mode<synchronous>, transform_indices = @transform_6, window_bounds = array<i64: 128, 1>}, {pipeline_mode = #tpu.pipeline_mode<synchronous>, transform_indices = @transform_7, window_bounds = array<i64: 24, 24>}, {pipeline_mode = #tpu.pipeline_mode<synchronous>, transform_indices = @transform_8, window_bounds = array<i64: 24, 1>}, {pipeline_mode = #tpu.pipeline_mode<synchronous>, transform_indices = @transform_9, window_bounds = array<i64: 24, 1>}, {pipeline_mode = #tpu.pipeline_mode<synchronous>, transform_indices = @transform_10, window_bounds = array<i64: 24, 1>}, {transform_indices = @transform_11, window_bounds = array<i64: 4, 16, 128>}, {transform_indices = @transform_12, window_bounds = array<i64: 4, 16, 128>}, {transform_indices = @transform_13, window_bounds = array<i64: 4, 6, 128>}]} {
    %c0 = arith.constant 0 : index
    %c0_0 = arith.constant 0 : index
    %0 = vector.load %arg1[%c0, %c0_0] : memref<8x128xf32, #tpu.memory_space<vmem>>, vector<8x128xf32>
    %c0_1 = arith.constant 0 : index
    %c0_2 = arith.constant 0 : index
    %1 = vector.load %arg2[%c0_1, %c0_2] : memref<24x8xf32, #tpu.memory_space<vmem>>, vector<24x8xf32>
    %cst = arith.constant dense<0.000000e+00> : vector<24x128xf32>
    %2 = tpu.matmul %1, %0, %cst {dimension_numbers = #tpu.dot_dimension_numbers<[1], [0], [0], [1], [0, 0, 1, 1], [], []>} : vector<24x8xf32>, vector<8x128xf32>, vector<24x128xf32> -> vector<24x128xf32>
    %c0_3 = arith.constant 0 : index
    %c0_4 = arith.constant 0 : index
    %3 = vector.load %arg3[%c0_3, %c0_4] : memref<24x1xf32, #tpu.memory_space<vmem>>, vector<24x1xf32>
    %4 = vector.broadcast %3 : vector<24x1xf32> to vector<24x128xf32>
    %5 = arith.addf %2, %4 : vector<24x128xf32>
    %cst_5 = arith.constant 0.000000e+00 : f32
    %6 = vector.broadcast %cst_5 : f32 to vector<24x128xf32>
    %7 = arith.cmpf oge, %5, %6 : vector<24x128xf32>
    %cst_6 = arith.constant 2.500000e-01 : f32
    %8 = vector.broadcast %cst_6 : f32 to vector<24x128xf32>
    %9 = arith.mulf %8, %5 : vector<24x128xf32>
    %10 = arith.select %7, %5, %9 : vector<24x128xi1>, vector<24x128xf32>
    %c0_7 = arith.constant 0 : index
    %c0_8 = arith.constant 0 : index
    %11 = vector.load %arg4[%c0_7, %c0_8] : memref<128x24xf32, #tpu.memory_space<vmem>>, vector<128x24xf32>
    %cst_9 = arith.constant dense<0.000000e+00> : vector<128x128xf32>
    %12 = tpu.matmul %11, %10, %cst_9 {dimension_numbers = #tpu.dot_dimension_numbers<[1], [0], [0], [1], [0, 0, 1, 1], [], []>} : vector<128x24xf32>, vector<24x128xf32>, vector<128x128xf32> -> vector<128x128xf32>
    %c0_10 = arith.constant 0 : index
    %c0_11 = arith.constant 0 : index
    %13 = vector.load %arg5[%c0_10, %c0_11] : memref<128x1xf32, #tpu.memory_space<vmem>>, vector<128x1xf32>
    %14 = vector.broadcast %13 : vector<128x1xf32> to vector<128x128xf32>
    %15 = arith.addf %12, %14 : vector<128x128xf32>
    %cst_12 = arith.constant 0.000000e+00 : f32
    %16 = vector.broadcast %cst_12 : f32 to vector<128x128xf32>
    %17 = arith.maximumf %15, %16 : vector<128x128xf32>
    %c0_13 = arith.constant 0 : index
    %c0_14 = arith.constant 0 : index
    %18 = vector.load %arg6[%c0_13, %c0_14] : memref<128x1xf32, #tpu.memory_space<vmem>>, vector<128x1xf32>
    %c0_15 = arith.constant 0 : index
    %c0_16 = arith.constant 0 : index
    %19 = vector.load %arg7[%c0_15, %c0_16] : memref<128x1xf32, #tpu.memory_space<vmem>>, vector<128x1xf32>
    %20 = vector.extract_strided_slice %17 {offsets = [0, 0], sizes = [16, 128], strides = [1, 1]} : vector<128x128xf32> to vector<16x128xf32>
    %21 = vector.extract_strided_slice %18 {offsets = [0, 0], sizes = [16, 1], strides = [1, 1]} : vector<128x1xf32> to vector<16x1xf32>
    %22 = vector.extract_strided_slice %19 {offsets = [0, 0], sizes = [16, 1], strides = [1, 1]} : vector<128x1xf32> to vector<16x1xf32>
    %cst_17 = arith.constant dense<0.000000e+00> : vector<128xf32>
    %23 = vector.multi_reduction <add>, %20, %cst_17 [0] : vector<16x128xf32> to vector<128xf32>
    %24 = vector.shape_cast %23 : vector<128xf32> to vector<1x128xf32>
    %cst_18 = arith.constant 1.600000e+01 : f32
    %25 = vector.broadcast %cst_18 : f32 to vector<1x128xf32>
    %26 = arith.divf %24, %25 : vector<1x128xf32>
    %27 = vector.broadcast %26 : vector<1x128xf32> to vector<16x128xf32>
    %28 = arith.subf %20, %27 : vector<16x128xf32>
    %29 = arith.mulf %28, %28 : vector<16x128xf32>
    %cst_19 = arith.constant dense<0.000000e+00> : vector<128xf32>
    %30 = vector.multi_reduction <add>, %29, %cst_19 [0] : vector<16x128xf32> to vector<128xf32>
    %31 = vector.shape_cast %30 : vector<128xf32> to vector<1x128xf32>
    %cst_20 = arith.constant 1.600000e+01 : f32
    %32 = vector.broadcast %cst_20 : f32 to vector<1x128xf32>
    %33 = arith.divf %31, %32 : vector<1x128xf32>
    %34 = vector.broadcast %26 : vector<1x128xf32> to vector<16x128xf32>
    %35 = arith.subf %20, %34 : vector<16x128xf32>
    %cst_21 = arith.constant 9.99999974E-6 : f32
    %36 = vector.broadcast %cst_21 : f32 to vector<1x128xf32>
    %37 = arith.addf %33, %36 : vector<1x128xf32>
    %38 = math.rsqrt %37 : vector<1x128xf32>
    %39 = vector.broadcast %38 : vector<1x128xf32> to vector<16x128xf32>
    %40 = arith.mulf %35, %39 : vector<16x128xf32>
    %41 = vector.broadcast %21 : vector<16x1xf32> to vector<16x128xf32>
    %42 = arith.mulf %40, %41 : vector<16x128xf32>
    %43 = vector.broadcast %22 : vector<16x1xf32> to vector<16x128xf32>
    %44 = arith.addf %42, %43 : vector<16x128xf32>
    %45 = arith.truncf %44 : vector<16x128xf32> to vector<16x128xbf16>
    %c0_22 = arith.constant 0 : index
    %c0_23 = arith.constant 0 : index
    %c0_24 = arith.constant 0 : index
    %46 = vector.load %arg12[%c0_22, %c0_23, %c0_24] : memref<4x16x128xbf16, #tpu.memory_space<vmem>>, vector<1x16x128xbf16>
    %47 = vector.shape_cast %46 : vector<1x16x128xbf16> to vector<16x128xbf16>
    %48 = vector.shape_cast %45 : vector<16x128xbf16> to vector<1x16x128xbf16>
    tpu.vector_store %arg12[%c0_22, %c0_23, %c0_24], %48 {strides = array<i32>} : memref<4x16x128xbf16, #tpu.memory_space<vmem>>, vector<1x16x128xbf16>,
    %49 = vector.extract_strided_slice %17 {offsets = [16, 0], sizes = [16, 128], strides = [1, 1]} : vector<128x128xf32> to vector<16x128xf32>
    %50 = vector.extract_strided_slice %18 {offsets = [16, 0], sizes = [16, 1], strides = [1, 1]} : vector<128x1xf32> to vector<16x1xf32>
    %51 = vector.extract_strided_slice %19 {offsets = [16, 0], sizes = [16, 1], strides = [1, 1]} : vector<128x1xf32> to vector<16x1xf32>
    %cst_25 = arith.constant dense<0.000000e+00> : vector<128xf32>
    %52 = vector.multi_reduction <add>, %49, %cst_25 [0] : vector<16x128xf32> to vector<128xf32>
    %53 = vector.shape_cast %52 : vector<128xf32> to vector<1x128xf32>
    %cst_26 = arith.constant 1.600000e+01 : f32
    %54 = vector.broadcast %cst_26 : f32 to vector<1x128xf32>
    %55 = arith.divf %53, %54 : vector<1x128xf32>
    %56 = vector.broadcast %55 : vector<1x128xf32> to vector<16x128xf32>
    %57 = arith.subf %49, %56 : vector<16x128xf32>
    %58 = arith.mulf %57, %57 : vector<16x128xf32>
    %cst_27 = arith.constant dense<0.000000e+00> : vector<128xf32>
    %59 = vector.multi_reduction <add>, %58, %cst_27 [0] : vector<16x128xf32> to vector<128xf32>
    %60 = vector.shape_cast %59 : vector<128xf32> to vector<1x128xf32>
    %cst_28 = arith.constant 1.600000e+01 : f32
    %61 = vector.broadcast %cst_28 : f32 to vector<1x128xf32>
    %62 = arith.divf %60, %61 : vector<1x128xf32>
    %63 = vector.broadcast %55 : vector<1x128xf32> to vector<16x128xf32>
    %64 = arith.subf %49, %63 : vector<16x128xf32>
    %cst_29 = arith.constant 9.99999974E-6 : f32
    %65 = vector.broadcast %cst_29 : f32 to vector<1x128xf32>
    %66 = arith.addf %62, %65 : vector<1x128xf32>
    %67 = math.rsqrt %66 : vector<1x128xf32>
    %68 = vector.broadcast %67 : vector<1x128xf32> to vector<16x128xf32>
    %69 = arith.mulf %64, %68 : vector<16x128xf32>
    %70 = vector.broadcast %50 : vector<16x1xf32> to vector<16x128xf32>
    %71 = arith.mulf %69, %70 : vector<16x128xf32>
    %72 = vector.broadcast %51 : vector<16x1xf32> to vector<16x128xf32>
    %73 = arith.addf %71, %72 : vector<16x128xf32>
    %74 = arith.truncf %73 : vector<16x128xf32> to vector<16x128xbf16>
    %c1 = arith.constant 1 : index
    %c0_30 = arith.constant 0 : index
    %c0_31 = arith.constant 0 : index
    %75 = vector.load %arg12[%c1, %c0_30, %c0_31] : memref<4x16x128xbf16, #tpu.memory_space<vmem>>, vector<1x16x128xbf16>
    %76 = vector.shape_cast %75 : vector<1x16x128xbf16> to vector<16x128xbf16>
    %77 = vector.shape_cast %74 : vector<16x128xbf16> to vector<1x16x128xbf16>
    tpu.vector_store %arg12[%c1, %c0_30, %c0_31], %77 {strides = array<i32>} : memref<4x16x128xbf16, #tpu.memory_space<vmem>>, vector<1x16x128xbf16>,
    %78 = vector.extract_strided_slice %17 {offsets = [32, 0], sizes = [16, 128], strides = [1, 1]} : vector<128x128xf32> to vector<16x128xf32>
    %79 = vector.extract_strided_slice %18 {offsets = [32, 0], sizes = [16, 1], strides = [1, 1]} : vector<128x1xf32> to vector<16x1xf32>
    %80 = vector.extract_strided_slice %19 {offsets = [32, 0], sizes = [16, 1], strides = [1, 1]} : vector<128x1xf32> to vector<16x1xf32>
    %cst_32 = arith.constant dense<0.000000e+00> : vector<128xf32>
    %81 = vector.multi_reduction <add>, %78, %cst_32 [0] : vector<16x128xf32> to vector<128xf32>
    %82 = vector.shape_cast %81 : vector<128xf32> to vector<1x128xf32>
    %cst_33 = arith.constant 1.600000e+01 : f32
    %83 = vector.broadcast %cst_33 : f32 to vector<1x128xf32>
    %84 = arith.divf %82, %83 : vector<1x128xf32>
    %85 = vector.broadcast %84 : vector<1x128xf32> to vector<16x128xf32>
    %86 = arith.subf %78, %85 : vector<16x128xf32>
    %87 = arith.mulf %86, %86 : vector<16x128xf32>
    %cst_34 = arith.constant dense<0.000000e+00> : vector<128xf32>
    %88 = vector.multi_reduction <add>, %87, %cst_34 [0] : vector<16x128xf32> to vector<128xf32>
    %89 = vector.shape_cast %88 : vector<128xf32> to vector<1x128xf32>
    %cst_35 = arith.constant 1.600000e+01 : f32
    %90 = vector.broadcast %cst_35 : f32 to vector<1x128xf32>
    %91 = arith.divf %89, %90 : vector<1x128xf32>
    %92 = vector.broadcast %84 : vector<1x128xf32> to vector<16x128xf32>
    %93 = arith.subf %78, %92 : vector<16x128xf32>
    %cst_36 = arith.constant 9.99999974E-6 : f32
    %94 = vector.broadcast %cst_36 : f32 to vector<1x128xf32>
    %95 = arith.addf %91, %94 : vector<1x128xf32>
    %96 = math.rsqrt %95 : vector<1x128xf32>
    %97 = vector.broadcast %96 : vector<1x128xf32> to vector<16x128xf32>
    %98 = arith.mulf %93, %97 : vector<16x128xf32>
    %99 = vector.broadcast %79 : vector<16x1xf32> to vector<16x128xf32>
    %100 = arith.mulf %98, %99 : vector<16x128xf32>
    %101 = vector.broadcast %80 : vector<16x1xf32> to vector<16x128xf32>
    %102 = arith.addf %100, %101 : vector<16x128xf32>
    %103 = arith.truncf %102 : vector<16x128xf32> to vector<16x128xbf16>
    %c2 = arith.constant 2 : index
    %c0_37 = arith.constant 0 : index
    %c0_38 = arith.constant 0 : index
    %104 = vector.load %arg12[%c2, %c0_37, %c0_38] : memref<4x16x128xbf16, #tpu.memory_space<vmem>>, vector<1x16x128xbf16>
    %105 = vector.shape_cast %104 : vector<1x16x128xbf16> to vector<16x128xbf16>
    %106 = vector.shape_cast %103 : vector<16x128xbf16> to vector<1x16x128xbf16>
    tpu.vector_store %arg12[%c2, %c0_37, %c0_38], %106 {strides = array<i32>} : memref<4x16x128xbf16, #tpu.memory_space<vmem>>, vector<1x16x128xbf16>,
    %107 = vector.extract_strided_slice %17 {offsets = [48, 0], sizes = [16, 128], strides = [1, 1]} : vector<128x128xf32> to vector<16x128xf32>
    %108 = vector.extract_strided_slice %18 {offsets = [48, 0], sizes = [16, 1], strides = [1, 1]} : vector<128x1xf32> to vector<16x1xf32>
    %109 = vector.extract_strided_slice %19 {offsets = [48, 0], sizes = [16, 1], strides = [1, 1]} : vector<128x1xf32> to vector<16x1xf32>
    %cst_39 = arith.constant dense<0.000000e+00> : vector<128xf32>
    %110 = vector.multi_reduction <add>, %107, %cst_39 [0] : vector<16x128xf32> to vector<128xf32>
    %111 = vector.shape_cast %110 : vector<128xf32> to vector<1x128xf32>
    %cst_40 = arith.constant 1.600000e+01 : f32
    %112 = vector.broadcast %cst_40 : f32 to vector<1x128xf32>
    %113 = arith.divf %111, %112 : vector<1x128xf32>
    %114 = vector.broadcast %113 : vector<1x128xf32> to vector<16x128xf32>
    %115 = arith.subf %107, %114 : vector<16x128xf32>
    %116 = arith.mulf %115, %115 : vector<16x128xf32>
    %cst_41 = arith.constant dense<0.000000e+00> : vector<128xf32>
    %117 = vector.multi_reduction <add>, %116, %cst_41 [0] : vector<16x128xf32> to vector<128xf32>
    %118 = vector.shape_cast %117 : vector<128xf32> to vector<1x128xf32>
    %cst_42 = arith.constant 1.600000e+01 : f32
    %119 = vector.broadcast %cst_42 : f32 to vector<1x128xf32>
    %120 = arith.divf %118, %119 : vector<1x128xf32>
    %121 = vector.broadcast %113 : vector<1x128xf32> to vector<16x128xf32>
    %122 = arith.subf %107, %121 : vector<16x128xf32>
    %cst_43 = arith.constant 9.99999974E-6 : f32
    %123 = vector.broadcast %cst_43 : f32 to vector<1x128xf32>
    %124 = arith.addf %120, %123 : vector<1x128xf32>
    %125 = math.rsqrt %124 : vector<1x128xf32>
    %126 = vector.broadcast %125 : vector<1x128xf32> to vector<16x128xf32>
    %127 = arith.mulf %122, %126 : vector<16x128xf32>
    %128 = vector.broadcast %108 : vector<16x1xf32> to vector<16x128xf32>
    %129 = arith.mulf %127, %128 : vector<16x128xf32>
    %130 = vector.broadcast %109 : vector<16x1xf32> to vector<16x128xf32>
    %131 = arith.addf %129, %130 : vector<16x128xf32>
    %132 = arith.truncf %131 : vector<16x128xf32> to vector<16x128xbf16>
    %c3 = arith.constant 3 : index
    %c0_44 = arith.constant 0 : index
    %c0_45 = arith.constant 0 : index
    %133 = vector.load %arg12[%c3, %c0_44, %c0_45] : memref<4x16x128xbf16, #tpu.memory_space<vmem>>, vector<1x16x128xbf16>
    %134 = vector.shape_cast %133 : vector<1x16x128xbf16> to vector<16x128xbf16>
    %135 = vector.shape_cast %132 : vector<16x128xbf16> to vector<1x16x128xbf16>
    tpu.vector_store %arg12[%c3, %c0_44, %c0_45], %135 {strides = array<i32>} : memref<4x16x128xbf16, #tpu.memory_space<vmem>>, vector<1x16x128xbf16>,
    %136 = vector.extract_strided_slice %17 {offsets = [64, 0], sizes = [16, 128], strides = [1, 1]} : vector<128x128xf32> to vector<16x128xf32>
    %137 = vector.extract_strided_slice %18 {offsets = [64, 0], sizes = [16, 1], strides = [1, 1]} : vector<128x1xf32> to vector<16x1xf32>
    %138 = vector.extract_strided_slice %19 {offsets = [64, 0], sizes = [16, 1], strides = [1, 1]} : vector<128x1xf32> to vector<16x1xf32>
    %cst_46 = arith.constant dense<0.000000e+00> : vector<128xf32>
    %139 = vector.multi_reduction <add>, %136, %cst_46 [0] : vector<16x128xf32> to vector<128xf32>
    %140 = vector.shape_cast %139 : vector<128xf32> to vector<1x128xf32>
    %cst_47 = arith.constant 1.600000e+01 : f32
    %141 = vector.broadcast %cst_47 : f32 to vector<1x128xf32>
    %142 = arith.divf %140, %141 : vector<1x128xf32>
    %143 = vector.broadcast %142 : vector<1x128xf32> to vector<16x128xf32>
    %144 = arith.subf %136, %143 : vector<16x128xf32>
    %145 = arith.mulf %144, %144 : vector<16x128xf32>
    %cst_48 = arith.constant dense<0.000000e+00> : vector<128xf32>
    %146 = vector.multi_reduction <add>, %145, %cst_48 [0] : vector<16x128xf32> to vector<128xf32>
    %147 = vector.shape_cast %146 : vector<128xf32> to vector<1x128xf32>
    %cst_49 = arith.constant 1.600000e+01 : f32
    %148 = vector.broadcast %cst_49 : f32 to vector<1x128xf32>
    %149 = arith.divf %147, %148 : vector<1x128xf32>
    %150 = vector.broadcast %142 : vector<1x128xf32> to vector<16x128xf32>
    %151 = arith.subf %136, %150 : vector<16x128xf32>
    %cst_50 = arith.constant 9.99999974E-6 : f32
    %152 = vector.broadcast %cst_50 : f32 to vector<1x128xf32>
    %153 = arith.addf %149, %152 : vector<1x128xf32>
    %154 = math.rsqrt %153 : vector<1x128xf32>
    %155 = vector.broadcast %154 : vector<1x128xf32> to vector<16x128xf32>
    %156 = arith.mulf %151, %155 : vector<16x128xf32>
    %157 = vector.broadcast %137 : vector<16x1xf32> to vector<16x128xf32>
    %158 = arith.mulf %156, %157 : vector<16x128xf32>
    %159 = vector.broadcast %138 : vector<16x1xf32> to vector<16x128xf32>
    %160 = arith.addf %158, %159 : vector<16x128xf32>
    %161 = arith.truncf %160 : vector<16x128xf32> to vector<16x128xbf16>
    %c0_51 = arith.constant 0 : index
    %c0_52 = arith.constant 0 : index
    %c0_53 = arith.constant 0 : index
    %162 = vector.load %arg13[%c0_51, %c0_52, %c0_53] : memref<4x16x128xbf16, #tpu.memory_space<vmem>>, vector<1x16x128xbf16>
    %163 = vector.shape_cast %162 : vector<1x16x128xbf16> to vector<16x128xbf16>
    %164 = vector.shape_cast %161 : vector<16x128xbf16> to vector<1x16x128xbf16>
    tpu.vector_store %arg13[%c0_51, %c0_52, %c0_53], %164 {strides = array<i32>} : memref<4x16x128xbf16, #tpu.memory_space<vmem>>, vector<1x16x128xbf16>,
    %165 = vector.extract_strided_slice %17 {offsets = [80, 0], sizes = [16, 128], strides = [1, 1]} : vector<128x128xf32> to vector<16x128xf32>
    %166 = vector.extract_strided_slice %18 {offsets = [80, 0], sizes = [16, 1], strides = [1, 1]} : vector<128x1xf32> to vector<16x1xf32>
    %167 = vector.extract_strided_slice %19 {offsets = [80, 0], sizes = [16, 1], strides = [1, 1]} : vector<128x1xf32> to vector<16x1xf32>
    %cst_54 = arith.constant dense<0.000000e+00> : vector<128xf32>
    %168 = vector.multi_reduction <add>, %165, %cst_54 [0] : vector<16x128xf32> to vector<128xf32>
    %169 = vector.shape_cast %168 : vector<128xf32> to vector<1x128xf32>
    %cst_55 = arith.constant 1.600000e+01 : f32
    %170 = vector.broadcast %cst_55 : f32 to vector<1x128xf32>
    %171 = arith.divf %169, %170 : vector<1x128xf32>
    %172 = vector.broadcast %171 : vector<1x128xf32> to vector<16x128xf32>
    %173 = arith.subf %165, %172 : vector<16x128xf32>
    %174 = arith.mulf %173, %173 : vector<16x128xf32>
    %cst_56 = arith.constant dense<0.000000e+00> : vector<128xf32>
    %175 = vector.multi_reduction <add>, %174, %cst_56 [0] : vector<16x128xf32> to vector<128xf32>
    %176 = vector.shape_cast %175 : vector<128xf32> to vector<1x128xf32>
    %cst_57 = arith.constant 1.600000e+01 : f32
    %177 = vector.broadcast %cst_57 : f32 to vector<1x128xf32>
    %178 = arith.divf %176, %177 : vector<1x128xf32>
    %179 = vector.broadcast %171 : vector<1x128xf32> to vector<16x128xf32>
    %180 = arith.subf %165, %179 : vector<16x128xf32>
    %cst_58 = arith.constant 9.99999974E-6 : f32
    %181 = vector.broadcast %cst_58 : f32 to vector<1x128xf32>
    %182 = arith.addf %178, %181 : vector<1x128xf32>
    %183 = math.rsqrt %182 : vector<1x128xf32>
    %184 = vector.broadcast %183 : vector<1x128xf32> to vector<16x128xf32>
    %185 = arith.mulf %180, %184 : vector<16x128xf32>
    %186 = vector.broadcast %166 : vector<16x1xf32> to vector<16x128xf32>
    %187 = arith.mulf %185, %186 : vector<16x128xf32>
    %188 = vector.broadcast %167 : vector<16x1xf32> to vector<16x128xf32>
    %189 = arith.addf %187, %188 : vector<16x128xf32>
    %190 = arith.truncf %189 : vector<16x128xf32> to vector<16x128xbf16>
    %c1_59 = arith.constant 1 : index
    %c0_60 = arith.constant 0 : index
    %c0_61 = arith.constant 0 : index
    %191 = vector.load %arg13[%c1_59, %c0_60, %c0_61] : memref<4x16x128xbf16, #tpu.memory_space<vmem>>, vector<1x16x128xbf16>
    %192 = vector.shape_cast %191 : vector<1x16x128xbf16> to vector<16x128xbf16>
    %193 = vector.shape_cast %190 : vector<16x128xbf16> to vector<1x16x128xbf16>
    tpu.vector_store %arg13[%c1_59, %c0_60, %c0_61], %193 {strides = array<i32>} : memref<4x16x128xbf16, #tpu.memory_space<vmem>>, vector<1x16x128xbf16>,
    %194 = vector.extract_strided_slice %17 {offsets = [96, 0], sizes = [16, 128], strides = [1, 1]} : vector<128x128xf32> to vector<16x128xf32>
    %195 = vector.extract_strided_slice %18 {offsets = [96, 0], sizes = [16, 1], strides = [1, 1]} : vector<128x1xf32> to vector<16x1xf32>
    %196 = vector.extract_strided_slice %19 {offsets = [96, 0], sizes = [16, 1], strides = [1, 1]} : vector<128x1xf32> to vector<16x1xf32>
    %cst_62 = arith.constant dense<0.000000e+00> : vector<128xf32>
    %197 = vector.multi_reduction <add>, %194, %cst_62 [0] : vector<16x128xf32> to vector<128xf32>
    %198 = vector.shape_cast %197 : vector<128xf32> to vector<1x128xf32>
    %cst_63 = arith.constant 1.600000e+01 : f32
    %199 = vector.broadcast %cst_63 : f32 to vector<1x128xf32>
    %200 = arith.divf %198, %199 : vector<1x128xf32>
    %201 = vector.broadcast %200 : vector<1x128xf32> to vector<16x128xf32>
    %202 = arith.subf %194, %201 : vector<16x128xf32>
    %203 = arith.mulf %202, %202 : vector<16x128xf32>
    %cst_64 = arith.constant dense<0.000000e+00> : vector<128xf32>
    %204 = vector.multi_reduction <add>, %203, %cst_64 [0] : vector<16x128xf32> to vector<128xf32>
    %205 = vector.shape_cast %204 : vector<128xf32> to vector<1x128xf32>
    %cst_65 = arith.constant 1.600000e+01 : f32
    %206 = vector.broadcast %cst_65 : f32 to vector<1x128xf32>
    %207 = arith.divf %205, %206 : vector<1x128xf32>
    %208 = vector.broadcast %200 : vector<1x128xf32> to vector<16x128xf32>
    %209 = arith.subf %194, %208 : vector<16x128xf32>
    %cst_66 = arith.constant 9.99999974E-6 : f32
    %210 = vector.broadcast %cst_66 : f32 to vector<1x128xf32>
    %211 = arith.addf %207, %210 : vector<1x128xf32>
    %212 = math.rsqrt %211 : vector<1x128xf32>
    %213 = vector.broadcast %212 : vector<1x128xf32> to vector<16x128xf32>
    %214 = arith.mulf %209, %213 : vector<16x128xf32>
    %215 = vector.broadcast %195 : vector<16x1xf32> to vector<16x128xf32>
    %216 = arith.mulf %214, %215 : vector<16x128xf32>
    %217 = vector.broadcast %196 : vector<16x1xf32> to vector<16x128xf32>
    %218 = arith.addf %216, %217 : vector<16x128xf32>
    %219 = arith.truncf %218 : vector<16x128xf32> to vector<16x128xbf16>
    %c2_67 = arith.constant 2 : index
    %c0_68 = arith.constant 0 : index
    %c0_69 = arith.constant 0 : index
    %220 = vector.load %arg13[%c2_67, %c0_68, %c0_69] : memref<4x16x128xbf16, #tpu.memory_space<vmem>>, vector<1x16x128xbf16>
    %221 = vector.shape_cast %220 : vector<1x16x128xbf16> to vector<16x128xbf16>
    %222 = vector.shape_cast %219 : vector<16x128xbf16> to vector<1x16x128xbf16>
    tpu.vector_store %arg13[%c2_67, %c0_68, %c0_69], %222 {strides = array<i32>} : memref<4x16x128xbf16, #tpu.memory_space<vmem>>, vector<1x16x128xbf16>,
    %223 = vector.extract_strided_slice %17 {offsets = [112, 0], sizes = [16, 128], strides = [1, 1]} : vector<128x128xf32> to vector<16x128xf32>
    %224 = vector.extract_strided_slice %18 {offsets = [112, 0], sizes = [16, 1], strides = [1, 1]} : vector<128x1xf32> to vector<16x1xf32>
    %225 = vector.extract_strided_slice %19 {offsets = [112, 0], sizes = [16, 1], strides = [1, 1]} : vector<128x1xf32> to vector<16x1xf32>
    %cst_70 = arith.constant dense<0.000000e+00> : vector<128xf32>
    %226 = vector.multi_reduction <add>, %223, %cst_70 [0] : vector<16x128xf32> to vector<128xf32>
    %227 = vector.shape_cast %226 : vector<128xf32> to vector<1x128xf32>
    %cst_71 = arith.constant 1.600000e+01 : f32
    %228 = vector.broadcast %cst_71 : f32 to vector<1x128xf32>
    %229 = arith.divf %227, %228 : vector<1x128xf32>
    %230 = vector.broadcast %229 : vector<1x128xf32> to vector<16x128xf32>
    %231 = arith.subf %223, %230 : vector<16x128xf32>
    %232 = arith.mulf %231, %231 : vector<16x128xf32>
    %cst_72 = arith.constant dense<0.000000e+00> : vector<128xf32>
    %233 = vector.multi_reduction <add>, %232, %cst_72 [0] : vector<16x128xf32> to vector<128xf32>
    %234 = vector.shape_cast %233 : vector<128xf32> to vector<1x128xf32>
    %cst_73 = arith.constant 1.600000e+01 : f32
    %235 = vector.broadcast %cst_73 : f32 to vector<1x128xf32>
    %236 = arith.divf %234, %235 : vector<1x128xf32>
    %237 = vector.broadcast %229 : vector<1x128xf32> to vector<16x128xf32>
    %238 = arith.subf %223, %237 : vector<16x128xf32>
    %cst_74 = arith.constant 9.99999974E-6 : f32
    %239 = vector.broadcast %cst_74 : f32 to vector<1x128xf32>
    %240 = arith.addf %236, %239 : vector<1x128xf32>
    %241 = math.rsqrt %240 : vector<1x128xf32>
    %242 = vector.broadcast %241 : vector<1x128xf32> to vector<16x128xf32>
    %243 = arith.mulf %238, %242 : vector<16x128xf32>
    %244 = vector.broadcast %224 : vector<16x1xf32> to vector<16x128xf32>
    %245 = arith.mulf %243, %244 : vector<16x128xf32>
    %246 = vector.broadcast %225 : vector<16x1xf32> to vector<16x128xf32>
    %247 = arith.addf %245, %246 : vector<16x128xf32>
    %248 = arith.truncf %247 : vector<16x128xf32> to vector<16x128xbf16>
    %c3_75 = arith.constant 3 : index
    %c0_76 = arith.constant 0 : index
    %c0_77 = arith.constant 0 : index
    %249 = vector.load %arg13[%c3_75, %c0_76, %c0_77] : memref<4x16x128xbf16, #tpu.memory_space<vmem>>, vector<1x16x128xbf16>
    %250 = vector.shape_cast %249 : vector<1x16x128xbf16> to vector<16x128xbf16>
    %251 = vector.shape_cast %248 : vector<16x128xbf16> to vector<1x16x128xbf16>
    tpu.vector_store %arg13[%c3_75, %c0_76, %c0_77], %251 {strides = array<i32>} : memref<4x16x128xbf16, #tpu.memory_space<vmem>>, vector<1x16x128xbf16>,
    %c0_78 = arith.constant 0 : index
    %c0_79 = arith.constant 0 : index
    %252 = vector.load %arg8[%c0_78, %c0_79] : memref<24x24xf32, #tpu.memory_space<vmem>>, vector<24x24xf32>
    %cst_80 = arith.constant dense<0.000000e+00> : vector<24x128xf32>
    %253 = tpu.matmul %252, %10, %cst_80 {dimension_numbers = #tpu.dot_dimension_numbers<[1], [0], [0], [1], [0, 0, 1, 1], [], []>} : vector<24x24xf32>, vector<24x128xf32>, vector<24x128xf32> -> vector<24x128xf32>
    %c0_81 = arith.constant 0 : index
    %c0_82 = arith.constant 0 : index
    %254 = vector.load %arg9[%c0_81, %c0_82] : memref<24x1xf32, #tpu.memory_space<vmem>>, vector<24x1xf32>
    %255 = vector.broadcast %254 : vector<24x1xf32> to vector<24x128xf32>
    %256 = arith.addf %253, %255 : vector<24x128xf32>
    %cst_83 = arith.constant 0.000000e+00 : f32
    %257 = vector.broadcast %cst_83 : f32 to vector<24x128xf32>
    %258 = arith.maximumf %256, %257 : vector<24x128xf32>
    %c0_84 = arith.constant 0 : index
    %c0_85 = arith.constant 0 : index
    %259 = vector.load %arg10[%c0_84, %c0_85] : memref<24x1xf32, #tpu.memory_space<vmem>>, vector<24x1xf32>
    %c0_86 = arith.constant 0 : index
    %c0_87 = arith.constant 0 : index
    %260 = vector.load %arg11[%c0_86, %c0_87] : memref<24x1xf32, #tpu.memory_space<vmem>>, vector<24x1xf32>
    %261 = vector.extract_strided_slice %258 {offsets = [0, 0], sizes = [6, 128], strides = [1, 1]} : vector<24x128xf32> to vector<6x128xf32>
    %262 = vector.extract_strided_slice %259 {offsets = [0, 0], sizes = [6, 1], strides = [1, 1]} : vector<24x1xf32> to vector<6x1xf32>
    %263 = vector.extract_strided_slice %260 {offsets = [0, 0], sizes = [6, 1], strides = [1, 1]} : vector<24x1xf32> to vector<6x1xf32>
    %cst_88 = arith.constant dense<0.000000e+00> : vector<128xf32>
    %264 = vector.multi_reduction <add>, %261, %cst_88 [0] : vector<6x128xf32> to vector<128xf32>
    %265 = vector.shape_cast %264 : vector<128xf32> to vector<1x128xf32>
    %cst_89 = arith.constant 6.000000e+00 : f32
    %266 = vector.broadcast %cst_89 : f32 to vector<1x128xf32>
    %267 = arith.divf %265, %266 : vector<1x128xf32>
    %268 = vector.broadcast %267 : vector<1x128xf32> to vector<6x128xf32>
    %269 = arith.subf %261, %268 : vector<6x128xf32>
    %270 = arith.mulf %269, %269 : vector<6x128xf32>
    %cst_90 = arith.constant dense<0.000000e+00> : vector<128xf32>
    %271 = vector.multi_reduction <add>, %270, %cst_90 [0] : vector<6x128xf32> to vector<128xf32>
    %272 = vector.shape_cast %271 : vector<128xf32> to vector<1x128xf32>
    %cst_91 = arith.constant 6.000000e+00 : f32
    %273 = vector.broadcast %cst_91 : f32 to vector<1x128xf32>
    %274 = arith.divf %272, %273 : vector<1x128xf32>
    %275 = vector.broadcast %267 : vector<1x128xf32> to vector<6x128xf32>
    %276 = arith.subf %261, %275 : vector<6x128xf32>
    %cst_92 = arith.constant 9.99999974E-6 : f32
    %277 = vector.broadcast %cst_92 : f32 to vector<1x128xf32>
    %278 = arith.addf %274, %277 : vector<1x128xf32>
    %279 = math.rsqrt %278 : vector<1x128xf32>
    %280 = vector.broadcast %279 : vector<1x128xf32> to vector<6x128xf32>
    %281 = arith.mulf %276, %280 : vector<6x128xf32>
    %282 = vector.broadcast %262 : vector<6x1xf32> to vector<6x128xf32>
    %283 = arith.mulf %281, %282 : vector<6x128xf32>
    %284 = vector.broadcast %263 : vector<6x1xf32> to vector<6x128xf32>
    %285 = arith.addf %283, %284 : vector<6x128xf32>
    %286 = arith.truncf %285 : vector<6x128xf32> to vector<6x128xbf16>
    %c0_93 = arith.constant 0 : index
    %c0_94 = arith.constant 0 : index
    %c0_95 = arith.constant 0 : index
    %287 = vector.load %arg14[%c0_93, %c0_94, %c0_95] : memref<4x6x128xbf16, #tpu.memory_space<vmem>>, vector<1x6x128xbf16>
    %288 = vector.shape_cast %287 : vector<1x6x128xbf16> to vector<6x128xbf16>
    %289 = vector.shape_cast %286 : vector<6x128xbf16> to vector<1x6x128xbf16>
    tpu.vector_store %arg14[%c0_93, %c0_94, %c0_95], %289 {strides = array<i32>} : memref<4x6x128xbf16, #tpu.memory_space<vmem>>, vector<1x6x128xbf16>,
    %290 = vector.extract_strided_slice %258 {offsets = [6, 0], sizes = [6, 128], strides = [1, 1]} : vector<24x128xf32> to vector<6x128xf32>
    %291 = vector.extract_strided_slice %259 {offsets = [6, 0], sizes = [6, 1], strides = [1, 1]} : vector<24x1xf32> to vector<6x1xf32>
    %292 = vector.extract_strided_slice %260 {offsets = [6, 0], sizes = [6, 1], strides = [1, 1]} : vector<24x1xf32> to vector<6x1xf32>
    %cst_96 = arith.constant dense<0.000000e+00> : vector<128xf32>
    %293 = vector.multi_reduction <add>, %290, %cst_96 [0] : vector<6x128xf32> to vector<128xf32>
    %294 = vector.shape_cast %293 : vector<128xf32> to vector<1x128xf32>
    %cst_97 = arith.constant 6.000000e+00 : f32
    %295 = vector.broadcast %cst_97 : f32 to vector<1x128xf32>
    %296 = arith.divf %294, %295 : vector<1x128xf32>
    %297 = vector.broadcast %296 : vector<1x128xf32> to vector<6x128xf32>
    %298 = arith.subf %290, %297 : vector<6x128xf32>
    %299 = arith.mulf %298, %298 : vector<6x128xf32>
    %cst_98 = arith.constant dense<0.000000e+00> : vector<128xf32>
    %300 = vector.multi_reduction <add>, %299, %cst_98 [0] : vector<6x128xf32> to vector<128xf32>
    %301 = vector.shape_cast %300 : vector<128xf32> to vector<1x128xf32>
    %cst_99 = arith.constant 6.000000e+00 : f32
    %302 = vector.broadcast %cst_99 : f32 to vector<1x128xf32>
    %303 = arith.divf %301, %302 : vector<1x128xf32>
    %304 = vector.broadcast %296 : vector<1x128xf32> to vector<6x128xf32>
    %305 = arith.subf %290, %304 : vector<6x128xf32>
    %cst_100 = arith.constant 9.99999974E-6 : f32
    %306 = vector.broadcast %cst_100 : f32 to vector<1x128xf32>
    %307 = arith.addf %303, %306 : vector<1x128xf32>
    %308 = math.rsqrt %307 : vector<1x128xf32>
    %309 = vector.broadcast %308 : vector<1x128xf32> to vector<6x128xf32>
    %310 = arith.mulf %305, %309 : vector<6x128xf32>
    %311 = vector.broadcast %291 : vector<6x1xf32> to vector<6x128xf32>
    %312 = arith.mulf %310, %311 : vector<6x128xf32>
    %313 = vector.broadcast %292 : vector<6x1xf32> to vector<6x128xf32>
    %314 = arith.addf %312, %313 : vector<6x128xf32>
    %315 = arith.truncf %314 : vector<6x128xf32> to vector<6x128xbf16>
    %c1_101 = arith.constant 1 : index
    %c0_102 = arith.constant 0 : index
    %c0_103 = arith.constant 0 : index
    %316 = vector.load %arg14[%c1_101, %c0_102, %c0_103] : memref<4x6x128xbf16, #tpu.memory_space<vmem>>, vector<1x6x128xbf16>
    %317 = vector.shape_cast %316 : vector<1x6x128xbf16> to vector<6x128xbf16>
    %318 = vector.shape_cast %315 : vector<6x128xbf16> to vector<1x6x128xbf16>
    tpu.vector_store %arg14[%c1_101, %c0_102, %c0_103], %318 {strides = array<i32>} : memref<4x6x128xbf16, #tpu.memory_space<vmem>>, vector<1x6x128xbf16>,
    %319 = vector.extract_strided_slice %258 {offsets = [12, 0], sizes = [6, 128], strides = [1, 1]} : vector<24x128xf32> to vector<6x128xf32>
    %320 = vector.extract_strided_slice %259 {offsets = [12, 0], sizes = [6, 1], strides = [1, 1]} : vector<24x1xf32> to vector<6x1xf32>
    %321 = vector.extract_strided_slice %260 {offsets = [12, 0], sizes = [6, 1], strides = [1, 1]} : vector<24x1xf32> to vector<6x1xf32>
    %cst_104 = arith.constant dense<0.000000e+00> : vector<128xf32>
    %322 = vector.multi_reduction <add>, %319, %cst_104 [0] : vector<6x128xf32> to vector<128xf32>
    %323 = vector.shape_cast %322 : vector<128xf32> to vector<1x128xf32>
    %cst_105 = arith.constant 6.000000e+00 : f32
    %324 = vector.broadcast %cst_105 : f32 to vector<1x128xf32>
    %325 = arith.divf %323, %324 : vector<1x128xf32>
    %326 = vector.broadcast %325 : vector<1x128xf32> to vector<6x128xf32>
    %327 = arith.subf %319, %326 : vector<6x128xf32>
    %328 = arith.mulf %327, %327 : vector<6x128xf32>
    %cst_106 = arith.constant dense<0.000000e+00> : vector<128xf32>
    %329 = vector.multi_reduction <add>, %328, %cst_106 [0] : vector<6x128xf32> to vector<128xf32>
    %330 = vector.shape_cast %329 : vector<128xf32> to vector<1x128xf32>
    %cst_107 = arith.constant 6.000000e+00 : f32
    %331 = vector.broadcast %cst_107 : f32 to vector<1x128xf32>
    %332 = arith.divf %330, %331 : vector<1x128xf32>
    %333 = vector.broadcast %325 : vector<1x128xf32> to vector<6x128xf32>
    %334 = arith.subf %319, %333 : vector<6x128xf32>
    %cst_108 = arith.constant 9.99999974E-6 : f32
    %335 = vector.broadcast %cst_108 : f32 to vector<1x128xf32>
    %336 = arith.addf %332, %335 : vector<1x128xf32>
    %337 = math.rsqrt %336 : vector<1x128xf32>
    %338 = vector.broadcast %337 : vector<1x128xf32> to vector<6x128xf32>
    %339 = arith.mulf %334, %338 : vector<6x128xf32>
    %340 = vector.broadcast %320 : vector<6x1xf32> to vector<6x128xf32>
    %341 = arith.mulf %339, %340 : vector<6x128xf32>
    %342 = vector.broadcast %321 : vector<6x1xf32> to vector<6x128xf32>
    %343 = arith.addf %341, %342 : vector<6x128xf32>
    %344 = arith.truncf %343 : vector<6x128xf32> to vector<6x128xbf16>
    %c2_109 = arith.constant 2 : index
    %c0_110 = arith.constant 0 : index
    %c0_111 = arith.constant 0 : index
    %345 = vector.load %arg14[%c2_109, %c0_110, %c0_111] : memref<4x6x128xbf16, #tpu.memory_space<vmem>>, vector<1x6x128xbf16>
    %346 = vector.shape_cast %345 : vector<1x6x128xbf16> to vector<6x128xbf16>
    %347 = vector.shape_cast %344 : vector<6x128xbf16> to vector<1x6x128xbf16>
    tpu.vector_store %arg14[%c2_109, %c0_110, %c0_111], %347 {strides = array<i32>} : memref<4x6x128xbf16, #tpu.memory_space<vmem>>, vector<1x6x128xbf16>,
    %348 = vector.extract_strided_slice %258 {offsets = [18, 0], sizes = [6, 128], strides = [1, 1]} : vector<24x128xf32> to vector<6x128xf32>
    %349 = vector.extract_strided_slice %259 {offsets = [18, 0], sizes = [6, 1], strides = [1, 1]} : vector<24x1xf32> to vector<6x1xf32>
    %350 = vector.extract_strided_slice %260 {offsets = [18, 0], sizes = [6, 1], strides = [1, 1]} : vector<24x1xf32> to vector<6x1xf32>
    %cst_112 = arith.constant dense<0.000000e+00> : vector<128xf32>
    %351 = vector.multi_reduction <add>, %348, %cst_112 [0] : vector<6x128xf32> to vector<128xf32>
    %352 = vector.shape_cast %351 : vector<128xf32> to vector<1x128xf32>
    %cst_113 = arith.constant 6.000000e+00 : f32
    %353 = vector.broadcast %cst_113 : f32 to vector<1x128xf32>
    %354 = arith.divf %352, %353 : vector<1x128xf32>
    %355 = vector.broadcast %354 : vector<1x128xf32> to vector<6x128xf32>
    %356 = arith.subf %348, %355 : vector<6x128xf32>
    %357 = arith.mulf %356, %356 : vector<6x128xf32>
    %cst_114 = arith.constant dense<0.000000e+00> : vector<128xf32>
    %358 = vector.multi_reduction <add>, %357, %cst_114 [0] : vector<6x128xf32> to vector<128xf32>
    %359 = vector.shape_cast %358 : vector<128xf32> to vector<1x128xf32>
    %cst_115 = arith.constant 6.000000e+00 : f32
    %360 = vector.broadcast %cst_115 : f32 to vector<1x128xf32>
    %361 = arith.divf %359, %360 : vector<1x128xf32>
    %362 = vector.broadcast %354 : vector<1x128xf32> to vector<6x128xf32>
    %363 = arith.subf %348, %362 : vector<6x128xf32>
    %cst_116 = arith.constant 9.99999974E-6 : f32
    %364 = vector.broadcast %cst_116 : f32 to vector<1x128xf32>
    %365 = arith.addf %361, %364 : vector<1x128xf32>
    %366 = math.rsqrt %365 : vector<1x128xf32>
    %367 = vector.broadcast %366 : vector<1x128xf32> to vector<6x128xf32>
    %368 = arith.mulf %363, %367 : vector<6x128xf32>
    %369 = vector.broadcast %349 : vector<6x1xf32> to vector<6x128xf32>
    %370 = arith.mulf %368, %369 : vector<6x128xf32>
    %371 = vector.broadcast %350 : vector<6x1xf32> to vector<6x128xf32>
    %372 = arith.addf %370, %371 : vector<6x128xf32>
    %373 = arith.truncf %372 : vector<6x128xf32> to vector<6x128xbf16>
    %c3_117 = arith.constant 3 : index
    %c0_118 = arith.constant 0 : index
    %c0_119 = arith.constant 0 : index
    %374 = vector.load %arg14[%c3_117, %c0_118, %c0_119] : memref<4x6x128xbf16, #tpu.memory_space<vmem>>, vector<1x6x128xbf16>
    %375 = vector.shape_cast %374 : vector<1x6x128xbf16> to vector<6x128xbf16>
    %376 = vector.shape_cast %373 : vector<6x128xbf16> to vector<1x6x128xbf16>
    tpu.vector_store %arg14[%c3_117, %c0_118, %c0_119], %376 {strides = array<i32>} : memref<4x6x128xbf16, #tpu.memory_space<vmem>>, vector<1x6x128xbf16>,
    return
  }
  func.func @transform_0(%arg0: i32) -> (i32, i32) {
    %c0_i32 = arith.constant 0 : i32
    %c0_i32_0 = arith.constant 0 : i32
    return %c0_i32, %arg0 : i32, i32
  }
  func.func @transform_1(%arg0: i32) -> (i32, i32) {
    %c0_i32 = arith.constant 0 : i32
    %c0_i32_0 = arith.constant 0 : i32
    %c0_i32_1 = arith.constant 0 : i32
    return %c0_i32, %c0_i32_0 : i32, i32
  }
  func.func @transform_2(%arg0: i32) -> (i32, i32) {
    %c0_i32 = arith.constant 0 : i32
    %c0_i32_0 = arith.constant 0 : i32
    %c0_i32_1 = arith.constant 0 : i32
    return %c0_i32, %c0_i32_0 : i32, i32
  }
  func.func @transform_3(%arg0: i32) -> (i32, i32) {
    %c0_i32 = arith.constant 0 : i32
    %c0_i32_0 = arith.constant 0 : i32
    %c0_i32_1 = arith.constant 0 : i32
    return %c0_i32, %c0_i32_0 : i32, i32
  }
  func.func @transform_4(%arg0: i32) -> (i32, i32) {
    %c0_i32 = arith.constant 0 : i32
    %c0_i32_0 = arith.constant 0 : i32
    %c0_i32_1 = arith.constant 0 : i32
    return %c0_i32, %c0_i32_0 : i32, i32
  }
  func.func @transform_5(%arg0: i32) -> (i32, i32) {
    %c0_i32 = arith.constant 0 : i32
    %c0_i32_0 = arith.constant 0 : i32
    %c0_i32_1 = arith.constant 0 : i32
    return %c0_i32, %c0_i32_0 : i32, i32
  }
  func.func @transform_6(%arg0: i32) -> (i32, i32) {
    %c0_i32 = arith.constant 0 : i32
    %c0_i32_0 = arith.constant 0 : i32
    %c0_i32_1 = arith.constant 0 : i32
    return %c0_i32, %c0_i32_0 : i32, i32
  }
  func.func @transform_7(%arg0: i32) -> (i32, i32) {
    %c0_i32 = arith.constant 0 : i32
    %c0_i32_0 = arith.constant 0 : i32
    %c0_i32_1 = arith.constant 0 : i32
    return %c0_i32, %c0_i32_0 : i32, i32
  }
  func.func @transform_8(%arg0: i32) -> (i32, i32) {
    %c0_i32 = arith.constant 0 : i32
    %c0_i32_0 = arith.constant 0 : i32
    %c0_i32_1 = arith.constant 0 : i32
    return %c0_i32, %c0_i32_0 : i32, i32
  }
  func.func @transform_9(%arg0: i32) -> (i32, i32) {
    %c0_i32 = arith.constant 0 : i32
    %c0_i32_0 = arith.constant 0 : i32
    %c0_i32_1 = arith.constant 0 : i32
    return %c0_i32, %c0_i32_0 : i32, i32
  }
  func.func @transform_10(%arg0: i32) -> (i32, i32) {
    %c0_i32 = arith.constant 0 : i32
    %c0_i32_0 = arith.constant 0 : i32
    %c0_i32_1 = arith.constant 0 : i32
    return %c0_i32, %c0_i32_0 : i32, i32
  }
  func.func @transform_11(%arg0: i32) -> (i32, i32, i32) {
    %c0_i32 = arith.constant 0 : i32
    %c0_i32_0 = arith.constant 0 : i32
    %c0_i32_1 = arith.constant 0 : i32
    return %c0_i32, %c0_i32_0, %arg0 : i32, i32, i32
  }
  func.func @transform_12(%arg0: i32) -> (i32, i32, i32) {
    %c0_i32 = arith.constant 0 : i32
    %c0_i32_0 = arith.constant 0 : i32
    %c0_i32_1 = arith.constant 0 : i32
    return %c0_i32, %c0_i32_0, %arg0 : i32, i32, i32
  }
  func.func @transform_13(%arg0: i32) -> (i32, i32, i32) {
    %c0_i32 = arith.constant 0 : i32
    %c0_i32_0 = arith.constant 0 : i32
    %c0_i32_1 = arith.constant 0 : i32
    return %c0_i32, %c0_i32_0, %arg0 : i32, i32, i32
  }
}

</mosaic_0001>

<llo_original>
// kernel: channel_attention_tac.4
$region0: #{channel_attention_tac.4}
  #allocation0 [shape = 'u32[]', space=smem, size = 0x4, offset = 0x4, fixed_abs, tag = 'smem constant byte address 0x4 - core index']
  #allocation1 [shape = 'u32[144,128]{1,0:T(1,128)}', space=vmem, size = 0x12000, scoped, tag = 'internal scratch']
  %s0 = inlined_call_operand.vmem [shape: bf16[4,16,512], index: 0, kind: input, shape index: {}]
  %s1 = inlined_call_operand.vmem [shape: bf16[4,16,512], index: 1, kind: input, shape index: {}]
  %s2 = inlined_call_operand.vmem [shape: bf16[4,6,512], index: 2, kind: input, shape index: {}]
  %s3 = inlined_call_operand.vmem [shape: bf16[4,6,512], index: 3, kind: output, shape index: {}]
  %s4 = sld [smem:[#allocation0]]
  $region121: #{channel_attention_tac.4} parent=0
    _
  %s6 = ssub.s32 1, %s4
  %s7 = scalar_select 0, %s6, %s4
  $region1: #{channel_attention_tac.4} parent=0
    #allocation2 [shape = 'u8[16384]{0}', space=vmem, size = 0x4000, scoped, tag = 'input window, operand 0']
    #allocation3 [shape = 'u8[16384]{0}', space=vmem, size = 0x4000, scoped, tag = 'input window, operand 1']
    loop: start=0, step=1, limit=10
    $region2: #{channel_attention_tac.4} parent=1 // loop_pre_header
      _
    $region3: #{channel_attention_tac.4} parent=1 // loop_header
      %s9 = sphi 0, %s13
      %p10 = scmp.ge.s32.totalorder %s9, 10
      %s16 = sphi 0, %s28
      %s17 = sphi 0, %s24
      %s18 = sphi 0, %s16
      %s19 = sphi 0, %s17
      %s20 = sphi 0, %s18
      %s21 = sphi 0, %s19
      %s33 = sphi 0, %s35
      %s36 = sphi 0, %s33
      %s37 = sphi 0, %s36
      %s53 = sphi 0, %s37
      %s61 = sphi 0, %s63
      %s64 = sphi 0, %s61
      %s65 = sphi 0, %s64
      %s81 = sphi 0, %s65
      %s89 = sphi 0, %s91
      %s92 = sphi 0, %s89
      %s93 = sphi 0, %s92
      %s109 = sphi 0, %s93
      %s117 = sphi 0, %s119
      %s120 = sphi 0, %s117
      %s121 = sphi 0, %s120
      %s137 = sphi 0, %s121
    $region4: #{channel_attention_tac.4} parent=1 // loop_header_branch
      %12 = sbr.rel (%p10) target = $region8
    $region5: #{channel_attention_tac.4} parent=1 // loop_body
      %s14 = ssub.s32 %s9, 1
      %s15 = ssub.s32 %s9, 2
      %s22 = sadd.s32 1, %s17
      %p23 = scmp.ge.s32.totalorder %s22, 2
      %s24 = scalar_select %p23, 0, %s22
      %s25 = sadd.s32 1, %s16
      %s26 = scalar_select %p23, %s25, %s16
      %p27 = scmp.ge.s32.totalorder %s26, 4
      %s28 = scalar_select %p27, 0, %s26
      %s29 = ssub.s32 %s16, %s28
      %s30 = ssub.s32 %s17, %s24
      %s31 = sor.u32 %s29, %s30
      %p32 = scmp.eq.s32.totalorder %s31, 0
      %s34 = sadd.s32 %s33, 1
      %s35 = scalar_select %p32, %s33, %s34
      %p38 = pneg %p32
      %p39 = scmp.eq.s32.totalorder %s9, 7
      %p40 = por %p38, %p39
      %p41 = scmp.ne.s32.totalorder %s33, %s36
      %p42 = scmp.eq.s32.totalorder %s9, 0
      %p43 = por %p41, %p42
      %p44 = scmp.ne.s32.totalorder %s33, %s36
      %p45 = scmp.eq.s32.totalorder %s14, 7
      %p46 = por %p44, %p45
      %p47 = scmp.ne.s32.totalorder %s36, %s37
      %p48 = scmp.eq.s32.totalorder %s14, 0
      %p49 = por %p47, %p48
      %p50 = scmp.ne.s32.totalorder %s36, %s37
      %p51 = scmp.eq.s32.totalorder %s15, 7
      %p52 = por %p50, %p51
      %p54 = scmp.ne.s32.totalorder %s37, %s53
      %p55 = scmp.eq.s32.totalorder %s15, 0
      %p56 = por %p54, %p55
      %s57 = ssub.s32 %s16, %s28
      %s58 = ssub.s32 %s17, %s24
      %s59 = sor.u32 %s57, %s58
      %p60 = scmp.eq.s32.totalorder %s59, 0
      %s62 = sadd.s32 %s61, 1
      %s63 = scalar_select %p60, %s61, %s62
      %p66 = pneg %p60
      %p67 = scmp.eq.s32.totalorder %s9, 7
      %p68 = por %p66, %p67
      %p69 = scmp.ne.s32.totalorder %s61, %s64
      %p70 = scmp.eq.s32.totalorder %s9, 0
      %p71 = por %p69, %p70
      %p72 = scmp.ne.s32.totalorder %s61, %s64
      %p73 = scmp.eq.s32.totalorder %s14, 7
      %p74 = por %p72, %p73
      %p75 = scmp.ne.s32.totalorder %s64, %s65
      %p76 = scmp.eq.s32.totalorder %s14, 0
      %p77 = por %p75, %p76
      %p78 = scmp.ne.s32.totalorder %s64, %s65
      %p79 = scmp.eq.s32.totalorder %s15, 7
      %p80 = por %p78, %p79
      %p82 = scmp.ne.s32.totalorder %s65, %s81
      %p83 = scmp.eq.s32.totalorder %s15, 0
      %p84 = por %p82, %p83
      %s85 = ssub.s32 %s16, %s28
      %s86 = ssub.s32 %s17, %s24
      %s87 = sor.u32 %s85, %s86
      %p88 = scmp.eq.s32.totalorder %s87, 0
      %s90 = sadd.s32 %s89, 1
      %s91 = scalar_select %p88, %s89, %s90
      %p94 = pneg %p88
      %p95 = scmp.eq.s32.totalorder %s9, 7
      %p96 = por %p94, %p95
      %p97 = scmp.ne.s32.totalorder %s89, %s92
      %p98 = scmp.eq.s32.totalorder %s9, 0
      %p99 = por %p97, %p98
      %p100 = scmp.ne.s32.totalorder %s89, %s92
      %p101 = scmp.eq.s32.totalorder %s14, 7
      %p102 = por %p100, %p101
      %p103 = scmp.ne.s32.totalorder %s92, %s93
      %p104 = scmp.eq.s32.totalorder %s14, 0
      %p105 = por %p103, %p104
      %p106 = scmp.ne.s32.totalorder %s92, %s93
      %p107 = scmp.eq.s32.totalorder %s15, 7
      %p108 = por %p106, %p107
      %p110 = scmp.ne.s32.totalorder %s93, %s109
      %p111 = scmp.eq.s32.totalorder %s15, 0
      %p112 = por %p110, %p111
      %s113 = ssub.s32 %s16, %s28
      %s114 = ssub.s32 %s17, %s24
      %s115 = sor.u32 %s113, %s114
      %p116 = scmp.eq.s32.totalorder %s115, 0
      %s118 = sadd.s32 %s117, 1
      %s119 = scalar_select %p116, %s117, %s118
      %p122 = pneg %p116
      %p123 = scmp.eq.s32.totalorder %s9, 7
      %p124 = por %p122, %p123
      %p125 = scmp.ne.s32.totalorder %s117, %s120
      %p126 = scmp.eq.s32.totalorder %s9, 0
      %p127 = por %p125, %p126
      %p128 = scmp.ne.s32.totalorder %s117, %s120
      %p129 = scmp.eq.s32.totalorder %s14, 7
      %p130 = por %p128, %p129
      %p131 = scmp.ne.s32.totalorder %s120, %s121
      %p132 = scmp.eq.s32.totalorder %s14, 0
      %p133 = por %p131, %p132
      %p134 = scmp.ne.s32.totalorder %s120, %s121
      %p135 = scmp.eq.s32.totalorder %s15, 7
      %p136 = por %p134, %p135
      %p138 = scmp.ne.s32.totalorder %s121, %s137
      %p139 = scmp.eq.s32.totalorder %s15, 0
      %p140 = por %p138, %p139
      %p141 = scmp.le.s32.totalorder 1, %s9
      %p142 = scmp.lt.s32.totalorder %s9, 9
      %p143 = pnand %p141, %p142
      %p144 = pneg %p143
      // Predicated region
      $region9: #{channel_attention_tac.4} parent=5 // pred_check
        _
      $region10: #{channel_attention_tac.4} parent=5 // pred_check_branch
        %146 = sbr.rel (%p143) target = $region12
      $region11: #{channel_attention_tac.4} parent=5 // pred_region
        %s147 = ssub.s32 %s9, 1
      $region12: #{channel_attention_tac.4} parent=5 // pred_fallthru
        _
      %p148 = scmp.lt.s32.totalorder %s9, 8
      // Predicated region
      $region13: #{channel_attention_tac.4} parent=5 // pred_check
        %p149 = pneg %p148
      $region14: #{channel_attention_tac.4} parent=5 // pred_check_branch
        %151 = sbr.rel (%p149) target = $region16
      $region15: #{channel_attention_tac.4} parent=5 // pred_region
        // Predicated region
        $region17: #{channel_attention_tac.4} parent=15 // pred_check
          %p152 = pneg %p43
        $region18: #{channel_attention_tac.4} parent=15 // pred_check_branch
          %154 = sbr.rel (%p152) target = $region20
        $region19: #{channel_attention_tac.4} parent=15 // pred_region
          %s155 = sand.u32 %s33, 1
          %s156 = sand.u32 %s33, 1
          %s157 = smul.addr %s156, 16
          %s158 = scalar_lea.vmem [#allocation2], %s157
          %s159 = smul.u32 2, %s17
          %s160 = smul.addr %s16, 8
          %s161 = sadd.s32 %s159, %s160
          %s162 = smul.addr %s161, 4
          %s163 = scalar_lea.vmem %s0, %s162
          // Predicated region
          $region21: #{channel_attention_tac.4} parent=19 // pred_check
            _
          $region22: #{channel_attention_tac.4} parent=19 // pred_check_branch
            %165 = sbr.rel (0) target = $region24
          $region23: #{channel_attention_tac.4} parent=19 // pred_region
            // Predicated region
            $region25: #{channel_attention_tac.4} parent=23 // pred_check
              _
            $region26: #{channel_attention_tac.4} parent=23 // pred_check_branch
              %167 = sbr.rel (0) target = $region28
            $region27: #{channel_attention_tac.4} parent=23 // pred_region
              // Predicated region
              $region40: #{channel_attention_tac.4} parent=27 // pred_check
                _
              $region41: #{channel_attention_tac.4} parent=27 // pred_check_branch
                %184 = sbr.rel (0) target = $region43
              $region42: #{channel_attention_tac.4} parent=27 // pred_region
                loop: start=0, step=1, limit=1
                $region44: #{channel_attention_tac.4} parent=42 // loop_pre_header
                  _
                $region45: #{channel_attention_tac.4} parent=42 // loop_header
                  %s186 = sphi 0, %s190
                  %p187 = scmp.ge.s32.totalorder %s186, 1
                  %s191 = sphi %s163, %s163
                  %s192 = sphi %s158, %s158
                $region46: #{channel_attention_tac.4} parent=42 // loop_header_branch
                  %189 = sbr.rel (%p187) target = $region50
                $region47: #{channel_attention_tac.4} parent=42 // loop_body
                  %v193 = vld [vmem:[%s191] sm:$0xff]
                  %194 = vst [vmem:[%s192] sm:$0xff] %v193
                  %v195 = vld [vmem:[%s191 + $0x10] sm:$0xff]
                  %196 = vst [vmem:[%s192 + $0x8] sm:$0xff] %v195
                $region48: #{channel_attention_tac.4} parent=42 // loop_footer
                  %s190 = sadd.s32 1, %s186
                $region49: #{channel_attention_tac.4} parent=42 // loop_footer_branch
                  %185 = sbr.rel target = $region45
                $region50: #{channel_attention_tac.4} parent=42 // loop_exit
                  _
              $region43: #{channel_attention_tac.4} parent=27 // pred_fallthru
                _
              // Predicated region
              $region51: #{channel_attention_tac.4} parent=27 // pred_check
                _
              $region52: #{channel_attention_tac.4} parent=27 // pred_check_branch
                %198 = sbr.rel target = $region54
              $region53: #{channel_attention_tac.4} parent=27 // pred_region
                _
              $region54: #{channel_attention_tac.4} parent=27 // pred_fallthru
                _
            $region28: #{channel_attention_tac.4} parent=23 // pred_fallthru
              _
            // Predicated region
            $region29: #{channel_attention_tac.4} parent=23 // pred_check
              _
            $region30: #{channel_attention_tac.4} parent=23 // pred_check_branch
              %169 = sbr.rel target = $region32
            $region31: #{channel_attention_tac.4} parent=23 // pred_region
              loop: start=0, step=1, limit=1
              $region33: #{channel_attention_tac.4} parent=31 // loop_pre_header
                _
              $region34: #{channel_attention_tac.4} parent=31 // loop_header
                %s172 = sphi 0, %s176
                %p173 = scmp.ge.s32.totalorder %s172, 1
                %s177 = sphi %s163, %s163
                %s178 = sphi %s158, %s158
              $region35: #{channel_attention_tac.4} parent=31 // loop_header_branch
                %175 = sbr.rel (%p173) target = $region39
              $region36: #{channel_attention_tac.4} parent=31 // loop_body
                %v179 = vld [vmem:[%s177] sm:$0xff]
                %180 = vst [vmem:[%s178] sm:$0xff] %v179
                %v181 = vld [vmem:[%s177 + $0x10] sm:$0xff]
                %182 = vst [vmem:[%s178 + $0x8] sm:$0xff] %v181
              $region37: #{channel_attention_tac.4} parent=31 // loop_footer
                %s176 = sadd.s32 1, %s172
              $region38: #{channel_attention_tac.4} parent=31 // loop_footer_branch
                %171 = sbr.rel target = $region34
              $region39: #{channel_attention_tac.4} parent=31 // loop_exit
                _
            $region32: #{channel_attention_tac.4} parent=23 // pred_fallthru
              _
          $region24: #{channel_attention_tac.4} parent=19 // pred_fallthru
            _
          %199 = vnop
        $region20: #{channel_attention_tac.4} parent=15 // pred_fallthru
          _
        // Predicated region
        $region55: #{channel_attention_tac.4} parent=15 // pred_check
          %p200 = pneg %p71
        $region56: #{channel_attention_tac.4} parent=15 // pred_check_branch
          %202 = sbr.rel (%p200) target = $region58
        $region57: #{channel_attention_tac.4} parent=15 // pred_region
          %s203 = sand.u32 %s61, 1
          %s204 = sand.u32 %s61, 1
          %s205 = smul.addr %s204, 16
          %s206 = scalar_lea.vmem [#allocation3], %s205
          %s207 = smul.u32 2, %s17
          %s208 = smul.addr %s16, 8
          %s209 = sadd.s32 %s207, %s208
          %s210 = smul.addr %s209, 4
          %s211 = scalar_lea.vmem %s1, %s210
          // Predicated region
          $region59: #{channel_attention_tac.4} parent=57 // pred_check
            _
          $region60: #{channel_attention_tac.4} parent=57 // pred_check_branch
            %213 = sbr.rel (0) target = $region62
          $region61: #{channel_attention_tac.4} parent=57 // pred_region
            // Predicated region
            $region63: #{channel_attention_tac.4} parent=61 // pred_check
              _
            $region64: #{channel_attention_tac.4} parent=61 // pred_check_branch
              %215 = sbr.rel (0) target = $region66
            $region65: #{channel_attention_tac.4} parent=61 // pred_region
              // Predicated region
              $region78: #{channel_attention_tac.4} parent=65 // pred_check
                _
              $region79: #{channel_attention_tac.4} parent=65 // pred_check_branch
                %232 = sbr.rel (0) target = $region81
              $region80: #{channel_attention_tac.4} parent=65 // pred_region
                loop: start=0, step=1, limit=1
                $region82: #{channel_attention_tac.4} parent=80 // loop_pre_header
                  _
                $region83: #{channel_attention_tac.4} parent=80 // loop_header
                  %s234 = sphi 0, %s238
                  %p235 = scmp.ge.s32.totalorder %s234, 1
                  %s239 = sphi %s211, %s211
                  %s240 = sphi %s206, %s206
                $region84: #{channel_attention_tac.4} parent=80 // loop_header_branch
                  %237 = sbr.rel (%p235) target = $region88
                $region85: #{channel_attention_tac.4} parent=80 // loop_body
                  %v241 = vld [vmem:[%s239] sm:$0xff]
                  %242 = vst [vmem:[%s240] sm:$0xff] %v241
                  %v243 = vld [vmem:[%s239 + $0x10] sm:$0xff]
                  %244 = vst [vmem:[%s240 + $0x8] sm:$0xff] %v243
                $region86: #{channel_attention_tac.4} parent=80 // loop_footer
                  %s238 = sadd.s32 1, %s234
                $region87: #{channel_attention_tac.4} parent=80 // loop_footer_branch
                  %233 = sbr.rel target = $region83
                $region88: #{channel_attention_tac.4} parent=80 // loop_exit
                  _
              $region81: #{channel_attention_tac.4} parent=65 // pred_fallthru
                _
              // Predicated region
              $region89: #{channel_attention_tac.4} parent=65 // pred_check
                _
              $region90: #{channel_attention_tac.4} parent=65 // pred_check_branch
                %246 = sbr.rel target = $region92
              $region91: #{channel_attention_tac.4} parent=65 // pred_region
                _
              $region92: #{channel_attention_tac.4} parent=65 // pred_fallthru
                _
            $region66: #{channel_attention_tac.4} parent=61 // pred_fallthru
              _
            // Predicated region
            $region67: #{channel_attention_tac.4} parent=61 // pred_check
              _
            $region68: #{channel_attention_tac.4} parent=61 // pred_check_branch
              %217 = sbr.rel target = $region70
            $region69: #{channel_attention_tac.4} parent=61 // pred_region
              loop: start=0, step=1, limit=1
              $region71: #{channel_attention_tac.4} parent=69 // loop_pre_header
                _
              $region72: #{channel_attention_tac.4} parent=69 // loop_header
                %s220 = sphi 0, %s224
                %p221 = scmp.ge.s32.totalorder %s220, 1
                %s225 = sphi %s211, %s211
                %s226 = sphi %s206, %s206
              $region73: #{channel_attention_tac.4} parent=69 // loop_header_branch
                %223 = sbr.rel (%p221) target = $region77
              $region74: #{channel_attention_tac.4} parent=69 // loop_body
                %v227 = vld [vmem:[%s225] sm:$0xff]
                %228 = vst [vmem:[%s226] sm:$0xff] %v227
                %v229 = vld [vmem:[%s225 + $0x10] sm:$0xff]
                %230 = vst [vmem:[%s226 + $0x8] sm:$0xff] %v229
              $region75: #{channel_attention_tac.4} parent=69 // loop_footer
                %s224 = sadd.s32 1, %s220
              $region76: #{channel_attention_tac.4} parent=69 // loop_footer_branch
                %219 = sbr.rel target = $region72
              $region77: #{channel_attention_tac.4} parent=69 // loop_exit
                _
            $region70: #{channel_attention_tac.4} parent=61 // pred_fallthru
              _
          $region62: #{channel_attention_tac.4} parent=57 // pred_fallthru
            _
          %247 = vnop
        $region58: #{channel_attention_tac.4} parent=15 // pred_fallthru
          _
        // Predicated region
        $region93: #{channel_attention_tac.4} parent=15 // pred_check
          %p248 = pneg %p99
        $region94: #{channel_attention_tac.4} parent=15 // pred_check_branch
          %250 = sbr.rel (%p248) target = $region96
        $region95: #{channel_attention_tac.4} parent=15 // pred_region
          %s251 = smul.u32 2, %s17
          %p252 = scmp.lt.s32.totalorder %s16, 3
          %s253 = scalar_select %p252, %s16, 3
          %p254 = scmp.lt.s32.totalorder %s251, 3
          %s255 = scalar_select %p254, %s251, 3
          %s256 = smul.addr %s253, 4
          %s257 = sadd.s32 %s255, %s256
          %s258 = smul.addr %s257, 4
          %s259 = scalar_lea.vmem %s2, %s258
          %s260 = smul.u32 2, %s17
        $region96: #{channel_attention_tac.4} parent=15 // pred_fallthru
          _
      $region16: #{channel_attention_tac.4} parent=5 // pred_fallthru
        _
      %p261 = scmp.le.s32.totalorder 1, %s9
      %p262 = scmp.lt.s32.totalorder %s9, 9
      %p263 = pnand %p261, %p262
      %p264 = pneg %p263
      // Predicated region
      $region97: #{channel_attention_tac.4} parent=5 // pred_check
        _
      $region98: #{channel_attention_tac.4} parent=5 // pred_check_branch
        %266 = sbr.rel (%p263) target = $region100
      $region99: #{channel_attention_tac.4} parent=5 // pred_region
        %s267 = ssub.s32 %s9, 1
        %s268 = sand.u32 %s36, 1
        %s269 = sand.u32 %s36, 1
        %s270 = smul.addr %s269, 16
        %s271 = scalar_lea.vmem [#allocation2], %s270
        // Predicated region
        $region101: #{channel_attention_tac.4} parent=99 // pred_check
          %p272 = pneg %p49
        $region102: #{channel_attention_tac.4} parent=99 // pred_check_branch
          %274 = sbr.rel (%p272) target = $region104
        $region103: #{channel_attention_tac.4} parent=99 // pred_region
          _
        $region104: #{channel_attention_tac.4} parent=99 // pred_fallthru
          _
        %s275 = sand.u32 %s64, 1
        %s276 = sand.u32 %s64, 1
        %s277 = smul.addr %s276, 16
        %s278 = scalar_lea.vmem [#allocation3], %s277
        // Predicated region
        $region105: #{channel_attention_tac.4} parent=99 // pred_check
          %p279 = pneg %p77
        $region106: #{channel_attention_tac.4} parent=99 // pred_check_branch
          %281 = sbr.rel (%p279) target = $region108
        $region107: #{channel_attention_tac.4} parent=99 // pred_region
          _
        $region108: #{channel_attention_tac.4} parent=99 // pred_fallthru
          _
        %s282 = sand.u32 %s36, 1
        %s283 = sand.u32 %s36, 1
        %s284 = smul.addr %s283, 16
        %s285 = scalar_lea.vmem [#allocation2], %s284
        %p286 = pneg %p49
        %p287 = pneg %p46
        %s288 = sand.u32 %s64, 1
        %s289 = sand.u32 %s64, 1
        %s290 = smul.addr %s289, 16
        %s291 = scalar_lea.vmem [#allocation3], %s290
        %p292 = pneg %p77
        %p293 = pneg %p74
        %s294 = smul.u32 2, %s19
        %p295 = scmp.lt.s32.totalorder %s18, 3
        %s296 = scalar_select %p295, %s18, 3
        %p297 = scmp.lt.s32.totalorder %s294, 3
        %s298 = scalar_select %p297, %s294, 3
        %s299 = smul.addr %s296, 4
        %s300 = sadd.s32 %s298, %s299
        %s301 = smul.addr %s300, 4
        %s302 = scalar_lea.vmem %s2, %s301
        %p303 = pneg %p105
        %p304 = pneg %p102
        %p305 = pneg %p133
        %p306 = pneg %p130
        %s307 = smul.u32 2, %s19
        %p308 = scmp.lt.s32.totalorder %s18, 3
        %s309 = scalar_select %p308, %s18, 3
        %p310 = scmp.lt.s32.totalorder %s307, 3
        %s311 = scalar_select %p310, %s307, 3
        %s312 = smul.addr %s309, 4
        %s313 = sadd.s32 %s311, %s312
        %s314 = smul.addr %s313, 4
        %s315 = scalar_lea.vmem %s3, %s314
        %s316 = smul.u32 2, %s19
        %s317 = smul.u32 2, %s19
        %s318 = smul.u32 2, %s19
        %p319 = scmp.lt.s32.totalorder %s18, 3
        %s320 = scalar_select %p319, %s18, 3
        %p321 = scmp.lt.s32.totalorder %s318, 3
        %s322 = scalar_select %p321, %s318, 3
        %s323 = smul.addr %s320, 4
        %s324 = sadd.s32 %s322, %s323
        %s325 = smul.addr %s324, 4
        %s326 = scalar_lea.vmem %s2, %s325
        %s327 = smul.u32 2, %s19
        %s328 = smul.u32 2, %s19
        %p329 = scmp.lt.s32.totalorder %s18, 3
        %s330 = scalar_select %p329, %s18, 3
        %p331 = scmp.lt.s32.totalorder %s328, 3
        %s332 = scalar_select %p331, %s328, 3
        %s333 = smul.addr %s330, 4
        %s334 = sadd.s32 %s332, %s333
        %s335 = smul.addr %s334, 4
        %s336 = scalar_lea.vmem %s3, %s335
        %s337 = smul.u32 2, %s19
        %v338 = vld [vmem:[%s271] sm:$0xff]
        %v339 = vld [vmem:[%s271 + $0x8] sm:$0xff]
        %v340 = vunpack.c.l.bf16 %v338
        %v341 = vunpack.c.h.bf16 %v338
        %v342 = vunpack.c.l.bf16 %v339
        %v343 = vunpack.c.h.bf16 %v339
        %v344 = vld [vmem:[%s278] sm:$0xff]
        %v345 = vld [vmem:[%s278 + $0x8] sm:$0xff]
        %v346 = vunpack.c.l.bf16 %v344
        %v347 = vunpack.c.h.bf16 %v344
        %v348 = vunpack.c.l.bf16 %v345
        %v349 = vunpack.c.h.bf16 %v345
        %v350 = vld [vmem:[%s326] sm:$0x77]
        %v351 = vunpack.c.l.bf16 %v350
        %v352 = vunpack.c.h.bf16 %v350
        %v353 = vmul.f32 %v340, %v346
        %v354 = vmul.f32 %v342, %v348
        %vm355 = vcmask 523264
        %v356 = vsel %vm355, %v353, 0.0
        %v357 = vsel %vm355, %v354, 0.0
        %v358 = vadd.f32 %v356, %v357
        %359 = vadd.xlane.f32.xlu0 %v358
        %v360 = vpop.xlane.xlu0 %359
        %v361 = vrot.slane %v360, 4
        %v362 = vadd.f32 %v360, %v361
        %v363 = vrot.slane %v362, 2
        %v364 = vadd.f32 %v362, %v363
        %v365 = vrot.slane %v364, 1
        %v366 = vadd.f32 %v364, %v365
        %s367 = vtos %v366
        %v368 = vstv %s367
        %v369 = vmul.f32 %v368, 0.03125
        %372 = vrot.lane.b32.xlu0 %v346, 64
        %v373 = vpop.permute.xlu0 %372
        %374 = vrot.lane.b32.xlu0 %v348, 64
        %v375 = vpop.permute.xlu0 %374
        %v378 = vmul.f32 %v340, %v373
        %v379 = vmul.f32 %v342, %v375
        %v380 = vsel %vm355, %v378, 0.0
        %v381 = vsel %vm355, %v379, 0.0
        %v382 = vadd.f32 %v380, %v381
        %383 = vadd.xlane.f32.xlu0 %v382
        %v384 = vpop.xlane.xlu0 %383
        %v385 = vrot.slane %v384, 4
        %v386 = vadd.f32 %v384, %v385
        %v387 = vrot.slane %v386, 2
        %v388 = vadd.f32 %v386, %v387
        %v389 = vrot.slane %v388, 1
        %v390 = vadd.f32 %v388, %v389
        %s391 = vtos %v390
        %v392 = vstv %s391
        %v393 = vmul.f32 %v392, 0.03125
        %v394 = vmul.f32 %v340, %v347
        %v395 = vmul.f32 %v342, %v349
        %v396 = vsel %vm355, %v394, 0.0
        %v397 = vsel %vm355, %v395, 0.0
        %v398 = vadd.f32 %v396, %v397
        %399 = vadd.xlane.f32.xlu0 %v398
        %v400 = vpop.xlane.xlu0 %399
        %v401 = vrot.slane %v400, 4
        %v402 = vadd.f32 %v400, %v401
        %v403 = vrot.slane %v402, 2
        %v404 = vadd.f32 %v402, %v403
        %v405 = vrot.slane %v404, 1
        %v406 = vadd.f32 %v404, %v405
        %s407 = vtos %v406
        %v408 = vstv %s407
        %v409 = vmul.f32 %v408, 0.03125
        %412 = vrot.lane.b32.xlu0 %v347, 64
        %v413 = vpop.permute.xlu0 %412
        %414 = vrot.lane.b32.xlu0 %v349, 64
        %v415 = vpop.permute.xlu0 %414
        %v418 = vmul.f32 %v340, %v413
        %v419 = vmul.f32 %v342, %v415
        %v420 = vsel %vm355, %v418, 0.0
        %v421 = vsel %vm355, %v419, 0.0
        %v422 = vadd.f32 %v420, %v421
        %423 = vadd.xlane.f32.xlu0 %v422
        %v424 = vpop.xlane.xlu0 %423
        %v425 = vrot.slane %v424, 4
        %v426 = vadd.f32 %v424, %v425
        %v427 = vrot.slane %v426, 2
        %v428 = vadd.f32 %v426, %v427
        %v429 = vrot.slane %v428, 1
        %v430 = vadd.f32 %v428, %v429
        %s431 = vtos %v430
        %v432 = vstv %s431
        %v433 = vmul.f32 %v432, 0.03125
        %v434 = vmax.f32 %v369, %v393
        %v435 = vmax.f32 %v434, %v409
        %v436 = vmax.f32 %v435, %v433
        %v437 = vsub.f32 %v369, %v436
        %v438 = vmul.f32 %v437, 1.442695
        %v439 = vpow.pop %v438
        %v440 = vsub.f32 %v393, %v436
        %v441 = vmul.f32 %v440, 1.442695
        %v442 = vpow.pop %v441
        %v443 = vsub.f32 %v409, %v436
        %v444 = vmul.f32 %v443, 1.442695
        %v445 = vpow.pop %v444
        %v446 = vsub.f32 %v433, %v436
        %v447 = vmul.f32 %v446, 1.442695
        %v448 = vpow.pop %v447
        %v449 = vadd.f32 %v439, %v442
        %v450 = vadd.f32 %v449, %v445
        %v451 = vadd.f32 %v450, %v448
        %v452 = vrcp.pop %v451
        %v453 = vmul.f32 %v439, %v452
        %v454 = vmul.f32 %v453, %v351
        %v455 = vmul.f32 %v442, %v452
        %v456 = vmul.f32 %v455, %v351
        %458 = vrot.lane.b32.xlu0 %v456, 64
        %v459 = vpop.permute.xlu0 %458
        %v461 = vadd.f32 %v454, %v459
        %v462 = vmul.f32 %v445, %v452
        %v463 = vmul.f32 %v462, %v352
        %v464 = vadd.f32 %v461, %v463
        %v465 = vmul.f32 %v448, %v452
        %v466 = vmul.f32 %v465, %v352
        %468 = vrot.lane.b32.xlu0 %v466, 64
        %v469 = vpop.permute.xlu0 %468
        %v471 = vadd.f32 %v464, %v469
        %474 = vrot.lane.b32.xlu0 %v378, 64
        %v475 = vpop.permute.xlu0 %474
        %476 = vrot.lane.b32.xlu0 %v379, 64
        %v477 = vpop.permute.xlu0 %476
        %v480 = vsel %vm355, %v475, 0.0
        %v481 = vsel %vm355, %v477, 0.0
        %v482 = vadd.f32 %v480, %v481
        %483 = vadd.xlane.f32.xlu0 %v482
        %v484 = vpop.xlane.xlu0 %483
        %v485 = vrot.slane %v484, 4
        %v486 = vadd.f32 %v484, %v485
        %v487 = vrot.slane %v486, 2
        %v488 = vadd.f32 %v486, %v487
        %v489 = vrot.slane %v488, 1
        %v490 = vadd.f32 %v488, %v489
        %s491 = vtos %v490
        %v492 = vstv %s491
        %v493 = vmul.f32 %v492, 0.03125
        %496 = vrot.lane.b32.xlu0 %v353, 64
        %v497 = vpop.permute.xlu0 %496
        %498 = vrot.lane.b32.xlu0 %v354, 64
        %v499 = vpop.permute.xlu0 %498
        %v502 = vsel %vm355, %v497, 0.0
        %v503 = vsel %vm355, %v499, 0.0
        %v504 = vadd.f32 %v502, %v503
        %505 = vadd.xlane.f32.xlu0 %v504
        %v506 = vpop.xlane.xlu0 %505
        %v507 = vrot.slane %v506, 4
        %v508 = vadd.f32 %v506, %v507
        %v509 = vrot.slane %v508, 2
        %v510 = vadd.f32 %v508, %v509
        %v511 = vrot.slane %v510, 1
        %v512 = vadd.f32 %v510, %v511
        %s513 = vtos %v512
        %v514 = vstv %s513
        %v515 = vmul.f32 %v514, 0.03125
        %518 = vrot.lane.b32.xlu0 %v418, 64
        %v519 = vpop.permute.xlu0 %518
        %520 = vrot.lane.b32.xlu0 %v419, 64
        %v521 = vpop.permute.xlu0 %520
        %v524 = vsel %vm355, %v519, 0.0
        %v525 = vsel %vm355, %v521, 0.0
        %v526 = vadd.f32 %v524, %v525
        %527 = vadd.xlane.f32.xlu0 %v526
        %v528 = vpop.xlane.xlu0 %527
        %v529 = vrot.slane %v528, 4
        %v530 = vadd.f32 %v528, %v529
        %v531 = vrot.slane %v530, 2
        %v532 = vadd.f32 %v530, %v531
        %v533 = vrot.slane %v532, 1
        %v534 = vadd.f32 %v532, %v533
        %s535 = vtos %v534
        %v536 = vstv %s535
        %v537 = vmul.f32 %v536, 0.03125
        %540 = vrot.lane.b32.xlu0 %v394, 64
        %v541 = vpop.permute.xlu0 %540
        %542 = vrot.lane.b32.xlu0 %v395, 64
        %v543 = vpop.permute.xlu0 %542
        %v546 = vsel %vm355, %v541, 0.0
        %v547 = vsel %vm355, %v543, 0.0
        %v548 = vadd.f32 %v546, %v547
        %549 = vadd.xlane.f32.xlu0 %v548
        %v550 = vpop.xlane.xlu0 %549
        %v551 = vrot.slane %v550, 4
        %v552 = vadd.f32 %v550, %v551
        %v553 = vrot.slane %v552, 2
        %v554 = vadd.f32 %v552, %v553
        %v555 = vrot.slane %v554, 1
        %v556 = vadd.f32 %v554, %v555
        %s557 = vtos %v556
        %v558 = vstv %s557
        %v559 = vmul.f32 %v558, 0.03125
        %v560 = vmax.f32 %v493, %v515
        %v561 = vmax.f32 %v560, %v537
        %v562 = vmax.f32 %v561, %v559
        %v563 = vsub.f32 %v493, %v562
        %v564 = vmul.f32 %v563, 1.442695
        %v565 = vpow.pop %v564
        %v566 = vsub.f32 %v515, %v562
        %v567 = vmul.f32 %v566, 1.442695
        %v568 = vpow.pop %v567
        %v569 = vsub.f32 %v537, %v562
        %v570 = vmul.f32 %v569, 1.442695
        %v571 = vpow.pop %v570
        %v572 = vsub.f32 %v559, %v562
        %v573 = vmul.f32 %v572, 1.442695
        %v574 = vpow.pop %v573
        %v575 = vadd.f32 %v565, %v568
        %v576 = vadd.f32 %v575, %v571
        %v577 = vadd.f32 %v576, %v574
        %v578 = vrcp.pop %v577
        %v579 = vmul.f32 %v565, %v578
        %v580 = vmul.f32 %v579, %v351
        %v581 = vmul.f32 %v568, %v578
        %v582 = vmul.f32 %v581, %v351
        %584 = vrot.lane.b32.xlu0 %v582, 64
        %v585 = vpop.permute.xlu0 %584
        %v587 = vadd.f32 %v580, %v585
        %v588 = vmul.f32 %v571, %v578
        %v589 = vmul.f32 %v588, %v352
        %v590 = vadd.f32 %v587, %v589
        %v591 = vmul.f32 %v574, %v578
        %v592 = vmul.f32 %v591, %v352
        %594 = vrot.lane.b32.xlu0 %v592, 64
        %v595 = vpop.permute.xlu0 %594
        %v597 = vadd.f32 %v590, %v595
        %v598 = vmul.f32 %v341, %v346
        %v599 = vmul.f32 %v343, %v348
        %v600 = vsel %vm355, %v598, 0.0
        %v601 = vsel %vm355, %v599, 0.0
        %v602 = vadd.f32 %v600, %v601
        %603 = vadd.xlane.f32.xlu0 %v602
        %v604 = vpop.xlane.xlu0 %603
        %v605 = vrot.slane %v604, 4
        %v606 = vadd.f32 %v604, %v605
        %v607 = vrot.slane %v606, 2
        %v608 = vadd.f32 %v606, %v607
        %v609 = vrot.slane %v608, 1
        %v610 = vadd.f32 %v608, %v609
        %s611 = vtos %v610
        %v612 = vstv %s611
        %v613 = vmul.f32 %v612, 0.03125
        %v614 = vmul.f32 %v341, %v373
        %v615 = vmul.f32 %v343, %v375
        %v616 = vsel %vm355, %v614, 0.0
        %v617 = vsel %vm355, %v615, 0.0
        %v618 = vadd.f32 %v616, %v617
        %619 = vadd.xlane.f32.xlu0 %v618
        %v620 = vpop.xlane.xlu0 %619
        %v621 = vrot.slane %v620, 4
        %v622 = vadd.f32 %v620, %v621
        %v623 = vrot.slane %v622, 2
        %v624 = vadd.f32 %v622, %v623
        %v625 = vrot.slane %v624, 1
        %v626 = vadd.f32 %v624, %v625
        %s627 = vtos %v626
        %v628 = vstv %s627
        %v629 = vmul.f32 %v628, 0.03125
        %v630 = vmul.f32 %v341, %v347
        %v631 = vmul.f32 %v343, %v349
        %v632 = vsel %vm355, %v630, 0.0
        %v633 = vsel %vm355, %v631, 0.0
        %v634 = vadd.f32 %v632, %v633
        %635 = vadd.xlane.f32.xlu0 %v634
        %v636 = vpop.xlane.xlu0 %635
        %v637 = vrot.slane %v636, 4
        %v638 = vadd.f32 %v636, %v637
        %v639 = vrot.slane %v638, 2
        %v640 = vadd.f32 %v638, %v639
        %v641 = vrot.slane %v640, 1
        %v642 = vadd.f32 %v640, %v641
        %s643 = vtos %v642
        %v644 = vstv %s643
        %v645 = vmul.f32 %v644, 0.03125
        %v646 = vmul.f32 %v341, %v413
        %v647 = vmul.f32 %v343, %v415
        %v648 = vsel %vm355, %v646, 0.0
        %v649 = vsel %vm355, %v647, 0.0
        %v650 = vadd.f32 %v648, %v649
        %651 = vadd.xlane.f32.xlu0 %v650
        %v652 = vpop.xlane.xlu0 %651
        %v653 = vrot.slane %v652, 4
        %v654 = vadd.f32 %v652, %v653
        %v655 = vrot.slane %v654, 2
        %v656 = vadd.f32 %v654, %v655
        %v657 = vrot.slane %v656, 1
        %v658 = vadd.f32 %v656, %v657
        %s659 = vtos %v658
        %v660 = vstv %s659
        %v661 = vmul.f32 %v660, 0.03125
        %v662 = vmax.f32 %v613, %v629
        %v663 = vmax.f32 %v662, %v645
        %v664 = vmax.f32 %v663, %v661
        %v665 = vsub.f32 %v613, %v664
        %v666 = vmul.f32 %v665, 1.442695
        %v667 = vpow.pop %v666
        %v668 = vsub.f32 %v629, %v664
        %v669 = vmul.f32 %v668, 1.442695
        %v670 = vpow.pop %v669
        %v671 = vsub.f32 %v645, %v664
        %v672 = vmul.f32 %v671, 1.442695
        %v673 = vpow.pop %v672
        %v674 = vsub.f32 %v661, %v664
        %v675 = vmul.f32 %v674, 1.442695
        %v676 = vpow.pop %v675
        %v677 = vadd.f32 %v667, %v670
        %v678 = vadd.f32 %v677, %v673
        %v679 = vadd.f32 %v678, %v676
        %v680 = vrcp.pop %v679
        %v681 = vmul.f32 %v667, %v680
        %v682 = vmul.f32 %v681, %v351
        %v683 = vmul.f32 %v670, %v680
        %v684 = vmul.f32 %v683, %v351
        %686 = vrot.lane.b32.xlu0 %v684, 64
        %v687 = vpop.permute.xlu0 %686
        %v689 = vadd.f32 %v682, %v687
        %v690 = vmul.f32 %v673, %v680
        %v691 = vmul.f32 %v690, %v352
        %v692 = vadd.f32 %v689, %v691
        %v693 = vmul.f32 %v676, %v680
        %v694 = vmul.f32 %v693, %v352
        %696 = vrot.lane.b32.xlu0 %v694, 64
        %v697 = vpop.permute.xlu0 %696
        %v699 = vadd.f32 %v692, %v697
        %702 = vrot.lane.b32.xlu0 %v614, 64
        %v703 = vpop.permute.xlu0 %702
        %704 = vrot.lane.b32.xlu0 %v615, 64
        %v705 = vpop.permute.xlu0 %704
        %v708 = vsel %vm355, %v703, 0.0
        %v709 = vsel %vm355, %v705, 0.0
        %v710 = vadd.f32 %v708, %v709
        %711 = vadd.xlane.f32.xlu0 %v710
        %v712 = vpop.xlane.xlu0 %711
        %v713 = vrot.slane %v712, 4
        %v714 = vadd.f32 %v712, %v713
        %v715 = vrot.slane %v714, 2
        %v716 = vadd.f32 %v714, %v715
        %v717 = vrot.slane %v716, 1
        %v718 = vadd.f32 %v716, %v717
        %s719 = vtos %v718
        %v720 = vstv %s719
        %v721 = vmul.f32 %v720, 0.03125
        %724 = vrot.lane.b32.xlu0 %v598, 64
        %v725 = vpop.permute.xlu0 %724
        %726 = vrot.lane.b32.xlu0 %v599, 64
        %v727 = vpop.permute.xlu0 %726
        %v730 = vsel %vm355, %v725, 0.0
        %v731 = vsel %vm355, %v727, 0.0
        %v732 = vadd.f32 %v730, %v731
        %733 = vadd.xlane.f32.xlu0 %v732
        %v734 = vpop.xlane.xlu0 %733
        %v735 = vrot.slane %v734, 4
        %v736 = vadd.f32 %v734, %v735
        %v737 = vrot.slane %v736, 2
        %v738 = vadd.f32 %v736, %v737
        %v739 = vrot.slane %v738, 1
        %v740 = vadd.f32 %v738, %v739
        %s741 = vtos %v740
        %v742 = vstv %s741
        %v743 = vmul.f32 %v742, 0.03125
        %746 = vrot.lane.b32.xlu0 %v646, 64
        %v747 = vpop.permute.xlu0 %746
        %748 = vrot.lane.b32.xlu0 %v647, 64
        %v749 = vpop.permute.xlu0 %748
        %v752 = vsel %vm355, %v747, 0.0
        %v753 = vsel %vm355, %v749, 0.0
        %v754 = vadd.f32 %v752, %v753
        %755 = vadd.xlane.f32.xlu0 %v754
        %v756 = vpop.xlane.xlu0 %755
        %v757 = vrot.slane %v756, 4
        %v758 = vadd.f32 %v756, %v757
        %v759 = vrot.slane %v758, 2
        %v760 = vadd.f32 %v758, %v759
        %v761 = vrot.slane %v760, 1
        %v762 = vadd.f32 %v760, %v761
        %s763 = vtos %v762
        %v764 = vstv %s763
        %v765 = vmul.f32 %v764, 0.03125
        %768 = vrot.lane.b32.xlu0 %v630, 64
        %v769 = vpop.permute.xlu0 %768
        %770 = vrot.lane.b32.xlu0 %v631, 64
        %v771 = vpop.permute.xlu0 %770
        %v774 = vsel %vm355, %v769, 0.0
        %v775 = vsel %vm355, %v771, 0.0
        %v776 = vadd.f32 %v774, %v775
        %777 = vadd.xlane.f32.xlu0 %v776
        %v778 = vpop.xlane.xlu0 %777
        %v779 = vrot.slane %v778, 4
        %v780 = vadd.f32 %v778, %v779
        %v781 = vrot.slane %v780, 2
        %v782 = vadd.f32 %v780, %v781
        %v783 = vrot.slane %v782, 1
        %v784 = vadd.f32 %v782, %v783
        %s785 = vtos %v784
        %v786 = vstv %s785
        %v787 = vmul.f32 %v786, 0.03125
        %v788 = vmax.f32 %v721, %v743
        %v789 = vmax.f32 %v788, %v765
        %v790 = vmax.f32 %v789, %v787
        %v791 = vsub.f32 %v721, %v790
        %v792 = vmul.f32 %v791, 1.442695
        %v793 = vpow.pop %v792
        %v794 = vsub.f32 %v743, %v790
        %v795 = vmul.f32 %v794, 1.442695
        %v796 = vpow.pop %v795
        %v797 = vsub.f32 %v765, %v790
        %v798 = vmul.f32 %v797, 1.442695
        %v799 = vpow.pop %v798
        %v800 = vsub.f32 %v787, %v790
        %v801 = vmul.f32 %v800, 1.442695
        %v802 = vpow.pop %v801
        %v803 = vadd.f32 %v793, %v796
        %v804 = vadd.f32 %v803, %v799
        %v805 = vadd.f32 %v804, %v802
        %v806 = vrcp.pop %v805
        %v807 = vmul.f32 %v793, %v806
        %v808 = vmul.f32 %v807, %v351
        %v809 = vmul.f32 %v796, %v806
        %v810 = vmul.f32 %v809, %v351
        %812 = vrot.lane.b32.xlu0 %v810, 64
        %v813 = vpop.permute.xlu0 %812
        %v815 = vadd.f32 %v808, %v813
        %v816 = vmul.f32 %v799, %v806
        %v817 = vmul.f32 %v816, %v352
        %v818 = vadd.f32 %v815, %v817
        %v819 = vmul.f32 %v802, %v806
        %v820 = vmul.f32 %v819, %v352
        %822 = vrot.lane.b32.xlu0 %v820, 64
        %v823 = vpop.permute.xlu0 %822
        %v825 = vadd.f32 %v818, %v823
        %827 = vrot.lane.b32.xlu0 %v597, 64
        %v828 = vpop.permute.xlu0 %827
        %831 = vrot.lane.b32.xlu0 %v825, 64
        %v832 = vpop.permute.xlu0 %831
        %v834 = vsel %vm355, %v471, %v828
        %v835 = vsel %vm355, %v699, %v832
        %v836 = vpack.c.bf16 %v834, %v834
        %v837 = vpack.c.bf16 %v835, %v835
        %v840 = vunpack.c.l.b16 %v836
        %v841 = vunpack.c.l.b16 %v837
        %v842 = vpack.c.b16 %v841, %v840
        %844 = vst [vmem:[%s336] sm:$0x77] %v842
        %s845 = smul.u32 2, %s19
        %p846 = scmp.lt.s32.totalorder %s18, 3
        %s847 = scalar_select %p846, %s18, 3
        %p848 = scmp.lt.s32.totalorder %s845, 3
        %s849 = scalar_select %p848, %s845, 3
        %s850 = smul.addr %s847, 4
        %s851 = sadd.s32 %s849, %s850
        %s852 = smul.addr %s851, 4
        %s853 = scalar_lea.vmem %s3, %s852
        // Predicated region
        $region109: #{channel_attention_tac.4} parent=99 // pred_check
          %p854 = pneg %p130
        $region110: #{channel_attention_tac.4} parent=99 // pred_check_branch
          %856 = sbr.rel (%p854) target = $region112
        $region111: #{channel_attention_tac.4} parent=99 // pred_region
          %s857 = smul.u32 2, %s19
        $region112: #{channel_attention_tac.4} parent=99 // pred_fallthru
          _
      $region100: #{channel_attention_tac.4} parent=5 // pred_fallthru
        _
      %p858 = scmp.le.s32.totalorder 2, %s9
      // Predicated region
      $region113: #{channel_attention_tac.4} parent=5 // pred_check
        %p859 = pneg %p858
      $region114: #{channel_attention_tac.4} parent=5 // pred_check_branch
        %861 = sbr.rel (%p859) target = $region116
      $region115: #{channel_attention_tac.4} parent=5 // pred_region
        %s862 = ssub.s32 %s9, 2
        // Predicated region
        $region117: #{channel_attention_tac.4} parent=115 // pred_check
          %p863 = pneg %p136
        $region118: #{channel_attention_tac.4} parent=115 // pred_check_branch
          %865 = sbr.rel (%p863) target = $region120
        $region119: #{channel_attention_tac.4} parent=115 // pred_region
          %s866 = smul.u32 2, %s21
          %p867 = scmp.lt.s32.totalorder %s20, 3
          %s868 = scalar_select %p867, %s20, 3
          %p869 = scmp.lt.s32.totalorder %s866, 3
          %s870 = scalar_select %p869, %s866, 3
          %s871 = smul.addr %s868, 4
          %s872 = sadd.s32 %s870, %s871
          %s873 = smul.addr %s872, 4
          %s874 = scalar_lea.vmem %s3, %s873
        $region120: #{channel_attention_tac.4} parent=115 // pred_fallthru
          _
      $region116: #{channel_attention_tac.4} parent=5 // pred_fallthru
        _
    $region6: #{channel_attention_tac.4} parent=1 // loop_footer
      %s13 = sadd.s32 1, %s9
    $region7: #{channel_attention_tac.4} parent=1 // loop_footer_branch
      %8 = sbr.rel target = $region3
    $region8: #{channel_attention_tac.4} parent=1 // loop_exit
      _

// kernel: channel_attention_tac.5
$region0: #{channel_attention_tac.5}
  #allocation0 [shape = 'u32[]', space=smem, size = 0x4, offset = 0x4, fixed_abs, tag = 'smem constant byte address 0x4 - core index']
  #allocation1 [shape = 'u32[144,128]{1,0:T(1,128)}', space=vmem, size = 0x12000, scoped, tag = 'internal scratch']
  %s0 = inlined_call_operand.vmem [shape: f32[8,512], index: 0, kind: input, shape index: {}]
  %s1 = inlined_call_operand.vmem [shape: bf16[4,6,512], index: 1, kind: input, shape index: {}]
  %s2 = inlined_call_operand.vmem [shape: f32[24,8], index: 2, kind: input, shape index: {}]
  %s3 = inlined_call_operand.vmem [shape: f32[24,1], index: 3, kind: input, shape index: {}]
  %s4 = inlined_call_operand.vmem [shape: f32[24,24], index: 4, kind: input, shape index: {}]
  %s5 = inlined_call_operand.vmem [shape: f32[24,1], index: 5, kind: input, shape index: {}]
  %s6 = inlined_call_operand.vmem [shape: f32[24,1], index: 6, kind: input, shape index: {}]
  %s7 = inlined_call_operand.vmem [shape: f32[24,1], index: 7, kind: input, shape index: {}]
  %s8 = inlined_call_operand.vmem [shape: f32[8,48], index: 8, kind: input, shape index: {}]
  %s9 = inlined_call_operand.vmem [shape: f32[8,1], index: 9, kind: input, shape index: {}]
  %s10 = inlined_call_operand.vmem [shape: f32[8,1], index: 10, kind: input, shape index: {}]
  %s11 = inlined_call_operand.vmem [shape: f32[8,1], index: 11, kind: input, shape index: {}]
  %s12 = inlined_call_operand.vmem [shape: f32[8,512], index: 12, kind: output, shape index: {}]
  %s13 = sld [smem:[#allocation0]]
  $region122: #{channel_attention_tac.5} parent=0
    _
  %s15 = ssub.s32 1, %s13
  %s16 = scalar_select 0, %s15, %s13
  $region1: #{channel_attention_tac.5} parent=0
    #allocation2 [shape = 'u8[16384]{0}', space=vmem, size = 0x4000, scoped, tag = 'input window, operand 1']
    loop: start=0, step=1, limit=6
    $region2: #{channel_attention_tac.5} parent=1 // loop_pre_header
      _
    $region3: #{channel_attention_tac.5} parent=1 // loop_header
      %s18 = sphi 0, %s22
      %p19 = scmp.ge.s32.totalorder %s18, 6
      %s28 = sphi 0, %s30
      %s31 = sphi 0, %s28
      %s32 = sphi 0, %s31
      %s48 = sphi 0, %s32
      %s54 = sphi 0, %s56
      %s57 = sphi 0, %s54
      %s58 = sphi 0, %s57
      %s74 = sphi 0, %s58
      %s78 = sphi 0, %s78
      %s80 = sphi 0, %s78
      %s81 = sphi 0, %s80
      %s95 = sphi 0, %s81
      %s99 = sphi 0, %s99
      %s101 = sphi 0, %s99
      %s102 = sphi 0, %s101
      %s116 = sphi 0, %s102
      %s120 = sphi 0, %s120
      %s122 = sphi 0, %s120
      %s123 = sphi 0, %s122
      %s137 = sphi 0, %s123
      %s141 = sphi 0, %s141
      %s143 = sphi 0, %s141
      %s144 = sphi 0, %s143
      %s158 = sphi 0, %s144
      %s162 = sphi 0, %s162
      %s164 = sphi 0, %s162
      %s165 = sphi 0, %s164
      %s179 = sphi 0, %s165
      %s183 = sphi 0, %s183
      %s185 = sphi 0, %s183
      %s186 = sphi 0, %s185
      %s200 = sphi 0, %s186
      %s204 = sphi 0, %s204
      %s206 = sphi 0, %s204
      %s207 = sphi 0, %s206
      %s221 = sphi 0, %s207
      %s225 = sphi 0, %s225
      %s227 = sphi 0, %s225
      %s228 = sphi 0, %s227
      %s242 = sphi 0, %s228
      %s246 = sphi 0, %s246
      %s248 = sphi 0, %s246
      %s249 = sphi 0, %s248
      %s263 = sphi 0, %s249
      %s267 = sphi 0, %s267
      %s269 = sphi 0, %s267
      %s270 = sphi 0, %s269
      %s284 = sphi 0, %s270
      %s290 = sphi 0, %s292
      %s293 = sphi 0, %s290
      %s294 = sphi 0, %s293
      %s310 = sphi 0, %s294
    $region4: #{channel_attention_tac.5} parent=1 // loop_header_branch
      %21 = sbr.rel (%p19) target = $region8
    $region5: #{channel_attention_tac.5} parent=1 // loop_body
      %s23 = ssub.s32 %s18, 1
      %s24 = ssub.s32 %s18, 2
      %s25 = sadd.s32 %s18, 1
      %s26 = ssub.s32 %s18, %s25
      %p27 = scmp.eq.s32.totalorder %s26, 0
      %s29 = sadd.s32 %s28, 1
      %s30 = scalar_select %p27, %s28, %s29
      %p33 = pneg %p27
      %p34 = scmp.eq.s32.totalorder %s18, 3
      %p35 = por %p33, %p34
      %p36 = scmp.ne.s32.totalorder %s28, %s31
      %p37 = scmp.eq.s32.totalorder %s18, 0
      %p38 = por %p36, %p37
      %p39 = scmp.ne.s32.totalorder %s28, %s31
      %p40 = scmp.eq.s32.totalorder %s23, 3
      %p41 = por %p39, %p40
      %p42 = scmp.ne.s32.totalorder %s31, %s32
      %p43 = scmp.eq.s32.totalorder %s23, 0
      %p44 = por %p42, %p43
      %p45 = scmp.ne.s32.totalorder %s31, %s32
      %p46 = scmp.eq.s32.totalorder %s24, 3
      %p47 = por %p45, %p46
      %p49 = scmp.ne.s32.totalorder %s32, %s48
      %p50 = scmp.eq.s32.totalorder %s24, 0
      %p51 = por %p49, %p50
      %s52 = ssub.s32 %s18, %s25
      %p53 = scmp.eq.s32.totalorder %s52, 0
      %s55 = sadd.s32 %s54, 1
      %s56 = scalar_select %p53, %s54, %s55
      %p59 = pneg %p53
      %p60 = scmp.eq.s32.totalorder %s18, 3
      %p61 = por %p59, %p60
      %p62 = scmp.ne.s32.totalorder %s54, %s57
      %p63 = scmp.eq.s32.totalorder %s18, 0
      %p64 = por %p62, %p63
      %p65 = scmp.ne.s32.totalorder %s54, %s57
      %p66 = scmp.eq.s32.totalorder %s23, 3
      %p67 = por %p65, %p66
      %p68 = scmp.ne.s32.totalorder %s57, %s58
      %p69 = scmp.eq.s32.totalorder %s23, 0
      %p70 = por %p68, %p69
      %p71 = scmp.ne.s32.totalorder %s57, %s58
      %p72 = scmp.eq.s32.totalorder %s24, 3
      %p73 = por %p71, %p72
      %p75 = scmp.ne.s32.totalorder %s58, %s74
      %p76 = scmp.eq.s32.totalorder %s24, 0
      %p77 = por %p75, %p76
      %s79 = sadd.s32 %s78, 1
      %p82 = scmp.eq.s32.totalorder %s18, 3
      %p83 = scmp.ne.s32.totalorder %s78, %s80
      %p84 = scmp.eq.s32.totalorder %s18, 0
      %p85 = por %p83, %p84
      %p86 = scmp.ne.s32.totalorder %s78, %s80
      %p87 = scmp.eq.s32.totalorder %s23, 3
      %p88 = por %p86, %p87
      %p89 = scmp.ne.s32.totalorder %s80, %s81
      %p90 = scmp.eq.s32.totalorder %s23, 0
      %p91 = por %p89, %p90
      %p92 = scmp.ne.s32.totalorder %s80, %s81
      %p93 = scmp.eq.s32.totalorder %s24, 3
      %p94 = por %p92, %p93
      %p96 = scmp.ne.s32.totalorder %s81, %s95
      %p97 = scmp.eq.s32.totalorder %s24, 0
      %p98 = por %p96, %p97
      %s100 = sadd.s32 %s99, 1
      %p103 = scmp.eq.s32.totalorder %s18, 3
      %p104 = scmp.ne.s32.totalorder %s99, %s101
      %p105 = scmp.eq.s32.totalorder %s18, 0
      %p106 = por %p104, %p105
      %p107 = scmp.ne.s32.totalorder %s99, %s101
      %p108 = scmp.eq.s32.totalorder %s23, 3
      %p109 = por %p107, %p108
      %p110 = scmp.ne.s32.totalorder %s101, %s102
      %p111 = scmp.eq.s32.totalorder %s23, 0
      %p112 = por %p110, %p111
      %p113 = scmp.ne.s32.totalorder %s101, %s102
      %p114 = scmp.eq.s32.totalorder %s24, 3
      %p115 = por %p113, %p114
      %p117 = scmp.ne.s32.totalorder %s102, %s116
      %p118 = scmp.eq.s32.totalorder %s24, 0
      %p119 = por %p117, %p118
      %s121 = sadd.s32 %s120, 1
      %p124 = scmp.eq.s32.totalorder %s18, 3
      %p125 = scmp.ne.s32.totalorder %s120, %s122
      %p126 = scmp.eq.s32.totalorder %s18, 0
      %p127 = por %p125, %p126
      %p128 = scmp.ne.s32.totalorder %s120, %s122
      %p129 = scmp.eq.s32.totalorder %s23, 3
      %p130 = por %p128, %p129
      %p131 = scmp.ne.s32.totalorder %s122, %s123
      %p132 = scmp.eq.s32.totalorder %s23, 0
      %p133 = por %p131, %p132
      %p134 = scmp.ne.s32.totalorder %s122, %s123
      %p135 = scmp.eq.s32.totalorder %s24, 3
      %p136 = por %p134, %p135
      %p138 = scmp.ne.s32.totalorder %s123, %s137
      %p139 = scmp.eq.s32.totalorder %s24, 0
      %p140 = por %p138, %p139
      %s142 = sadd.s32 %s141, 1
      %p145 = scmp.eq.s32.totalorder %s18, 3
      %p146 = scmp.ne.s32.totalorder %s141, %s143
      %p147 = scmp.eq.s32.totalorder %s18, 0
      %p148 = por %p146, %p147
      %p149 = scmp.ne.s32.totalorder %s141, %s143
      %p150 = scmp.eq.s32.totalorder %s23, 3
      %p151 = por %p149, %p150
      %p152 = scmp.ne.s32.totalorder %s143, %s144
      %p153 = scmp.eq.s32.totalorder %s23, 0
      %p154 = por %p152, %p153
      %p155 = scmp.ne.s32.totalorder %s143, %s144
      %p156 = scmp.eq.s32.totalorder %s24, 3
      %p157 = por %p155, %p156
      %p159 = scmp.ne.s32.totalorder %s144, %s158
      %p160 = scmp.eq.s32.totalorder %s24, 0
      %p161 = por %p159, %p160
      %s163 = sadd.s32 %s162, 1
      %p166 = scmp.eq.s32.totalorder %s18, 3
      %p167 = scmp.ne.s32.totalorder %s162, %s164
      %p168 = scmp.eq.s32.totalorder %s18, 0
      %p169 = por %p167, %p168
      %p170 = scmp.ne.s32.totalorder %s162, %s164
      %p171 = scmp.eq.s32.totalorder %s23, 3
      %p172 = por %p170, %p171
      %p173 = scmp.ne.s32.totalorder %s164, %s165
      %p174 = scmp.eq.s32.totalorder %s23, 0
      %p175 = por %p173, %p174
      %p176 = scmp.ne.s32.totalorder %s164, %s165
      %p177 = scmp.eq.s32.totalorder %s24, 3
      %p178 = por %p176, %p177
      %p180 = scmp.ne.s32.totalorder %s165, %s179
      %p181 = scmp.eq.s32.totalorder %s24, 0
      %p182 = por %p180, %p181
      %s184 = sadd.s32 %s183, 1
      %p187 = scmp.eq.s32.totalorder %s18, 3
      %p188 = scmp.ne.s32.totalorder %s183, %s185
      %p189 = scmp.eq.s32.totalorder %s18, 0
      %p190 = por %p188, %p189
      %p191 = scmp.ne.s32.totalorder %s183, %s185
      %p192 = scmp.eq.s32.totalorder %s23, 3
      %p193 = por %p191, %p192
      %p194 = scmp.ne.s32.totalorder %s185, %s186
      %p195 = scmp.eq.s32.totalorder %s23, 0
      %p196 = por %p194, %p195
      %p197 = scmp.ne.s32.totalorder %s185, %s186
      %p198 = scmp.eq.s32.totalorder %s24, 3
      %p199 = por %p197, %p198
      %p201 = scmp.ne.s32.totalorder %s186, %s200
      %p202 = scmp.eq.s32.totalorder %s24, 0
      %p203 = por %p201, %p202
      %s205 = sadd.s32 %s204, 1
      %p208 = scmp.eq.s32.totalorder %s18, 3
      %p209 = scmp.ne.s32.totalorder %s204, %s206
      %p210 = scmp.eq.s32.totalorder %s18, 0
      %p211 = por %p209, %p210
      %p212 = scmp.ne.s32.totalorder %s204, %s206
      %p213 = scmp.eq.s32.totalorder %s23, 3
      %p214 = por %p212, %p213
      %p215 = scmp.ne.s32.totalorder %s206, %s207
      %p216 = scmp.eq.s32.totalorder %s23, 0
      %p217 = por %p215, %p216
      %p218 = scmp.ne.s32.totalorder %s206, %s207
      %p219 = scmp.eq.s32.totalorder %s24, 3
      %p220 = por %p218, %p219
      %p222 = scmp.ne.s32.totalorder %s207, %s221
      %p223 = scmp.eq.s32.totalorder %s24, 0
      %p224 = por %p222, %p223
      %s226 = sadd.s32 %s225, 1
      %p229 = scmp.eq.s32.totalorder %s18, 3
      %p230 = scmp.ne.s32.totalorder %s225, %s227
      %p231 = scmp.eq.s32.totalorder %s18, 0
      %p232 = por %p230, %p231
      %p233 = scmp.ne.s32.totalorder %s225, %s227
      %p234 = scmp.eq.s32.totalorder %s23, 3
      %p235 = por %p233, %p234
      %p236 = scmp.ne.s32.totalorder %s227, %s228
      %p237 = scmp.eq.s32.totalorder %s23, 0
      %p238 = por %p236, %p237
      %p239 = scmp.ne.s32.totalorder %s227, %s228
      %p240 = scmp.eq.s32.totalorder %s24, 3
      %p241 = por %p239, %p240
      %p243 = scmp.ne.s32.totalorder %s228, %s242
      %p244 = scmp.eq.s32.totalorder %s24, 0
      %p245 = por %p243, %p244
      %s247 = sadd.s32 %s246, 1
      %p250 = scmp.eq.s32.totalorder %s18, 3
      %p251 = scmp.ne.s32.totalorder %s246, %s248
      %p252 = scmp.eq.s32.totalorder %s18, 0
      %p253 = por %p251, %p252
      %p254 = scmp.ne.s32.totalorder %s246, %s248
      %p255 = scmp.eq.s32.totalorder %s23, 3
      %p256 = por %p254, %p255
      %p257 = scmp.ne.s32.totalorder %s248, %s249
      %p258 = scmp.eq.s32.totalorder %s23, 0
      %p259 = por %p257, %p258
      %p260 = scmp.ne.s32.totalorder %s248, %s249
      %p261 = scmp.eq.s32.totalorder %s24, 3
      %p262 = por %p260, %p261
      %p264 = scmp.ne.s32.totalorder %s249, %s263
      %p265 = scmp.eq.s32.totalorder %s24, 0
      %p266 = por %p264, %p265
      %s268 = sadd.s32 %s267, 1
      %p271 = scmp.eq.s32.totalorder %s18, 3
      %p272 = scmp.ne.s32.totalorder %s267, %s269
      %p273 = scmp.eq.s32.totalorder %s18, 0
      %p274 = por %p272, %p273
      %p275 = scmp.ne.s32.totalorder %s267, %s269
      %p276 = scmp.eq.s32.totalorder %s23, 3
      %p277 = por %p275, %p276
      %p278 = scmp.ne.s32.totalorder %s269, %s270
      %p279 = scmp.eq.s32.totalorder %s23, 0
      %p280 = por %p278, %p279
      %p281 = scmp.ne.s32.totalorder %s269, %s270
      %p282 = scmp.eq.s32.totalorder %s24, 3
      %p283 = por %p281, %p282
      %p285 = scmp.ne.s32.totalorder %s270, %s284
      %p286 = scmp.eq.s32.totalorder %s24, 0
      %p287 = por %p285, %p286
      %s288 = ssub.s32 %s18, %s25
      %p289 = scmp.eq.s32.totalorder %s288, 0
      %s291 = sadd.s32 %s290, 1
      %s292 = scalar_select %p289, %s290, %s291
      %p295 = pneg %p289
      %p296 = scmp.eq.s32.totalorder %s18, 3
      %p297 = por %p295, %p296
      %p298 = scmp.ne.s32.totalorder %s290, %s293
      %p299 = scmp.eq.s32.totalorder %s18, 0
      %p300 = por %p298, %p299
      %p301 = scmp.ne.s32.totalorder %s290, %s293
      %p302 = scmp.eq.s32.totalorder %s23, 3
      %p303 = por %p301, %p302
      %p304 = scmp.ne.s32.totalorder %s293, %s294
      %p305 = scmp.eq.s32.totalorder %s23, 0
      %p306 = por %p304, %p305
      %p307 = scmp.ne.s32.totalorder %s293, %s294
      %p308 = scmp.eq.s32.totalorder %s24, 3
      %p309 = por %p307, %p308
      %p311 = scmp.ne.s32.totalorder %s294, %s310
      %p312 = scmp.eq.s32.totalorder %s24, 0
      %p313 = por %p311, %p312
      %p314 = scmp.le.s32.totalorder 1, %s18
      %p315 = scmp.lt.s32.totalorder %s18, 5
      %p316 = pnand %p314, %p315
      %p317 = pneg %p316
      // Predicated region
      $region9: #{channel_attention_tac.5} parent=5 // pred_check
        _
      $region10: #{channel_attention_tac.5} parent=5 // pred_check_branch
        %319 = sbr.rel (%p316) target = $region12
      $region11: #{channel_attention_tac.5} parent=5 // pred_region
        %s320 = ssub.s32 %s18, 1
        // Predicated region
        $region13: #{channel_attention_tac.5} parent=11 // pred_check
          %p321 = pneg %p91
        $region14: #{channel_attention_tac.5} parent=11 // pred_check_branch
          %323 = sbr.rel (%p321) target = $region16
        $region15: #{channel_attention_tac.5} parent=11 // pred_region
          _
        $region16: #{channel_attention_tac.5} parent=11 // pred_fallthru
          _
        // Predicated region
        $region17: #{channel_attention_tac.5} parent=11 // pred_check
          %p324 = pneg %p112
        $region18: #{channel_attention_tac.5} parent=11 // pred_check_branch
          %326 = sbr.rel (%p324) target = $region20
        $region19: #{channel_attention_tac.5} parent=11 // pred_region
          _
        $region20: #{channel_attention_tac.5} parent=11 // pred_fallthru
          _
        // Predicated region
        $region21: #{channel_attention_tac.5} parent=11 // pred_check
          %p327 = pneg %p133
        $region22: #{channel_attention_tac.5} parent=11 // pred_check_branch
          %329 = sbr.rel (%p327) target = $region24
        $region23: #{channel_attention_tac.5} parent=11 // pred_region
          _
        $region24: #{channel_attention_tac.5} parent=11 // pred_fallthru
          _
        // Predicated region
        $region25: #{channel_attention_tac.5} parent=11 // pred_check
          %p330 = pneg %p154
        $region26: #{channel_attention_tac.5} parent=11 // pred_check_branch
          %332 = sbr.rel (%p330) target = $region28
        $region27: #{channel_attention_tac.5} parent=11 // pred_region
          _
        $region28: #{channel_attention_tac.5} parent=11 // pred_fallthru
          _
        // Predicated region
        $region29: #{channel_attention_tac.5} parent=11 // pred_check
          %p333 = pneg %p175
        $region30: #{channel_attention_tac.5} parent=11 // pred_check_branch
          %335 = sbr.rel (%p333) target = $region32
        $region31: #{channel_attention_tac.5} parent=11 // pred_region
          _
        $region32: #{channel_attention_tac.5} parent=11 // pred_fallthru
          _
        // Predicated region
        $region33: #{channel_attention_tac.5} parent=11 // pred_check
          %p336 = pneg %p196
        $region34: #{channel_attention_tac.5} parent=11 // pred_check_branch
          %338 = sbr.rel (%p336) target = $region36
        $region35: #{channel_attention_tac.5} parent=11 // pred_region
          _
        $region36: #{channel_attention_tac.5} parent=11 // pred_fallthru
          _
        // Predicated region
        $region37: #{channel_attention_tac.5} parent=11 // pred_check
          %p339 = pneg %p217
        $region38: #{channel_attention_tac.5} parent=11 // pred_check_branch
          %341 = sbr.rel (%p339) target = $region40
        $region39: #{channel_attention_tac.5} parent=11 // pred_region
          _
        $region40: #{channel_attention_tac.5} parent=11 // pred_fallthru
          _
        // Predicated region
        $region41: #{channel_attention_tac.5} parent=11 // pred_check
          %p342 = pneg %p238
        $region42: #{channel_attention_tac.5} parent=11 // pred_check_branch
          %344 = sbr.rel (%p342) target = $region44
        $region43: #{channel_attention_tac.5} parent=11 // pred_region
          _
        $region44: #{channel_attention_tac.5} parent=11 // pred_fallthru
          _
        // Predicated region
        $region45: #{channel_attention_tac.5} parent=11 // pred_check
          %p345 = pneg %p259
        $region46: #{channel_attention_tac.5} parent=11 // pred_check_branch
          %347 = sbr.rel (%p345) target = $region48
        $region47: #{channel_attention_tac.5} parent=11 // pred_region
          _
        $region48: #{channel_attention_tac.5} parent=11 // pred_fallthru
          _
        // Predicated region
        $region49: #{channel_attention_tac.5} parent=11 // pred_check
          %p348 = pneg %p280
        $region50: #{channel_attention_tac.5} parent=11 // pred_check_branch
          %350 = sbr.rel (%p348) target = $region52
        $region51: #{channel_attention_tac.5} parent=11 // pred_region
          _
        $region52: #{channel_attention_tac.5} parent=11 // pred_fallthru
          _
      $region12: #{channel_attention_tac.5} parent=5 // pred_fallthru
        _
      %p351 = scmp.lt.s32.totalorder %s18, 4
      // Predicated region
      $region53: #{channel_attention_tac.5} parent=5 // pred_check
        %p352 = pneg %p351
      $region54: #{channel_attention_tac.5} parent=5 // pred_check_branch
        %354 = sbr.rel (%p352) target = $region56
      $region55: #{channel_attention_tac.5} parent=5 // pred_region
        // Predicated region
        $region57: #{channel_attention_tac.5} parent=55 // pred_check
          %p355 = pneg %p38
        $region58: #{channel_attention_tac.5} parent=55 // pred_check_branch
          %357 = sbr.rel (%p355) target = $region60
        $region59: #{channel_attention_tac.5} parent=55 // pred_region
          %p358 = scmp.lt.s32.totalorder %s18, 3
          %s359 = scalar_select %p358, %s18, 3
          %s360 = smul.addr %s359, 8
          %s361 = scalar_lea.vmem %s0, %s360
        $region60: #{channel_attention_tac.5} parent=55 // pred_fallthru
          _
        // Predicated region
        $region61: #{channel_attention_tac.5} parent=55 // pred_check
          %p362 = pneg %p64
        $region62: #{channel_attention_tac.5} parent=55 // pred_check_branch
          %364 = sbr.rel (%p362) target = $region64
        $region63: #{channel_attention_tac.5} parent=55 // pred_region
          %s365 = sand.u32 %s54, 1
          %s366 = sand.u32 %s54, 1
          %s367 = smul.addr %s366, 16
          %s368 = scalar_lea.vmem [#allocation2], %s367
          %s369 = smul.addr %s18, 4
          %s370 = scalar_lea.vmem %s1, %s369
          // Predicated region
          $region65: #{channel_attention_tac.5} parent=63 // pred_check
            _
          $region66: #{channel_attention_tac.5} parent=63 // pred_check_branch
            %372 = sbr.rel (0) target = $region68
          $region67: #{channel_attention_tac.5} parent=63 // pred_region
            // Predicated region
            $region69: #{channel_attention_tac.5} parent=67 // pred_check
              _
            $region70: #{channel_attention_tac.5} parent=67 // pred_check_branch
              %374 = sbr.rel target = $region72
            $region71: #{channel_attention_tac.5} parent=67 // pred_region
              // Predicated region
              $region84: #{channel_attention_tac.5} parent=71 // pred_check
                _
              $region85: #{channel_attention_tac.5} parent=71 // pred_check_branch
                %395 = sbr.rel (0) target = $region87
              $region86: #{channel_attention_tac.5} parent=71 // pred_region
                loop: start=0, step=1, limit=1
                $region88: #{channel_attention_tac.5} parent=86 // loop_pre_header
                  _
                $region89: #{channel_attention_tac.5} parent=86 // loop_header
                  %s397 = sphi 0, %s401
                  %p398 = scmp.ge.s32.totalorder %s397, 1
                  %s402 = sphi %s370, %s370
                  %s403 = sphi %s368, %s368
                $region90: #{channel_attention_tac.5} parent=86 // loop_header_branch
                  %400 = sbr.rel (%p398) target = $region94
                $region91: #{channel_attention_tac.5} parent=86 // loop_body
                  _
                $region92: #{channel_attention_tac.5} parent=86 // loop_footer
                  %s401 = sadd.s32 1, %s397
                $region93: #{channel_attention_tac.5} parent=86 // loop_footer_branch
                  %396 = sbr.rel target = $region89
                $region94: #{channel_attention_tac.5} parent=86 // loop_exit
                  _
                loop: start=0, step=1, limit=1
                $region95: #{channel_attention_tac.5} parent=86 // loop_pre_header
                  _
                $region96: #{channel_attention_tac.5} parent=86 // loop_header
                  %s406 = sphi 0, %s410
                  %p407 = scmp.ge.s32.totalorder %s406, 1
                  %s411 = sphi %s370, %s370
                  %s412 = sphi %s368, %s368
                $region97: #{channel_attention_tac.5} parent=86 // loop_header_branch
                  %409 = sbr.rel (%p407) target = $region101
                $region98: #{channel_attention_tac.5} parent=86 // loop_body
                  %v413 = vld [vmem:[%s411] sm:$0xf]
                  %414 = vst [vmem:[%s412] sm:$0xf] %v413
                  %v415 = vld [vmem:[%s411 + $0x10] sm:$0xf]
                  %416 = vst [vmem:[%s412 + $0x4] sm:$0xf] %v415
                  %v417 = vld [vmem:[%s411 + $0x20] sm:$0xf]
                  %418 = vst [vmem:[%s412 + $0x8] sm:$0xf] %v417
                  %v419 = vld [vmem:[%s411 + $0x30] sm:$0xf]
                  %420 = vst [vmem:[%s412 + $0xc] sm:$0xf] %v419
                $region99: #{channel_attention_tac.5} parent=86 // loop_footer
                  %s410 = sadd.s32 1, %s406
                $region100: #{channel_attention_tac.5} parent=86 // loop_footer_branch
                  %405 = sbr.rel target = $region96
                $region101: #{channel_attention_tac.5} parent=86 // loop_exit
                  _
              $region87: #{channel_attention_tac.5} parent=71 // pred_fallthru
                _
            $region72: #{channel_attention_tac.5} parent=67 // pred_fallthru
              _
            // Predicated region
            $region73: #{channel_attention_tac.5} parent=67 // pred_check
              _
            $region74: #{channel_attention_tac.5} parent=67 // pred_check_branch
              %376 = sbr.rel (0) target = $region76
            $region75: #{channel_attention_tac.5} parent=67 // pred_region
              loop: start=0, step=1, limit=1
              $region77: #{channel_attention_tac.5} parent=75 // loop_pre_header
                _
              $region78: #{channel_attention_tac.5} parent=75 // loop_header
                %s379 = sphi 0, %s383
                %p380 = scmp.ge.s32.totalorder %s379, 1
                %s384 = sphi %s370, %s370
                %s385 = sphi %s368, %s368
              $region79: #{channel_attention_tac.5} parent=75 // loop_header_branch
                %382 = sbr.rel (%p380) target = $region83
              $region80: #{channel_attention_tac.5} parent=75 // loop_body
                %v386 = vld [vmem:[%s384] sm:$0xf]
                %387 = vst [vmem:[%s385] sm:$0xf] %v386
                %v388 = vld [vmem:[%s384 + $0x10] sm:$0xf]
                %389 = vst [vmem:[%s385 + $0x4] sm:$0xf] %v388
                %v390 = vld [vmem:[%s384 + $0x20] sm:$0xf]
                %391 = vst [vmem:[%s385 + $0x8] sm:$0xf] %v390
                %v392 = vld [vmem:[%s384 + $0x30] sm:$0xf]
                %393 = vst [vmem:[%s385 + $0xc] sm:$0xf] %v392
              $region81: #{channel_attention_tac.5} parent=75 // loop_footer
                %s383 = sadd.s32 1, %s379
              $region82: #{channel_attention_tac.5} parent=75 // loop_footer_branch
                %378 = sbr.rel target = $region78
              $region83: #{channel_attention_tac.5} parent=75 // loop_exit
                _
            $region76: #{channel_attention_tac.5} parent=67 // pred_fallthru
              _
          $region68: #{channel_attention_tac.5} parent=63 // pred_fallthru
            _
          %421 = vnop
        $region64: #{channel_attention_tac.5} parent=55 // pred_fallthru
          _
      $region56: #{channel_attention_tac.5} parent=5 // pred_fallthru
        _
      %p422 = scmp.le.s32.totalorder 1, %s18
      %p423 = scmp.lt.s32.totalorder %s18, 5
      %p424 = pnand %p422, %p423
      %p425 = pneg %p424
      // Predicated region
      $region102: #{channel_attention_tac.5} parent=5 // pred_check
        _
      $region103: #{channel_attention_tac.5} parent=5 // pred_check_branch
        %427 = sbr.rel (%p424) target = $region105
      $region104: #{channel_attention_tac.5} parent=5 // pred_region
        %s428 = ssub.s32 %s18, 1
        %s429 = sand.u32 %s57, 1
        %s430 = sand.u32 %s57, 1
        %s431 = smul.addr %s430, 16
        %s432 = scalar_lea.vmem [#allocation2], %s431
        // Predicated region
        $region106: #{channel_attention_tac.5} parent=104 // pred_check
          %p433 = pneg %p70
        $region107: #{channel_attention_tac.5} parent=104 // pred_check_branch
          %435 = sbr.rel (%p433) target = $region109
        $region108: #{channel_attention_tac.5} parent=104 // pred_region
          _
        $region109: #{channel_attention_tac.5} parent=104 // pred_fallthru
          _
        %p436 = scmp.lt.s32.totalorder %s23, 3
        %s437 = scalar_select %p436, %s23, 3
        %s438 = smul.addr %s437, 8
        %s439 = scalar_lea.vmem %s0, %s438
        %p440 = pneg %p44
        %p441 = pneg %p41
        %s442 = sand.u32 %s57, 1
        %s443 = sand.u32 %s57, 1
        %s444 = smul.addr %s443, 16
        %s445 = scalar_lea.vmem [#allocation2], %s444
        %p446 = pneg %p70
        %p447 = pneg %p67
        %p448 = pneg %p91
        %p449 = pneg %p88
        %p450 = pneg %p112
        %p451 = pneg %p109
        %p452 = pneg %p133
        %p453 = pneg %p130
        %p454 = pneg %p154
        %p455 = pneg %p151
        %p456 = pneg %p175
        %p457 = pneg %p172
        %p458 = pneg %p196
        %p459 = pneg %p193
        %p460 = pneg %p217
        %p461 = pneg %p214
        %p462 = pneg %p238
        %p463 = pneg %p235
        %p464 = pneg %p259
        %p465 = pneg %p256
        %p466 = pneg %p280
        %p467 = pneg %p277
        %p468 = pneg %p306
        %p469 = pneg %p303
        %p470 = scmp.lt.s32.totalorder %s23, 3
        %s471 = scalar_select %p470, %s23, 3
        %s472 = smul.addr %s471, 8
        %s473 = scalar_lea.vmem %s12, %s472
        %p474 = scmp.lt.s32.totalorder %s23, 3
        %s475 = scalar_select %p474, %s23, 3
        %s476 = smul.addr %s475, 8
        %s477 = scalar_lea.vmem %s0, %s476
        %p478 = scmp.lt.s32.totalorder %s23, 3
        %s479 = scalar_select %p478, %s23, 3
        %s480 = smul.addr %s479, 8
        %s481 = scalar_lea.vmem %s12, %s480
        %v482 = vld [vmem:[%s477] sm:$0xff]
        %v483 = vld [vmem:[%s2] sm:$0xff]
        %v484 = vld [vmem:[%s2 + $0x8] sm:$0xff]
        %v485 = vld [vmem:[%s2 + $0x10] sm:$0xff]
        %v486 = vld [vmem:[%s3] sm:$0xff]
        %v487 = vld [vmem:[%s3 + $0x8] sm:$0xff]
        %v488 = vld [vmem:[%s3 + $0x10] sm:$0xff]
        %490 = vset.pattern.permute.xlu0 0
        %491 = vperm.xlu0 %490, %v486
        %v492 = vpop.permute.xlu0 %491
        %495 = vset.pattern.permute.xlu0 0
        %496 = vperm.xlu0 %495, %v487
        %v497 = vpop.permute.xlu0 %496
        %500 = vset.pattern.permute.xlu0 0
        %501 = vperm.xlu0 %500, %v488
        %v502 = vpop.permute.xlu0 %501
        %vm504 = vcmask 64512
        %v506 = vsel %vm504, %v483, 0
        %v509 = vsel %vm504, %v484, 0
        %v512 = vsel %vm504, %v485, 0
        %514 = vmatprep.subr.mxu0 0.0
        %515 = vmatpush1.msra.mxu0 %v482
        %516 = vmatprep.subr.mxu0 0.0
        %517 = vmatpush1.msra.mxu0 0.0
        %518 = vmatprep.subr.mxu0 0.0
        %519 = vmatpush1.msra.mxu0 0.0
        %520 = vmatprep.subr.mxu0 0.0
        %521 = vmatpush1.msra.mxu0 0.0
        %522 = vmatprep.subr.mxu0 0.0
        %523 = vmatpush1.msra.mxu0 0.0
        %524 = vmatprep.subr.mxu0 0.0
        %525 = vmatpush1.msra.mxu0 0.0
        %526 = vmatprep.subr.mxu0 0.0
        %527 = vmatpush1.msra.mxu0 0.0
        %528 = vmatprep.subr.mxu0 0.0
        %529 = vmatpush1.msra.mxu0 0.0
        %530 = vmatprep.subr.mxu0 0.0
        %531 = vmatpush1.msra.mxu0 0.0
        %532 = vmatprep.subr.mxu0 0.0
        %533 = vmatpush1.msra.mxu0 0.0
        %534 = vmatprep.subr.mxu0 0.0
        %535 = vmatpush1.msra.mxu0 0.0
        %536 = vmatprep.subr.mxu0 0.0
        %537 = vmatpush1.msra.mxu0 0.0
        %538 = vmatprep.subr.mxu0 0.0
        %539 = vmatpush1.msra.mxu0 0.0
        %540 = vmatprep.subr.mxu0 0.0
        %541 = vmatpush1.msra.mxu0 0.0
        %542 = vmatprep.subr.mxu0 0.0
        %543 = vmatpush1.msra.mxu0 0.0
        %544 = vmatprep.subr.mxu0 0.0
        %545 = vmatpush1.msra.mxu0 0.0
        %546 = vmatprep.subr.mxu0 0.0
        %547 = vmatpush1.msra.mxu0 0.0
        %548 = vmatprep.subr.mxu0 0.0
        %549 = vmatpush1.msra.mxu0 0.0
        %550 = vmatprep.subr.mxu0 0.0
        %551 = vmatpush1.msra.mxu0 0.0
        %552 = vmatprep.subr.mxu0 0.0
        %553 = vmatpush1.msra.mxu0 0.0
        %554 = vmatprep.subr.mxu0 0.0
        %555 = vmatpush1.msra.mxu0 0.0
        %556 = vmatprep.subr.mxu0 0.0
        %557 = vmatpush1.msra.mxu0 0.0
        %558 = vmatprep.subr.mxu0 0.0
        %559 = vmatpush1.msra.mxu0 0.0
        %560 = vmatprep.subr.mxu0 0.0
        %561 = vmatpush1.msra.mxu0 0.0
        %562 = vmatprep.subr.mxu0 0.0
        %563 = vmatpush1.msra.mxu0 0.0
        %564 = vmatprep.subr.mxu0 0.0
        %565 = vmatpush1.msra.mxu0 0.0
        %566 = vmatprep.subr.mxu0 0.0
        %567 = vmatpush1.msra.mxu0 0.0
        %568 = vmatprep.subr.mxu0 0.0
        %569 = vmatpush1.msra.mxu0 0.0
        %570 = vmatprep.subr.mxu0 0.0
        %571 = vmatpush1.msra.mxu0 0.0
        %572 = vmatprep.subr.mxu0 0.0
        %573 = vmatpush1.msra.mxu0 0.0
        %574 = vmatprep.subr.mxu0 0.0
        %575 = vmatpush1.msra.mxu0 0.0
        %576 = vmatprep.subr.mxu0 0.0
        %577 = vmatpush1.msra.mxu0 0.0
        %578 = vmatprep.mubr.f32.mxu0 0.0
        %579 = vmatmul.mubr.f32.gmra.mrb[0].mxu0 %v506
        %v580 = vpop.f32.mrb[0].mxu0
        %v581 = vadd.f32 %v492, %v580
        %v582 = vpop.f32.mrb[0].mxu0
        %583 = vmatprep.mubr.f32.mxu0 0.0
        %584 = vmatmul.mubr.f32.gmra.mrb[0].mxu0 %v509
        %v585 = vpop.f32.mrb[0].mxu0
        %v586 = vadd.f32 %v497, %v585
        %v587 = vpop.f32.mrb[0].mxu0
        %588 = vmatprep.mubr.f32.mxu0 0.0
        %589 = vmatmul.mubr.f32.gmra.mrb[0].mxu0 %v512
        %v590 = vpop.f32.mrb[0].mxu0
        %v591 = vadd.f32 %v502, %v590
        %v592 = vpop.f32.mrb[0].mxu0
        %593 = vdwg.mxu0
        %vm594 = vcmp.ge.f32.partialorder %v581, 0.0
        %vm595 = vcmp.ge.f32.partialorder %v586, 0.0
        %vm596 = vcmp.ge.f32.partialorder %v591, 0.0
        %v597 = vmul.f32 %v581, 0.25
        %v598 = vmul.f32 %v586, 0.25
        %v599 = vmul.f32 %v591, 0.25
        %v600 = vsel %vm594, %v581, %v597
        %v601 = vsel %vm595, %v586, %v598
        %v602 = vsel %vm596, %v591, %v599
        %v603 = vld [vmem:[%s432] sm:$0x7]
        %v604 = vunpack.c.l.bf16 %v603
        %s605 = scalar_lea.vmem %s432, 4 [#allocation2]
        %v606 = vld [vmem:[%s605] sm:$0x7]
        %v607 = vunpack.c.l.bf16 %v606
        %s608 = scalar_lea.vmem %s432, 8 [#allocation2]
        %v609 = vld [vmem:[%s608] sm:$0x7]
        %v610 = vunpack.c.l.bf16 %v609
        %s611 = scalar_lea.vmem %s432, 12 [#allocation2]
        %v612 = vld [vmem:[%s611] sm:$0x7]
        %v613 = vunpack.c.l.bf16 %v612
        %v615 = vrot.slane %v607, 2
        %v618 = vrot.slane %v610, 4
        %v621 = vrot.slane %v613, 6
        %vm623 = vcmask 1045504
        %v624 = vsel %vm623, %v604, %v615
        %vm625 = vcmask 1043456
        %v626 = vsel %vm625, %v615, %v618
        %vm627 = vcmask 1041408
        %v628 = vsel %vm627, %v618, %v621
        %v629 = vld [vmem:[%s4] sm:$0xff]
        %v630 = vld [vmem:[%s4 + $0x8] sm:$0xff]
        %v631 = vld [vmem:[%s4 + $0x10] sm:$0xff]
        %v632 = vld [vmem:[%s5] sm:$0xff]
        %v633 = vld [vmem:[%s5 + $0x8] sm:$0xff]
        %v634 = vld [vmem:[%s5 + $0x10] sm:$0xff]
        %636 = vset.pattern.permute.xlu0 0
        %637 = vperm.xlu0 %636, %v632
        %v638 = vpop.permute.xlu0 %637
        %641 = vset.pattern.permute.xlu0 0
        %642 = vperm.xlu0 %641, %v633
        %v643 = vpop.permute.xlu0 %642
        %646 = vset.pattern.permute.xlu0 0
        %647 = vperm.xlu0 %646, %v634
        %v648 = vpop.permute.xlu0 %647
        %vm650 = vcmask 195584
        %v652 = vsel %vm650, %v629, 0
        %v655 = vsel %vm650, %v630, 0
        %v658 = vsel %vm650, %v631, 0
        %660 = vmatprep.subr.mxu0 0.0
        %661 = vmatpush1.msra.mxu0 %v624
        %662 = vmatprep.subr.mxu0 0.0
        %663 = vmatpush1.msra.mxu0 %v626
        %664 = vmatprep.subr.mxu0 0.0
        %665 = vmatpush1.msra.mxu0 %v628
        %666 = vmatprep.subr.mxu0 0.0
        %667 = vmatpush1.msra.mxu0 0.0
        %668 = vmatprep.subr.mxu0 0.0
        %669 = vmatpush1.msra.mxu0 0.0
        %670 = vmatprep.subr.mxu0 0.0
        %671 = vmatpush1.msra.mxu0 0.0
        %672 = vmatprep.subr.mxu0 0.0
        %673 = vmatpush1.msra.mxu0 0.0
        %674 = vmatprep.subr.mxu0 0.0
        %675 = vmatpush1.msra.mxu0 0.0
        %676 = vmatprep.subr.mxu0 0.0
        %677 = vmatpush1.msra.mxu0 0.0
        %678 = vmatprep.subr.mxu0 0.0
        %679 = vmatpush1.msra.mxu0 0.0
        %680 = vmatprep.subr.mxu0 0.0
        %681 = vmatpush1.msra.mxu0 0.0
        %682 = vmatprep.subr.mxu0 0.0
        %683 = vmatpush1.msra.mxu0 0.0
        %684 = vmatprep.subr.mxu0 0.0
        %685 = vmatpush1.msra.mxu0 0.0
        %686 = vmatprep.subr.mxu0 0.0
        %687 = vmatpush1.msra.mxu0 0.0
        %688 = vmatprep.subr.mxu0 0.0
        %689 = vmatpush1.msra.mxu0 0.0
        %690 = vmatprep.subr.mxu0 0.0
        %691 = vmatpush1.msra.mxu0 0.0
        %692 = vmatprep.subr.mxu0 0.0
        %693 = vmatpush1.msra.mxu0 0.0
        %694 = vmatprep.subr.mxu0 0.0
        %695 = vmatpush1.msra.mxu0 0.0
        %696 = vmatprep.subr.mxu0 0.0
        %697 = vmatpush1.msra.mxu0 0.0
        %698 = vmatprep.subr.mxu0 0.0
        %699 = vmatpush1.msra.mxu0 0.0
        %700 = vmatprep.subr.mxu0 0.0
        %701 = vmatpush1.msra.mxu0 0.0
        %702 = vmatprep.subr.mxu0 0.0
        %703 = vmatpush1.msra.mxu0 0.0
        %704 = vmatprep.subr.mxu0 0.0
        %705 = vmatpush1.msra.mxu0 0.0
        %706 = vmatprep.subr.mxu0 0.0
        %707 = vmatpush1.msra.mxu0 0.0
        %708 = vmatprep.subr.mxu0 0.0
        %709 = vmatpush1.msra.mxu0 0.0
        %710 = vmatprep.subr.mxu0 0.0
        %711 = vmatpush1.msra.mxu0 0.0
        %712 = vmatprep.subr.mxu0 0.0
        %713 = vmatpush1.msra.mxu0 0.0
        %714 = vmatprep.subr.mxu0 0.0
        %715 = vmatpush1.msra.mxu0 0.0
        %716 = vmatprep.subr.mxu0 0.0
        %717 = vmatpush1.msra.mxu0 0.0
        %718 = vmatprep.subr.mxu0 0.0
        %719 = vmatpush1.msra.mxu0 0.0
        %720 = vmatprep.subr.mxu0 0.0
        %721 = vmatpush1.msra.mxu0 0.0
        %722 = vmatprep.subr.mxu0 0.0
        %723 = vmatpush1.msra.mxu0 0.0
        %724 = vmatprep.mubr.f32.mxu0 0.0
        %725 = vmatmul.mubr.f32.gmra.mrb[0].mxu0 %v652
        %v726 = vpop.f32.mrb[0].mxu0
        %v727 = vadd.f32 %v638, %v726
        %v728 = vpop.f32.mrb[0].mxu0
        %729 = vmatprep.mubr.f32.mxu0 0.0
        %730 = vmatmul.mubr.f32.gmra.mrb[0].mxu0 %v655
        %v731 = vpop.f32.mrb[0].mxu0
        %v732 = vadd.f32 %v643, %v731
        %v733 = vpop.f32.mrb[0].mxu0
        %734 = vmatprep.mubr.f32.mxu0 0.0
        %735 = vmatmul.mubr.f32.gmra.mrb[0].mxu0 %v658
        %v736 = vpop.f32.mrb[0].mxu0
        %v737 = vadd.f32 %v648, %v736
        %v738 = vpop.f32.mrb[0].mxu0
        %739 = vdwg.mxu0
        %v740 = vmax.f32 %v727, 0.0
        %v741 = vmax.f32 %v732, 0.0
        %v742 = vmax.f32 %v737, 0.0
        %v743 = vadd.f32 %v740, %v741
        %v744 = vadd.f32 %v743, %v742
        %v745 = vrot.slane %v744, 4
        %v746 = vadd.f32 %v744, %v745
        %v747 = vrot.slane %v746, 2
        %v748 = vadd.f32 %v746, %v747
        %v749 = vrot.slane %v748, 1
        %v750 = vadd.f32 %v748, %v749
        %v751 = vrcp.pop 24.0
        %v752 = vmul.f32 %v750, %v751
        %v753 = vsub.f32 %v740, %v752
        %v754 = vsub.f32 %v741, %v752
        %v755 = vsub.f32 %v742, %v752
        %v756 = vmul.f32 %v753, %v753
        %v757 = vmul.f32 %v754, %v754
        %v758 = vmul.f32 %v755, %v755
        %v759 = vadd.f32 %v756, %v757
        %v760 = vadd.f32 %v759, %v758
        %v761 = vrot.slane %v760, 4
        %v762 = vadd.f32 %v760, %v761
        %v763 = vrot.slane %v762, 2
        %v764 = vadd.f32 %v762, %v763
        %v765 = vrot.slane %v764, 1
        %v766 = vadd.f32 %v764, %v765
        %v767 = vmul.f32 %v766, %v751
        %v768 = vadd.f32 %v767, 1e-05
        %v769 = vrsqrt.pop %v768
        %v770 = vmul.f32 %v753, %v769
        %v771 = vmul.f32 %v754, %v769
        %v772 = vmul.f32 %v755, %v769
        %v773 = vld [vmem:[%s6] sm:$0xff]
        %v774 = vld [vmem:[%s6 + $0x8] sm:$0xff]
        %v775 = vld [vmem:[%s6 + $0x10] sm:$0xff]
        %777 = vset.pattern.permute.xlu0 0
        %778 = vperm.xlu0 %777, %v773
        %v779 = vpop.permute.xlu0 %778
        %782 = vset.pattern.permute.xlu0 0
        %783 = vperm.xlu0 %782, %v774
        %v784 = vpop.permute.xlu0 %783
        %787 = vset.pattern.permute.xlu0 0
        %788 = vperm.xlu0 %787, %v775
        %v789 = vpop.permute.xlu0 %788
        %v791 = vmul.f32 %v770, %v779
        %v792 = vmul.f32 %v771, %v784
        %v793 = vmul.f32 %v772, %v789
        %v794 = vld [vmem:[%s7] sm:$0xff]
        %v795 = vld [vmem:[%s7 + $0x8] sm:$0xff]
        %v796 = vld [vmem:[%s7 + $0x10] sm:$0xff]
        %798 = vset.pattern.permute.xlu0 0
        %799 = vperm.xlu0 %798, %v794
        %v800 = vpop.permute.xlu0 %799
        %803 = vset.pattern.permute.xlu0 0
        %804 = vperm.xlu0 %803, %v795
        %v805 = vpop.permute.xlu0 %804
        %808 = vset.pattern.permute.xlu0 0
        %809 = vperm.xlu0 %808, %v796
        %v810 = vpop.permute.xlu0 %809
        %v812 = vadd.f32 %v791, %v800
        %v813 = vadd.f32 %v792, %v805
        %v814 = vadd.f32 %v793, %v810
        %vm815 = vcmp.ge.f32.partialorder %v812, 0.0
        %vm816 = vcmp.ge.f32.partialorder %v813, 0.0
        %vm817 = vcmp.ge.f32.partialorder %v814, 0.0
        %v818 = vmul.f32 %v812, 0.25
        %v819 = vmul.f32 %v813, 0.25
        %v820 = vmul.f32 %v814, 0.25
        %v821 = vsel %vm815, %v812, %v818
        %v822 = vsel %vm816, %v813, %v819
        %v823 = vsel %vm817, %v814, %v820
        %v824 = vld [vmem:[%s8] sm:$0xff]
        %v825 = vld [vmem:[%s9] sm:$0xff]
        %827 = vset.pattern.permute.xlu0 0
        %828 = vperm.xlu0 %827, %v825
        %v829 = vpop.permute.xlu0 %828
        %vm831 = vcmask 392192
        %v833 = vsel %vm831, %v824, 0
        %835 = vmatprep.subr.mxu0 0.0
        %836 = vmatpush1.msra.mxu0 %v600
        %837 = vmatprep.subr.mxu0 0.0
        %838 = vmatpush1.msra.mxu0 %v601
        %839 = vmatprep.subr.mxu0 0.0
        %840 = vmatpush1.msra.mxu0 %v602
        %841 = vmatprep.subr.mxu0 0.0
        %842 = vmatpush1.msra.mxu0 %v821
        %843 = vmatprep.subr.mxu0 0.0
        %844 = vmatpush1.msra.mxu0 %v822
        %845 = vmatprep.subr.mxu0 0.0
        %846 = vmatpush1.msra.mxu0 %v823
        %847 = vmatprep.subr.mxu0 0.0
        %848 = vmatpush1.msra.mxu0 0.0
        %849 = vmatprep.subr.mxu0 0.0
        %850 = vmatpush1.msra.mxu0 0.0
        %851 = vmatprep.subr.mxu0 0.0
        %852 = vmatpush1.msra.mxu0 0.0
        %853 = vmatprep.subr.mxu0 0.0
        %854 = vmatpush1.msra.mxu0 0.0
        %855 = vmatprep.subr.mxu0 0.0
        %856 = vmatpush1.msra.mxu0 0.0
        %857 = vmatprep.subr.mxu0 0.0
        %858 = vmatpush1.msra.mxu0 0.0
        %859 = vmatprep.subr.mxu0 0.0
        %860 = vmatpush1.msra.mxu0 0.0
        %861 = vmatprep.subr.mxu0 0.0
        %862 = vmatpush1.msra.mxu0 0.0
        %863 = vmatprep.subr.mxu0 0.0
        %864 = vmatpush1.msra.mxu0 0.0
        %865 = vmatprep.subr.mxu0 0.0
        %866 = vmatpush1.msra.mxu0 0.0
        %867 = vmatprep.subr.mxu0 0.0
        %868 = vmatpush1.msra.mxu0 0.0
        %869 = vmatprep.subr.mxu0 0.0
        %870 = vmatpush1.msra.mxu0 0.0
        %871 = vmatprep.subr.mxu0 0.0
        %872 = vmatpush1.msra.mxu0 0.0
        %873 = vmatprep.subr.mxu0 0.0
        %874 = vmatpush1.msra.mxu0 0.0
        %875 = vmatprep.subr.mxu0 0.0
        %876 = vmatpush1.msra.mxu0 0.0
        %877 = vmatprep.subr.mxu0 0.0
        %878 = vmatpush1.msra.mxu0 0.0
        %879 = vmatprep.subr.mxu0 0.0
        %880 = vmatpush1.msra.mxu0 0.0
        %881 = vmatprep.subr.mxu0 0.0
        %882 = vmatpush1.msra.mxu0 0.0
        %883 = vmatprep.subr.mxu0 0.0
        %884 = vmatpush1.msra.mxu0 0.0
        %885 = vmatprep.subr.mxu0 0.0
        %886 = vmatpush1.msra.mxu0 0.0
        %887 = vmatprep.subr.mxu0 0.0
        %888 = vmatpush1.msra.mxu0 0.0
        %889 = vmatprep.subr.mxu0 0.0
        %890 = vmatpush1.msra.mxu0 0.0
        %891 = vmatprep.subr.mxu0 0.0
        %892 = vmatpush1.msra.mxu0 0.0
        %893 = vmatprep.subr.mxu0 0.0
        %894 = vmatpush1.msra.mxu0 0.0
        %895 = vmatprep.subr.mxu0 0.0
        %896 = vmatpush1.msra.mxu0 0.0
        %897 = vmatprep.subr.mxu0 0.0
        %898 = vmatpush1.msra.mxu0 0.0
        %899 = vmatprep.mubr.f32.mxu0 0.0
        %900 = vmatmul.mubr.f32.gmra.mrb[0].mxu0 %v833
        %v901 = vpop.f32.mrb[0].mxu0
        %v902 = vadd.f32 %v829, %v901
        %v903 = vpop.f32.mrb[0].mxu0
        %904 = vdwg.mxu0
        %vm905 = vcmp.ge.f32.partialorder %v902, 0.0
        %v906 = vmul.f32 %v902, 0.25
        %v907 = vsel %vm905, %v902, %v906
        %v908 = vrot.slane %v907, 4
        %v909 = vadd.f32 %v907, %v908
        %v910 = vrot.slane %v909, 2
        %v911 = vadd.f32 %v909, %v910
        %v912 = vrot.slane %v911, 1
        %v913 = vadd.f32 %v911, %v912
        %v914 = vrcp.pop 8.0
        %v915 = vmul.f32 %v913, %v914
        %v916 = vsub.f32 %v907, %v915
        %v917 = vmul.f32 %v916, %v916
        %v918 = vrot.slane %v917, 4
        %v919 = vadd.f32 %v917, %v918
        %v920 = vrot.slane %v919, 2
        %v921 = vadd.f32 %v919, %v920
        %v922 = vrot.slane %v921, 1
        %v923 = vadd.f32 %v921, %v922
        %v924 = vmul.f32 %v923, %v914
        %v925 = vadd.f32 %v924, 1e-05
        %v926 = vrsqrt.pop %v925
        %v927 = vmul.f32 %v916, %v926
        %v928 = vld [vmem:[%s10] sm:$0xff]
        %930 = vset.pattern.permute.xlu0 0
        %931 = vperm.xlu0 %930, %v928
        %v932 = vpop.permute.xlu0 %931
        %v934 = vmul.f32 %v927, %v932
        %v935 = vld [vmem:[%s11] sm:$0xff]
        %937 = vset.pattern.permute.xlu0 0
        %938 = vperm.xlu0 %937, %v935
        %v939 = vpop.permute.xlu0 %938
        %v941 = vadd.f32 %v934, %v939
        %v942 = vadd.f32 %v941, %v482
        %943 = vst [vmem:[%s481] sm:$0xff] %v942
        %p944 = scmp.lt.s32.totalorder %s23, 3
        %s945 = scalar_select %p944, %s23, 3
        %s946 = smul.addr %s945, 8
        %s947 = scalar_lea.vmem %s12, %s946
        // Predicated region
        $region110: #{channel_attention_tac.5} parent=104 // pred_check
          %p948 = pneg %p303
        $region111: #{channel_attention_tac.5} parent=104 // pred_check_branch
          %950 = sbr.rel (%p948) target = $region113
        $region112: #{channel_attention_tac.5} parent=104 // pred_region
          _
        $region113: #{channel_attention_tac.5} parent=104 // pred_fallthru
          _
      $region105: #{channel_attention_tac.5} parent=5 // pred_fallthru
        _
      %p951 = scmp.le.s32.totalorder 2, %s18
      // Predicated region
      $region114: #{channel_attention_tac.5} parent=5 // pred_check
        %p952 = pneg %p951
      $region115: #{channel_attention_tac.5} parent=5 // pred_check_branch
        %954 = sbr.rel (%p952) target = $region117
      $region116: #{channel_attention_tac.5} parent=5 // pred_region
        %s955 = ssub.s32 %s18, 2
        // Predicated region
        $region118: #{channel_attention_tac.5} parent=116 // pred_check
          %p956 = pneg %p309
        $region119: #{channel_attention_tac.5} parent=116 // pred_check_branch
          %958 = sbr.rel (%p956) target = $region121
        $region120: #{channel_attention_tac.5} parent=116 // pred_region
          %p959 = scmp.lt.s32.totalorder %s24, 3
          %s960 = scalar_select %p959, %s24, 3
          %s961 = smul.addr %s960, 8
          %s962 = scalar_lea.vmem %s12, %s961
        $region121: #{channel_attention_tac.5} parent=116 // pred_fallthru
          _
      $region117: #{channel_attention_tac.5} parent=5 // pred_fallthru
        _
    $region6: #{channel_attention_tac.5} parent=1 // loop_footer
      %s22 = sadd.s32 1, %s18
    $region7: #{channel_attention_tac.5} parent=1 // loop_footer_branch
      %17 = sbr.rel target = $region3
    $region8: #{channel_attention_tac.5} parent=1 // loop_exit
      _

// kernel: channel_attention_tac.3
$region0: #{channel_attention_tac.3}
  #allocation0 [shape = 'u32[]', space=smem, size = 0x4, offset = 0x4, fixed_abs, tag = 'smem constant byte address 0x4 - core index']
  #allocation1 [shape = 'u32[144,128]{1,0:T(1,128)}', space=vmem, size = 0x12000, scoped, tag = 'internal scratch']
  %s0 = inlined_call_operand.vmem [shape: f32[8,512], index: 0, kind: input, shape index: {}]
  %s1 = inlined_call_operand.vmem [shape: f32[24,8], index: 1, kind: input, shape index: {}]
  %s2 = inlined_call_operand.vmem [shape: f32[24,1], index: 2, kind: input, shape index: {}]
  %s3 = inlined_call_operand.vmem [shape: f32[128,24], index: 3, kind: input, shape index: {}]
  %s4 = inlined_call_operand.vmem [shape: f32[128,1], index: 4, kind: input, shape index: {}]
  %s5 = inlined_call_operand.vmem [shape: f32[128,1], index: 5, kind: input, shape index: {}]
  %s6 = inlined_call_operand.vmem [shape: f32[128,1], index: 6, kind: input, shape index: {}]
  %s7 = inlined_call_operand.vmem [shape: f32[24,24], index: 7, kind: input, shape index: {}]
  %s8 = inlined_call_operand.vmem [shape: f32[24,1], index: 8, kind: input, shape index: {}]
  %s9 = inlined_call_operand.vmem [shape: f32[24,1], index: 9, kind: input, shape index: {}]
  %s10 = inlined_call_operand.vmem [shape: f32[24,1], index: 10, kind: input, shape index: {}]
  %s11 = inlined_call_operand.vmem [shape: bf16[4,16,512], index: 11, kind: output, shape index: {0}]
  %s12 = inlined_call_operand.vmem [shape: bf16[4,16,512], index: 12, kind: output, shape index: {1}]
  %s13 = inlined_call_operand.vmem [shape: bf16[4,6,512], index: 13, kind: output, shape index: {2}]
  %14 = xla_tuple %s11, %s12, %s13
  %s15 = sld [smem:[#allocation0]]
  $region204: #{channel_attention_tac.3} parent=0
    _
  %s17 = ssub.s32 1, %s15
  %s18 = scalar_select 0, %s17, %s15
  $region1: #{channel_attention_tac.3} parent=0
    #allocation2 [shape = 'u8[32768]{0}', space=vmem, size = 0x8000, scoped, tag = 'output window, operand 0']
    #allocation3 [shape = 'u8[32768]{0}', space=vmem, size = 0x8000, scoped, tag = 'output window, operand 1']
    #allocation4 [shape = 'u8[16384]{0}', space=vmem, size = 0x4000, scoped, tag = 'output window, operand 2']
    loop: start=0, step=1, limit=6
    $region2: #{channel_attention_tac.3} parent=1 // loop_pre_header
      _
    $region3: #{channel_attention_tac.3} parent=1 // loop_header
      %s20 = sphi 0, %s24
      %p21 = scmp.ge.s32.totalorder %s20, 6
      %s30 = sphi 0, %s32
      %s33 = sphi 0, %s30
      %s34 = sphi 0, %s33
      %s50 = sphi 0, %s34
      %s54 = sphi 0, %s54
      %s56 = sphi 0, %s54
      %s57 = sphi 0, %s56
      %s71 = sphi 0, %s57
      %s75 = sphi 0, %s75
      %s77 = sphi 0, %s75
      %s78 = sphi 0, %s77
      %s92 = sphi 0, %s78
      %s96 = sphi 0, %s96
      %s98 = sphi 0, %s96
      %s99 = sphi 0, %s98
      %s113 = sphi 0, %s99
      %s117 = sphi 0, %s117
      %s119 = sphi 0, %s117
      %s120 = sphi 0, %s119
      %s134 = sphi 0, %s120
      %s138 = sphi 0, %s138
      %s140 = sphi 0, %s138
      %s141 = sphi 0, %s140
      %s155 = sphi 0, %s141
      %s159 = sphi 0, %s159
      %s161 = sphi 0, %s159
      %s162 = sphi 0, %s161
      %s176 = sphi 0, %s162
      %s180 = sphi 0, %s180
      %s182 = sphi 0, %s180
      %s183 = sphi 0, %s182
      %s197 = sphi 0, %s183
      %s201 = sphi 0, %s201
      %s203 = sphi 0, %s201
      %s204 = sphi 0, %s203
      %s218 = sphi 0, %s204
      %s222 = sphi 0, %s222
      %s224 = sphi 0, %s222
      %s225 = sphi 0, %s224
      %s239 = sphi 0, %s225
      %s243 = sphi 0, %s243
      %s245 = sphi 0, %s243
      %s246 = sphi 0, %s245
      %s260 = sphi 0, %s246
      %s266 = sphi 0, %s268
      %s269 = sphi 0, %s266
      %s270 = sphi 0, %s269
      %s286 = sphi 0, %s270
      %s292 = sphi 0, %s294
      %s295 = sphi 0, %s292
      %s296 = sphi 0, %s295
      %s312 = sphi 0, %s296
      %s318 = sphi 0, %s320
      %s321 = sphi 0, %s318
      %s322 = sphi 0, %s321
      %s338 = sphi 0, %s322
    $region4: #{channel_attention_tac.3} parent=1 // loop_header_branch
      %23 = sbr.rel (%p21) target = $region8
    $region5: #{channel_attention_tac.3} parent=1 // loop_body
      %s25 = ssub.s32 %s20, 1
      %s26 = ssub.s32 %s20, 2
      %s27 = sadd.s32 %s20, 1
      %s28 = ssub.s32 %s20, %s27
      %p29 = scmp.eq.s32.totalorder %s28, 0
      %s31 = sadd.s32 %s30, 1
      %s32 = scalar_select %p29, %s30, %s31
      %p35 = pneg %p29
      %p36 = scmp.eq.s32.totalorder %s20, 3
      %p37 = por %p35, %p36
      %p38 = scmp.ne.s32.totalorder %s30, %s33
      %p39 = scmp.eq.s32.totalorder %s20, 0
      %p40 = por %p38, %p39
      %p41 = scmp.ne.s32.totalorder %s30, %s33
      %p42 = scmp.eq.s32.totalorder %s25, 3
      %p43 = por %p41, %p42
      %p44 = scmp.ne.s32.totalorder %s33, %s34
      %p45 = scmp.eq.s32.totalorder %s25, 0
      %p46 = por %p44, %p45
      %p47 = scmp.ne.s32.totalorder %s33, %s34
      %p48 = scmp.eq.s32.totalorder %s26, 3
      %p49 = por %p47, %p48
      %p51 = scmp.ne.s32.totalorder %s34, %s50
      %p52 = scmp.eq.s32.totalorder %s26, 0
      %p53 = por %p51, %p52
      %s55 = sadd.s32 %s54, 1
      %p58 = scmp.eq.s32.totalorder %s20, 3
      %p59 = scmp.ne.s32.totalorder %s54, %s56
      %p60 = scmp.eq.s32.totalorder %s20, 0
      %p61 = por %p59, %p60
      %p62 = scmp.ne.s32.totalorder %s54, %s56
      %p63 = scmp.eq.s32.totalorder %s25, 3
      %p64 = por %p62, %p63
      %p65 = scmp.ne.s32.totalorder %s56, %s57
      %p66 = scmp.eq.s32.totalorder %s25, 0
      %p67 = por %p65, %p66
      %p68 = scmp.ne.s32.totalorder %s56, %s57
      %p69 = scmp.eq.s32.totalorder %s26, 3
      %p70 = por %p68, %p69
      %p72 = scmp.ne.s32.totalorder %s57, %s71
      %p73 = scmp.eq.s32.totalorder %s26, 0
      %p74 = por %p72, %p73
      %s76 = sadd.s32 %s75, 1
      %p79 = scmp.eq.s32.totalorder %s20, 3
      %p80 = scmp.ne.s32.totalorder %s75, %s77
      %p81 = scmp.eq.s32.totalorder %s20, 0
      %p82 = por %p80, %p81
      %p83 = scmp.ne.s32.totalorder %s75, %s77
      %p84 = scmp.eq.s32.totalorder %s25, 3
      %p85 = por %p83, %p84
      %p86 = scmp.ne.s32.totalorder %s77, %s78
      %p87 = scmp.eq.s32.totalorder %s25, 0
      %p88 = por %p86, %p87
      %p89 = scmp.ne.s32.totalorder %s77, %s78
      %p90 = scmp.eq.s32.totalorder %s26, 3
      %p91 = por %p89, %p90
      %p93 = scmp.ne.s32.totalorder %s78, %s92
      %p94 = scmp.eq.s32.totalorder %s26, 0
      %p95 = por %p93, %p94
      %s97 = sadd.s32 %s96, 1
      %p100 = scmp.eq.s32.totalorder %s20, 3
      %p101 = scmp.ne.s32.totalorder %s96, %s98
      %p102 = scmp.eq.s32.totalorder %s20, 0
      %p103 = por %p101, %p102
      %p104 = scmp.ne.s32.totalorder %s96, %s98
      %p105 = scmp.eq.s32.totalorder %s25, 3
      %p106 = por %p104, %p105
      %p107 = scmp.ne.s32.totalorder %s98, %s99
      %p108 = scmp.eq.s32.totalorder %s25, 0
      %p109 = por %p107, %p108
      %p110 = scmp.ne.s32.totalorder %s98, %s99
      %p111 = scmp.eq.s32.totalorder %s26, 3
      %p112 = por %p110, %p111
      %p114 = scmp.ne.s32.totalorder %s99, %s113
      %p115 = scmp.eq.s32.totalorder %s26, 0
      %p116 = por %p114, %p115
      %s118 = sadd.s32 %s117, 1
      %p121 = scmp.eq.s32.totalorder %s20, 3
      %p122 = scmp.ne.s32.totalorder %s117, %s119
      %p123 = scmp.eq.s32.totalorder %s20, 0
      %p124 = por %p122, %p123
      %p125 = scmp.ne.s32.totalorder %s117, %s119
      %p126 = scmp.eq.s32.totalorder %s25, 3
      %p127 = por %p125, %p126
      %p128 = scmp.ne.s32.totalorder %s119, %s120
      %p129 = scmp.eq.s32.totalorder %s25, 0
      %p130 = por %p128, %p129
      %p131 = scmp.ne.s32.totalorder %s119, %s120
      %p132 = scmp.eq.s32.totalorder %s26, 3
      %p133 = por %p131, %p132
      %p135 = scmp.ne.s32.totalorder %s120, %s134
      %p136 = scmp.eq.s32.totalorder %s26, 0
      %p137 = por %p135, %p136
      %s139 = sadd.s32 %s138, 1
      %p142 = scmp.eq.s32.totalorder %s20, 3
      %p143 = scmp.ne.s32.totalorder %s138, %s140
      %p144 = scmp.eq.s32.totalorder %s20, 0
      %p145 = por %p143, %p144
      %p146 = scmp.ne.s32.totalorder %s138, %s140
      %p147 = scmp.eq.s32.totalorder %s25, 3
      %p148 = por %p146, %p147
      %p149 = scmp.ne.s32.totalorder %s140, %s141
      %p150 = scmp.eq.s32.totalorder %s25, 0
      %p151 = por %p149, %p150
      %p152 = scmp.ne.s32.totalorder %s140, %s141
      %p153 = scmp.eq.s32.totalorder %s26, 3
      %p154 = por %p152, %p153
      %p156 = scmp.ne.s32.totalorder %s141, %s155
      %p157 = scmp.eq.s32.totalorder %s26, 0
      %p158 = por %p156, %p157
      %s160 = sadd.s32 %s159, 1
      %p163 = scmp.eq.s32.totalorder %s20, 3
      %p164 = scmp.ne.s32.totalorder %s159, %s161
      %p165 = scmp.eq.s32.totalorder %s20, 0
      %p166 = por %p164, %p165
      %p167 = scmp.ne.s32.totalorder %s159, %s161
      %p168 = scmp.eq.s32.totalorder %s25, 3
      %p169 = por %p167, %p168
      %p170 = scmp.ne.s32.totalorder %s161, %s162
      %p171 = scmp.eq.s32.totalorder %s25, 0
      %p172 = por %p170, %p171
      %p173 = scmp.ne.s32.totalorder %s161, %s162
      %p174 = scmp.eq.s32.totalorder %s26, 3
      %p175 = por %p173, %p174
      %p177 = scmp.ne.s32.totalorder %s162, %s176
      %p178 = scmp.eq.s32.totalorder %s26, 0
      %p179 = por %p177, %p178
      %s181 = sadd.s32 %s180, 1
      %p184 = scmp.eq.s32.totalorder %s20, 3
      %p185 = scmp.ne.s32.totalorder %s180, %s182
      %p186 = scmp.eq.s32.totalorder %s20, 0
      %p187 = por %p185, %p186
      %p188 = scmp.ne.s32.totalorder %s180, %s182
      %p189 = scmp.eq.s32.totalorder %s25, 3
      %p190 = por %p188, %p189
      %p191 = scmp.ne.s32.totalorder %s182, %s183
      %p192 = scmp.eq.s32.totalorder %s25, 0
      %p193 = por %p191, %p192
      %p194 = scmp.ne.s32.totalorder %s182, %s183
      %p195 = scmp.eq.s32.totalorder %s26, 3
      %p196 = por %p194, %p195
      %p198 = scmp.ne.s32.totalorder %s183, %s197
      %p199 = scmp.eq.s32.totalorder %s26, 0
      %p200 = por %p198, %p199
      %s202 = sadd.s32 %s201, 1
      %p205 = scmp.eq.s32.totalorder %s20, 3
      %p206 = scmp.ne.s32.totalorder %s201, %s203
      %p207 = scmp.eq.s32.totalorder %s20, 0
      %p208 = por %p206, %p207
      %p209 = scmp.ne.s32.totalorder %s201, %s203
      %p210 = scmp.eq.s32.totalorder %s25, 3
      %p211 = por %p209, %p210
      %p212 = scmp.ne.s32.totalorder %s203, %s204
      %p213 = scmp.eq.s32.totalorder %s25, 0
      %p214 = por %p212, %p213
      %p215 = scmp.ne.s32.totalorder %s203, %s204
      %p216 = scmp.eq.s32.totalorder %s26, 3
      %p217 = por %p215, %p216
      %p219 = scmp.ne.s32.totalorder %s204, %s218
      %p220 = scmp.eq.s32.totalorder %s26, 0
      %p221 = por %p219, %p220
      %s223 = sadd.s32 %s222, 1
      %p226 = scmp.eq.s32.totalorder %s20, 3
      %p227 = scmp.ne.s32.totalorder %s222, %s224
      %p228 = scmp.eq.s32.totalorder %s20, 0
      %p229 = por %p227, %p228
      %p230 = scmp.ne.s32.totalorder %s222, %s224
      %p231 = scmp.eq.s32.totalorder %s25, 3
      %p232 = por %p230, %p231
      %p233 = scmp.ne.s32.totalorder %s224, %s225
      %p234 = scmp.eq.s32.totalorder %s25, 0
      %p235 = por %p233, %p234
      %p236 = scmp.ne.s32.totalorder %s224, %s225
      %p237 = scmp.eq.s32.totalorder %s26, 3
      %p238 = por %p236, %p237
      %p240 = scmp.ne.s32.totalorder %s225, %s239
      %p241 = scmp.eq.s32.totalorder %s26, 0
      %p242 = por %p240, %p241
      %s244 = sadd.s32 %s243, 1
      %p247 = scmp.eq.s32.totalorder %s20, 3
      %p248 = scmp.ne.s32.totalorder %s243, %s245
      %p249 = scmp.eq.s32.totalorder %s20, 0
      %p250 = por %p248, %p249
      %p251 = scmp.ne.s32.totalorder %s243, %s245
      %p252 = scmp.eq.s32.totalorder %s25, 3
      %p253 = por %p251, %p252
      %p254 = scmp.ne.s32.totalorder %s245, %s246
      %p255 = scmp.eq.s32.totalorder %s25, 0
      %p256 = por %p254, %p255
      %p257 = scmp.ne.s32.totalorder %s245, %s246
      %p258 = scmp.eq.s32.totalorder %s26, 3
      %p259 = por %p257, %p258
      %p261 = scmp.ne.s32.totalorder %s246, %s260
      %p262 = scmp.eq.s32.totalorder %s26, 0
      %p263 = por %p261, %p262
      %s264 = ssub.s32 %s20, %s27
      %p265 = scmp.eq.s32.totalorder %s264, 0
      %s267 = sadd.s32 %s266, 1
      %s268 = scalar_select %p265, %s266, %s267
      %p271 = pneg %p265
      %p272 = scmp.eq.s32.totalorder %s20, 3
      %p273 = por %p271, %p272
      %p274 = scmp.ne.s32.totalorder %s266, %s269
      %p275 = scmp.eq.s32.totalorder %s20, 0
      %p276 = por %p274, %p275
      %p277 = scmp.ne.s32.totalorder %s266, %s269
      %p278 = scmp.eq.s32.totalorder %s25, 3
      %p279 = por %p277, %p278
      %p280 = scmp.ne.s32.totalorder %s269, %s270
      %p281 = scmp.eq.s32.totalorder %s25, 0
      %p282 = por %p280, %p281
      %p283 = scmp.ne.s32.totalorder %s269, %s270
      %p284 = scmp.eq.s32.totalorder %s26, 3
      %p285 = por %p283, %p284
      %p287 = scmp.ne.s32.totalorder %s270, %s286
      %p288 = scmp.eq.s32.totalorder %s26, 0
      %p289 = por %p287, %p288
      %s290 = ssub.s32 %s20, %s27
      %p291 = scmp.eq.s32.totalorder %s290, 0
      %s293 = sadd.s32 %s292, 1
      %s294 = scalar_select %p291, %s292, %s293
      %p297 = pneg %p291
      %p298 = scmp.eq.s32.totalorder %s20, 3
      %p299 = por %p297, %p298
      %p300 = scmp.ne.s32.totalorder %s292, %s295
      %p301 = scmp.eq.s32.totalorder %s20, 0
      %p302 = por %p300, %p301
      %p303 = scmp.ne.s32.totalorder %s292, %s295
      %p304 = scmp.eq.s32.totalorder %s25, 3
      %p305 = por %p303, %p304
      %p306 = scmp.ne.s32.totalorder %s295, %s296
      %p307 = scmp.eq.s32.totalorder %s25, 0
      %p308 = por %p306, %p307
      %p309 = scmp.ne.s32.totalorder %s295, %s296
      %p310 = scmp.eq.s32.totalorder %s26, 3
      %p311 = por %p309, %p310
      %p313 = scmp.ne.s32.totalorder %s296, %s312
      %p314 = scmp.eq.s32.totalorder %s26, 0
      %p315 = por %p313, %p314
      %s316 = ssub.s32 %s20, %s27
      %p317 = scmp.eq.s32.totalorder %s316, 0
      %s319 = sadd.s32 %s318, 1
      %s320 = scalar_select %p317, %s318, %s319
      %p323 = pneg %p317
      %p324 = scmp.eq.s32.totalorder %s20, 3
      %p325 = por %p323, %p324
      %p326 = scmp.ne.s32.totalorder %s318, %s321
      %p327 = scmp.eq.s32.totalorder %s20, 0
      %p328 = por %p326, %p327
      %p329 = scmp.ne.s32.totalorder %s318, %s321
      %p330 = scmp.eq.s32.totalorder %s25, 3
      %p331 = por %p329, %p330
      %p332 = scmp.ne.s32.totalorder %s321, %s322
      %p333 = scmp.eq.s32.totalorder %s25, 0
      %p334 = por %p332, %p333
      %p335 = scmp.ne.s32.totalorder %s321, %s322
      %p336 = scmp.eq.s32.totalorder %s26, 3
      %p337 = por %p335, %p336
      %p339 = scmp.ne.s32.totalorder %s322, %s338
      %p340 = scmp.eq.s32.totalorder %s26, 0
      %p341 = por %p339, %p340
      %p342 = scmp.le.s32.totalorder 1, %s20
      %p343 = scmp.lt.s32.totalorder %s20, 5
      %p344 = pnand %p342, %p343
      %p345 = pneg %p344
      // Predicated region
      $region9: #{channel_attention_tac.3} parent=5 // pred_check
        _
      $region10: #{channel_attention_tac.3} parent=5 // pred_check_branch
        %347 = sbr.rel (%p344) target = $region12
      $region11: #{channel_attention_tac.3} parent=5 // pred_region
        %s348 = ssub.s32 %s20, 1
        // Predicated region
        $region13: #{channel_attention_tac.3} parent=11 // pred_check
          %p349 = pneg %p67
        $region14: #{channel_attention_tac.3} parent=11 // pred_check_branch
          %351 = sbr.rel (%p349) target = $region16
        $region15: #{channel_attention_tac.3} parent=11 // pred_region
          _
        $region16: #{channel_attention_tac.3} parent=11 // pred_fallthru
          _
        // Predicated region
        $region17: #{channel_attention_tac.3} parent=11 // pred_check
          %p352 = pneg %p88
        $region18: #{channel_attention_tac.3} parent=11 // pred_check_branch
          %354 = sbr.rel (%p352) target = $region20
        $region19: #{channel_attention_tac.3} parent=11 // pred_region
          _
        $region20: #{channel_attention_tac.3} parent=11 // pred_fallthru
          _
        // Predicated region
        $region21: #{channel_attention_tac.3} parent=11 // pred_check
          %p355 = pneg %p109
        $region22: #{channel_attention_tac.3} parent=11 // pred_check_branch
          %357 = sbr.rel (%p355) target = $region24
        $region23: #{channel_attention_tac.3} parent=11 // pred_region
          _
        $region24: #{channel_attention_tac.3} parent=11 // pred_fallthru
          _
        // Predicated region
        $region25: #{channel_attention_tac.3} parent=11 // pred_check
          %p358 = pneg %p130
        $region26: #{channel_attention_tac.3} parent=11 // pred_check_branch
          %360 = sbr.rel (%p358) target = $region28
        $region27: #{channel_attention_tac.3} parent=11 // pred_region
          _
        $region28: #{channel_attention_tac.3} parent=11 // pred_fallthru
          _
        // Predicated region
        $region29: #{channel_attention_tac.3} parent=11 // pred_check
          %p361 = pneg %p151
        $region30: #{channel_attention_tac.3} parent=11 // pred_check_branch
          %363 = sbr.rel (%p361) target = $region32
        $region31: #{channel_attention_tac.3} parent=11 // pred_region
          _
        $region32: #{channel_attention_tac.3} parent=11 // pred_fallthru
          _
        // Predicated region
        $region33: #{channel_attention_tac.3} parent=11 // pred_check
          %p364 = pneg %p172
        $region34: #{channel_attention_tac.3} parent=11 // pred_check_branch
          %366 = sbr.rel (%p364) target = $region36
        $region35: #{channel_attention_tac.3} parent=11 // pred_region
          _
        $region36: #{channel_attention_tac.3} parent=11 // pred_fallthru
          _
        // Predicated region
        $region37: #{channel_attention_tac.3} parent=11 // pred_check
          %p367 = pneg %p193
        $region38: #{channel_attention_tac.3} parent=11 // pred_check_branch
          %369 = sbr.rel (%p367) target = $region40
        $region39: #{channel_attention_tac.3} parent=11 // pred_region
          _
        $region40: #{channel_attention_tac.3} parent=11 // pred_fallthru
          _
        // Predicated region
        $region41: #{channel_attention_tac.3} parent=11 // pred_check
          %p370 = pneg %p214
        $region42: #{channel_attention_tac.3} parent=11 // pred_check_branch
          %372 = sbr.rel (%p370) target = $region44
        $region43: #{channel_attention_tac.3} parent=11 // pred_region
          _
        $region44: #{channel_attention_tac.3} parent=11 // pred_fallthru
          _
        // Predicated region
        $region45: #{channel_attention_tac.3} parent=11 // pred_check
          %p373 = pneg %p235
        $region46: #{channel_attention_tac.3} parent=11 // pred_check_branch
          %375 = sbr.rel (%p373) target = $region48
        $region47: #{channel_attention_tac.3} parent=11 // pred_region
          _
        $region48: #{channel_attention_tac.3} parent=11 // pred_fallthru
          _
        // Predicated region
        $region49: #{channel_attention_tac.3} parent=11 // pred_check
          %p376 = pneg %p256
        $region50: #{channel_attention_tac.3} parent=11 // pred_check_branch
          %378 = sbr.rel (%p376) target = $region52
        $region51: #{channel_attention_tac.3} parent=11 // pred_region
          _
        $region52: #{channel_attention_tac.3} parent=11 // pred_fallthru
          _
      $region12: #{channel_attention_tac.3} parent=5 // pred_fallthru
        _
      %p379 = scmp.lt.s32.totalorder %s20, 4
      // Predicated region
      $region53: #{channel_attention_tac.3} parent=5 // pred_check
        %p380 = pneg %p379
      $region54: #{channel_attention_tac.3} parent=5 // pred_check_branch
        %382 = sbr.rel (%p380) target = $region56
      $region55: #{channel_attention_tac.3} parent=5 // pred_region
        // Predicated region
        $region57: #{channel_attention_tac.3} parent=55 // pred_check
          %p383 = pneg %p40
        $region58: #{channel_attention_tac.3} parent=55 // pred_check_branch
          %385 = sbr.rel (%p383) target = $region60
        $region59: #{channel_attention_tac.3} parent=55 // pred_region
          %p386 = scmp.lt.s32.totalorder %s20, 3
          %s387 = scalar_select %p386, %s20, 3
          %s388 = smul.addr %s387, 8
          %s389 = scalar_lea.vmem %s0, %s388
        $region60: #{channel_attention_tac.3} parent=55 // pred_fallthru
          _
      $region56: #{channel_attention_tac.3} parent=5 // pred_fallthru
        _
      %p390 = scmp.le.s32.totalorder 1, %s20
      %p391 = scmp.lt.s32.totalorder %s20, 5
      %p392 = pnand %p390, %p391
      %p393 = pneg %p392
      // Predicated region
      $region61: #{channel_attention_tac.3} parent=5 // pred_check
        _
      $region62: #{channel_attention_tac.3} parent=5 // pred_check_branch
        %395 = sbr.rel (%p392) target = $region64
      $region63: #{channel_attention_tac.3} parent=5 // pred_region
        %s396 = ssub.s32 %s20, 1
        %p397 = scmp.lt.s32.totalorder %s25, 3
        %s398 = scalar_select %p397, %s25, 3
        %s399 = smul.addr %s398, 8
        %s400 = scalar_lea.vmem %s0, %s399
        %p401 = pneg %p46
        %p402 = pneg %p43
        %p403 = pneg %p67
        %p404 = pneg %p64
        %p405 = pneg %p88
        %p406 = pneg %p85
        %p407 = pneg %p109
        %p408 = pneg %p106
        %p409 = pneg %p130
        %p410 = pneg %p127
        %p411 = pneg %p151
        %p412 = pneg %p148
        %p413 = pneg %p172
        %p414 = pneg %p169
        %p415 = pneg %p193
        %p416 = pneg %p190
        %p417 = pneg %p214
        %p418 = pneg %p211
        %p419 = pneg %p235
        %p420 = pneg %p232
        %p421 = pneg %p256
        %p422 = pneg %p253
        %p423 = pneg %p282
        %p424 = pneg %p279
        %s425 = sand.u32 %s269, 1
        %s426 = sand.u32 %s269, 1
        %s427 = smul.addr %s426, 32
        %s428 = scalar_lea.vmem [#allocation2], %s427
        %p429 = pneg %p308
        %p430 = pneg %p305
        %s431 = sand.u32 %s295, 1
        %s432 = sand.u32 %s295, 1
        %s433 = smul.addr %s432, 32
        %s434 = scalar_lea.vmem [#allocation3], %s433
        %p435 = pneg %p334
        %p436 = pneg %p331
        %s437 = sand.u32 %s321, 1
        %s438 = sand.u32 %s321, 1
        %s439 = smul.addr %s438, 16
        %s440 = scalar_lea.vmem [#allocation4], %s439
        %p441 = scmp.lt.s32.totalorder %s25, 3
        %s442 = scalar_select %p441, %s25, 3
        %s443 = smul.addr %s442, 8
        %s444 = scalar_lea.vmem %s0, %s443
        %v445 = vld [vmem:[%s444] sm:$0xff]
        %v446 = vld [vmem:[%s1] sm:$0xff]
        %v447 = vld [vmem:[%s1 + $0x8] sm:$0xff]
        %v448 = vld [vmem:[%s1 + $0x10] sm:$0xff]
        %v449 = vld [vmem:[%s2] sm:$0xff]
        %v450 = vld [vmem:[%s2 + $0x8] sm:$0xff]
        %v451 = vld [vmem:[%s2 + $0x10] sm:$0xff]
        %453 = vset.pattern.permute.xlu0 0
        %454 = vperm.xlu0 %453, %v449
        %v455 = vpop.permute.xlu0 %454
        %458 = vset.pattern.permute.xlu0 0
        %459 = vperm.xlu0 %458, %v450
        %v460 = vpop.permute.xlu0 %459
        %463 = vset.pattern.permute.xlu0 0
        %464 = vperm.xlu0 %463, %v451
        %v465 = vpop.permute.xlu0 %464
        %vm467 = vcmask 64512
        %v469 = vsel %vm467, %v446, 0
        %v472 = vsel %vm467, %v447, 0
        %v475 = vsel %vm467, %v448, 0
        %477 = vmatprep.subr.mxu0 0.0
        %478 = vmatpush1.msra.mxu0 %v445
        %479 = vmatprep.subr.mxu0 0.0
        %480 = vmatpush1.msra.mxu0 0.0
        %481 = vmatprep.subr.mxu0 0.0
        %482 = vmatpush1.msra.mxu0 0.0
        %483 = vmatprep.subr.mxu0 0.0
        %484 = vmatpush1.msra.mxu0 0.0
        %485 = vmatprep.subr.mxu0 0.0
        %486 = vmatpush1.msra.mxu0 0.0
        %487 = vmatprep.subr.mxu0 0.0
        %488 = vmatpush1.msra.mxu0 0.0
        %489 = vmatprep.subr.mxu0 0.0
        %490 = vmatpush1.msra.mxu0 0.0
        %491 = vmatprep.subr.mxu0 0.0
        %492 = vmatpush1.msra.mxu0 0.0
        %493 = vmatprep.subr.mxu0 0.0
        %494 = vmatpush1.msra.mxu0 0.0
        %495 = vmatprep.subr.mxu0 0.0
        %496 = vmatpush1.msra.mxu0 0.0
        %497 = vmatprep.subr.mxu0 0.0
        %498 = vmatpush1.msra.mxu0 0.0
        %499 = vmatprep.subr.mxu0 0.0
        %500 = vmatpush1.msra.mxu0 0.0
        %501 = vmatprep.subr.mxu0 0.0
        %502 = vmatpush1.msra.mxu0 0.0
        %503 = vmatprep.subr.mxu0 0.0
        %504 = vmatpush1.msra.mxu0 0.0
        %505 = vmatprep.subr.mxu0 0.0
        %506 = vmatpush1.msra.mxu0 0.0
        %507 = vmatprep.subr.mxu0 0.0
        %508 = vmatpush1.msra.mxu0 0.0
        %509 = vmatprep.subr.mxu0 0.0
        %510 = vmatpush1.msra.mxu0 0.0
        %511 = vmatprep.subr.mxu0 0.0
        %512 = vmatpush1.msra.mxu0 0.0
        %513 = vmatprep.subr.mxu0 0.0
        %514 = vmatpush1.msra.mxu0 0.0
        %515 = vmatprep.subr.mxu0 0.0
        %516 = vmatpush1.msra.mxu0 0.0
        %517 = vmatprep.subr.mxu0 0.0
        %518 = vmatpush1.msra.mxu0 0.0
        %519 = vmatprep.subr.mxu0 0.0
        %520 = vmatpush1.msra.mxu0 0.0
        %521 = vmatprep.subr.mxu0 0.0
        %522 = vmatpush1.msra.mxu0 0.0
        %523 = vmatprep.subr.mxu0 0.0
        %524 = vmatpush1.msra.mxu0 0.0
        %525 = vmatprep.subr.mxu0 0.0
        %526 = vmatpush1.msra.mxu0 0.0
        %527 = vmatprep.subr.mxu0 0.0
        %528 = vmatpush1.msra.mxu0 0.0
        %529 = vmatprep.subr.mxu0 0.0
        %530 = vmatpush1.msra.mxu0 0.0
        %531 = vmatprep.subr.mxu0 0.0
        %532 = vmatpush1.msra.mxu0 0.0
        %533 = vmatprep.subr.mxu0 0.0
        %534 = vmatpush1.msra.mxu0 0.0
        %535 = vmatprep.subr.mxu0 0.0
        %536 = vmatpush1.msra.mxu0 0.0
        %537 = vmatprep.subr.mxu0 0.0
        %538 = vmatpush1.msra.mxu0 0.0
        %539 = vmatprep.subr.mxu0 0.0
        %540 = vmatpush1.msra.mxu0 0.0
        %541 = vmatprep.mubr.f32.mxu0 0.0
        %542 = vmatmul.mubr.f32.gmra.mrb[0].mxu0 %v469
        %v543 = vpop.f32.mrb[0].mxu0
        %v544 = vadd.f32 %v455, %v543
        %v545 = vpop.f32.mrb[0].mxu0
        %546 = vmatprep.mubr.f32.mxu0 0.0
        %547 = vmatmul.mubr.f32.gmra.mrb[0].mxu0 %v472
        %v548 = vpop.f32.mrb[0].mxu0
        %v549 = vadd.f32 %v460, %v548
        %v550 = vpop.f32.mrb[0].mxu0
        %551 = vmatprep.mubr.f32.mxu0 0.0
        %552 = vmatmul.mubr.f32.gmra.mrb[0].mxu0 %v475
        %v553 = vpop.f32.mrb[0].mxu0
        %v554 = vadd.f32 %v465, %v553
        %v555 = vpop.f32.mrb[0].mxu0
        %556 = vdwg.mxu0
        %vm557 = vcmp.ge.f32.partialorder %v544, 0.0
        %vm558 = vcmp.ge.f32.partialorder %v549, 0.0
        %vm559 = vcmp.ge.f32.partialorder %v554, 0.0
        %v560 = vmul.f32 %v544, 0.25
        %v561 = vmul.f32 %v549, 0.25
        %v562 = vmul.f32 %v554, 0.25
        %v563 = vsel %vm557, %v544, %v560
        %v564 = vsel %vm558, %v549, %v561
        %v565 = vsel %vm559, %v554, %v562
        %v566 = vld [vmem:[%s3] sm:$0xff]
        %v567 = vld [vmem:[%s3 + $0x8] sm:$0xff]
        %v568 = vld [vmem:[%s3 + $0x10] sm:$0xff]
        %v569 = vld [vmem:[%s3 + $0x18] sm:$0xff]
        %v570 = vld [vmem:[%s3 + $0x20] sm:$0xff]
        %v571 = vld [vmem:[%s3 + $0x28] sm:$0xff]
        %v572 = vld [vmem:[%s3 + $0x30] sm:$0xff]
        %v573 = vld [vmem:[%s3 + $0x38] sm:$0xff]
        %v574 = vld [vmem:[%s3 + $0x40] sm:$0xff]
        %v575 = vld [vmem:[%s3 + $0x48] sm:$0xff]
        %v576 = vld [vmem:[%s3 + $0x50] sm:$0xff]
        %v577 = vld [vmem:[%s3 + $0x58] sm:$0xff]
        %v578 = vld [vmem:[%s3 + $0x60] sm:$0xff]
        %v579 = vld [vmem:[%s3 + $0x68] sm:$0xff]
        %v580 = vld [vmem:[%s3 + $0x70] sm:$0xff]
        %v581 = vld [vmem:[%s3 + $0x78] sm:$0xff]
        %v582 = vld [vmem:[%s4] sm:$0xff]
        %v583 = vld [vmem:[%s4 + $0x8] sm:$0xff]
        %v584 = vld [vmem:[%s4 + $0x10] sm:$0xff]
        %v585 = vld [vmem:[%s4 + $0x18] sm:$0xff]
        %v586 = vld [vmem:[%s4 + $0x20] sm:$0xff]
        %v587 = vld [vmem:[%s4 + $0x28] sm:$0xff]
        %v588 = vld [vmem:[%s4 + $0x30] sm:$0xff]
        %v589 = vld [vmem:[%s4 + $0x38] sm:$0xff]
        %v590 = vld [vmem:[%s4 + $0x40] sm:$0xff]
        %v591 = vld [vmem:[%s4 + $0x48] sm:$0xff]
        %v592 = vld [vmem:[%s4 + $0x50] sm:$0xff]
        %v593 = vld [vmem:[%s4 + $0x58] sm:$0xff]
        %v594 = vld [vmem:[%s4 + $0x60] sm:$0xff]
        %v595 = vld [vmem:[%s4 + $0x68] sm:$0xff]
        %v596 = vld [vmem:[%s4 + $0x70] sm:$0xff]
        %v597 = vld [vmem:[%s4 + $0x78] sm:$0xff]
        %599 = vset.pattern.permute.xlu0 0
        %600 = vperm.xlu0 %599, %v582
        %v601 = vpop.permute.xlu0 %600
        %604 = vset.pattern.permute.xlu0 0
        %605 = vperm.xlu0 %604, %v583
        %v606 = vpop.permute.xlu0 %605
        %609 = vset.pattern.permute.xlu0 0
        %610 = vperm.xlu0 %609, %v584
        %v611 = vpop.permute.xlu0 %610
        %614 = vset.pattern.permute.xlu0 0
        %615 = vperm.xlu0 %614, %v585
        %v616 = vpop.permute.xlu0 %615
        %619 = vset.pattern.permute.xlu0 0
        %620 = vperm.xlu0 %619, %v586
        %v621 = vpop.permute.xlu0 %620
        %624 = vset.pattern.permute.xlu0 0
        %625 = vperm.xlu0 %624, %v587
        %v626 = vpop.permute.xlu0 %625
        %629 = vset.pattern.permute.xlu0 0
        %630 = vperm.xlu0 %629, %v588
        %v631 = vpop.permute.xlu0 %630
        %634 = vset.pattern.permute.xlu0 0
        %635 = vperm.xlu0 %634, %v589
        %v636 = vpop.permute.xlu0 %635
        %639 = vset.pattern.permute.xlu0 0
        %640 = vperm.xlu0 %639, %v590
        %v641 = vpop.permute.xlu0 %640
        %644 = vset.pattern.permute.xlu0 0
        %645 = vperm.xlu0 %644, %v591
        %v646 = vpop.permute.xlu0 %645
        %649 = vset.pattern.permute.xlu0 0
        %650 = vperm.xlu0 %649, %v592
        %v651 = vpop.permute.xlu0 %650
        %654 = vset.pattern.permute.xlu0 0
        %655 = vperm.xlu0 %654, %v593
        %v656 = vpop.permute.xlu0 %655
        %659 = vset.pattern.permute.xlu0 0
        %660 = vperm.xlu0 %659, %v594
        %v661 = vpop.permute.xlu0 %660
        %664 = vset.pattern.permute.xlu0 0
        %665 = vperm.xlu0 %664, %v595
        %v666 = vpop.permute.xlu0 %665
        %669 = vset.pattern.permute.xlu0 0
        %670 = vperm.xlu0 %669, %v596
        %v671 = vpop.permute.xlu0 %670
        %674 = vset.pattern.permute.xlu0 0
        %675 = vperm.xlu0 %674, %v597
        %v676 = vpop.permute.xlu0 %675
        %vm678 = vcmask 195584
        %v680 = vsel %vm678, %v566, 0
        %v683 = vsel %vm678, %v567, 0
        %v686 = vsel %vm678, %v568, 0
        %v689 = vsel %vm678, %v569, 0
        %v692 = vsel %vm678, %v570, 0
        %v695 = vsel %vm678, %v571, 0
        %v698 = vsel %vm678, %v572, 0
        %v701 = vsel %vm678, %v573, 0
        %v704 = vsel %vm678, %v574, 0
        %v707 = vsel %vm678, %v575, 0
        %v710 = vsel %vm678, %v576, 0
        %v713 = vsel %vm678, %v577, 0
        %v716 = vsel %vm678, %v578, 0
        %v719 = vsel %vm678, %v579, 0
        %v722 = vsel %vm678, %v580, 0
        %v725 = vsel %vm678, %v581, 0
        %727 = vmatprep.subr.mxu0 0.0
        %728 = vmatpush1.msra.mxu0 %v563
        %729 = vmatprep.subr.mxu0 0.0
        %730 = vmatpush1.msra.mxu0 %v564
        %731 = vmatprep.subr.mxu0 0.0
        %732 = vmatpush1.msra.mxu0 %v565
        %733 = vmatprep.subr.mxu0 0.0
        %734 = vmatpush1.msra.mxu0 0.0
        %735 = vmatprep.subr.mxu0 0.0
        %736 = vmatpush1.msra.mxu0 0.0
        %737 = vmatprep.subr.mxu0 0.0
        %738 = vmatpush1.msra.mxu0 0.0
        %739 = vmatprep.subr.mxu0 0.0
        %740 = vmatpush1.msra.mxu0 0.0
        %741 = vmatprep.subr.mxu0 0.0
        %742 = vmatpush1.msra.mxu0 0.0
        %743 = vmatprep.subr.mxu0 0.0
        %744 = vmatpush1.msra.mxu0 0.0
        %745 = vmatprep.subr.mxu0 0.0
        %746 = vmatpush1.msra.mxu0 0.0
        %747 = vmatprep.subr.mxu0 0.0
        %748 = vmatpush1.msra.mxu0 0.0
        %749 = vmatprep.subr.mxu0 0.0
        %750 = vmatpush1.msra.mxu0 0.0
        %751 = vmatprep.subr.mxu0 0.0
        %752 = vmatpush1.msra.mxu0 0.0
        %753 = vmatprep.subr.mxu0 0.0
        %754 = vmatpush1.msra.mxu0 0.0
        %755 = vmatprep.subr.mxu0 0.0
        %756 = vmatpush1.msra.mxu0 0.0
        %757 = vmatprep.subr.mxu0 0.0
        %758 = vmatpush1.msra.mxu0 0.0
        %759 = vmatprep.subr.mxu0 0.0
        %760 = vmatpush1.msra.mxu0 0.0
        %761 = vmatprep.subr.mxu0 0.0
        %762 = vmatpush1.msra.mxu0 0.0
        %763 = vmatprep.subr.mxu0 0.0
        %764 = vmatpush1.msra.mxu0 0.0
        %765 = vmatprep.subr.mxu0 0.0
        %766 = vmatpush1.msra.mxu0 0.0
        %767 = vmatprep.subr.mxu0 0.0
        %768 = vmatpush1.msra.mxu0 0.0
        %769 = vmatprep.subr.mxu0 0.0
        %770 = vmatpush1.msra.mxu0 0.0
        %771 = vmatprep.subr.mxu0 0.0
        %772 = vmatpush1.msra.mxu0 0.0
        %773 = vmatprep.subr.mxu0 0.0
        %774 = vmatpush1.msra.mxu0 0.0
        %775 = vmatprep.subr.mxu0 0.0
        %776 = vmatpush1.msra.mxu0 0.0
        %777 = vmatprep.subr.mxu0 0.0
        %778 = vmatpush1.msra.mxu0 0.0
        %779 = vmatprep.subr.mxu0 0.0
        %780 = vmatpush1.msra.mxu0 0.0
        %781 = vmatprep.subr.mxu0 0.0
        %782 = vmatpush1.msra.mxu0 0.0
        %783 = vmatprep.subr.mxu0 0.0
        %784 = vmatpush1.msra.mxu0 0.0
        %785 = vmatprep.subr.mxu0 0.0
        %786 = vmatpush1.msra.mxu0 0.0
        %787 = vmatprep.subr.mxu0 0.0
        %788 = vmatpush1.msra.mxu0 0.0
        %789 = vmatprep.subr.mxu0 0.0
        %790 = vmatpush1.msra.mxu0 0.0
        %791 = vmatprep.mubr.f32.mxu0 0.0
        %792 = vmatmul.mubr.f32.gmra.mrb[0].mxu0 %v680
        %v793 = vpop.f32.mrb[0].mxu0
        %v794 = vadd.f32 %v601, %v793
        %v795 = vpop.f32.mrb[0].mxu0
        %796 = vmatprep.mubr.f32.mxu0 0.0
        %797 = vmatmul.mubr.f32.gmra.mrb[0].mxu0 %v683
        %v798 = vpop.f32.mrb[0].mxu0
        %v799 = vadd.f32 %v606, %v798
        %v800 = vpop.f32.mrb[0].mxu0
        %801 = vmatprep.mubr.f32.mxu0 0.0
        %802 = vmatmul.mubr.f32.gmra.mrb[0].mxu0 %v686
        %v803 = vpop.f32.mrb[0].mxu0
        %v804 = vadd.f32 %v611, %v803
        %v805 = vpop.f32.mrb[0].mxu0
        %806 = vmatprep.mubr.f32.mxu0 0.0
        %807 = vmatmul.mubr.f32.gmra.mrb[0].mxu0 %v689
        %v808 = vpop.f32.mrb[0].mxu0
        %v809 = vadd.f32 %v616, %v808
        %v810 = vpop.f32.mrb[0].mxu0
        %811 = vmatprep.mubr.f32.mxu0 0.0
        %812 = vmatmul.mubr.f32.gmra.mrb[0].mxu0 %v692
        %v813 = vpop.f32.mrb[0].mxu0
        %v814 = vadd.f32 %v621, %v813
        %v815 = vpop.f32.mrb[0].mxu0
        %816 = vmatprep.mubr.f32.mxu0 0.0
        %817 = vmatmul.mubr.f32.gmra.mrb[0].mxu0 %v695
        %v818 = vpop.f32.mrb[0].mxu0
        %v819 = vadd.f32 %v626, %v818
        %v820 = vpop.f32.mrb[0].mxu0
        %821 = vmatprep.mubr.f32.mxu0 0.0
        %822 = vmatmul.mubr.f32.gmra.mrb[0].mxu0 %v698
        %v823 = vpop.f32.mrb[0].mxu0
        %v824 = vadd.f32 %v631, %v823
        %v825 = vpop.f32.mrb[0].mxu0
        %826 = vmatprep.mubr.f32.mxu0 0.0
        %827 = vmatmul.mubr.f32.gmra.mrb[0].mxu0 %v701
        %v828 = vpop.f32.mrb[0].mxu0
        %v829 = vadd.f32 %v636, %v828
        %v830 = vpop.f32.mrb[0].mxu0
        %831 = vmatprep.mubr.f32.mxu0 0.0
        %832 = vmatmul.mubr.f32.gmra.mrb[0].mxu0 %v704
        %v833 = vpop.f32.mrb[0].mxu0
        %v834 = vadd.f32 %v641, %v833
        %v835 = vpop.f32.mrb[0].mxu0
        %836 = vmatprep.mubr.f32.mxu0 0.0
        %837 = vmatmul.mubr.f32.gmra.mrb[0].mxu0 %v707
        %v838 = vpop.f32.mrb[0].mxu0
        %v839 = vadd.f32 %v646, %v838
        %v840 = vpop.f32.mrb[0].mxu0
        %841 = vmatprep.mubr.f32.mxu0 0.0
        %842 = vmatmul.mubr.f32.gmra.mrb[0].mxu0 %v710
        %v843 = vpop.f32.mrb[0].mxu0
        %v844 = vadd.f32 %v651, %v843
        %v845 = vpop.f32.mrb[0].mxu0
        %846 = vmatprep.mubr.f32.mxu0 0.0
        %847 = vmatmul.mubr.f32.gmra.mrb[0].mxu0 %v713
        %v848 = vpop.f32.mrb[0].mxu0
        %v849 = vadd.f32 %v656, %v848
        %v850 = vpop.f32.mrb[0].mxu0
        %851 = vmatprep.mubr.f32.mxu0 0.0
        %852 = vmatmul.mubr.f32.gmra.mrb[0].mxu0 %v716
        %v853 = vpop.f32.mrb[0].mxu0
        %v854 = vadd.f32 %v661, %v853
        %v855 = vpop.f32.mrb[0].mxu0
        %856 = vmatprep.mubr.f32.mxu0 0.0
        %857 = vmatmul.mubr.f32.gmra.mrb[0].mxu0 %v719
        %v858 = vpop.f32.mrb[0].mxu0
        %v859 = vadd.f32 %v666, %v858
        %v860 = vpop.f32.mrb[0].mxu0
        %861 = vmatprep.mubr.f32.mxu0 0.0
        %862 = vmatmul.mubr.f32.gmra.mrb[0].mxu0 %v722
        %v863 = vpop.f32.mrb[0].mxu0
        %v864 = vadd.f32 %v671, %v863
        %v865 = vpop.f32.mrb[0].mxu0
        %866 = vmatprep.mubr.f32.mxu0 0.0
        %867 = vmatmul.mubr.f32.gmra.mrb[0].mxu0 %v725
        %v868 = vpop.f32.mrb[0].mxu0
        %v869 = vadd.f32 %v676, %v868
        %v870 = vpop.f32.mrb[0].mxu0
        %871 = vdwg.mxu0
        %v872 = vmax.f32 %v794, 0.0
        %v873 = vmax.f32 %v799, 0.0
        %v874 = vmax.f32 %v804, 0.0
        %v875 = vmax.f32 %v809, 0.0
        %v876 = vmax.f32 %v814, 0.0
        %v877 = vmax.f32 %v819, 0.0
        %v878 = vmax.f32 %v824, 0.0
        %v879 = vmax.f32 %v829, 0.0
        %v880 = vmax.f32 %v834, 0.0
        %v881 = vmax.f32 %v839, 0.0
        %v882 = vmax.f32 %v844, 0.0
        %v883 = vmax.f32 %v849, 0.0
        %v884 = vmax.f32 %v854, 0.0
        %v885 = vmax.f32 %v859, 0.0
        %v886 = vmax.f32 %v864, 0.0
        %v887 = vmax.f32 %v869, 0.0
        %v888 = vld [vmem:[%s5] sm:$0xff]
        %v889 = vld [vmem:[%s5 + $0x8] sm:$0xff]
        %v890 = vld [vmem:[%s5 + $0x10] sm:$0xff]
        %v891 = vld [vmem:[%s5 + $0x18] sm:$0xff]
        %v892 = vld [vmem:[%s5 + $0x20] sm:$0xff]
        %v893 = vld [vmem:[%s5 + $0x28] sm:$0xff]
        %v894 = vld [vmem:[%s5 + $0x30] sm:$0xff]
        %v895 = vld [vmem:[%s5 + $0x38] sm:$0xff]
        %v896 = vld [vmem:[%s5 + $0x40] sm:$0xff]
        %v897 = vld [vmem:[%s5 + $0x48] sm:$0xff]
        %v898 = vld [vmem:[%s5 + $0x50] sm:$0xff]
        %v899 = vld [vmem:[%s5 + $0x58] sm:$0xff]
        %v900 = vld [vmem:[%s5 + $0x60] sm:$0xff]
        %v901 = vld [vmem:[%s5 + $0x68] sm:$0xff]
        %v902 = vld [vmem:[%s5 + $0x70] sm:$0xff]
        %v903 = vld [vmem:[%s5 + $0x78] sm:$0xff]
        %v904 = vld [vmem:[%s6] sm:$0xff]
        %v905 = vld [vmem:[%s6 + $0x8] sm:$0xff]
        %v906 = vld [vmem:[%s6 + $0x10] sm:$0xff]
        %v907 = vld [vmem:[%s6 + $0x18] sm:$0xff]
        %v908 = vld [vmem:[%s6 + $0x20] sm:$0xff]
        %v909 = vld [vmem:[%s6 + $0x28] sm:$0xff]
        %v910 = vld [vmem:[%s6 + $0x30] sm:$0xff]
        %v911 = vld [vmem:[%s6 + $0x38] sm:$0xff]
        %v912 = vld [vmem:[%s6 + $0x40] sm:$0xff]
        %v913 = vld [vmem:[%s6 + $0x48] sm:$0xff]
        %v914 = vld [vmem:[%s6 + $0x50] sm:$0xff]
        %v915 = vld [vmem:[%s6 + $0x58] sm:$0xff]
        %v916 = vld [vmem:[%s6 + $0x60] sm:$0xff]
        %v917 = vld [vmem:[%s6 + $0x68] sm:$0xff]
        %v918 = vld [vmem:[%s6 + $0x70] sm:$0xff]
        %v919 = vld [vmem:[%s6 + $0x78] sm:$0xff]
        %v920 = vadd.f32 %v872, %v873
        %v921 = vrot.slane %v920, 4
        %v922 = vadd.f32 %v920, %v921
        %v923 = vrot.slane %v922, 2
        %v924 = vadd.f32 %v922, %v923
        %v925 = vrot.slane %v924, 1
        %v926 = vadd.f32 %v924, %v925
        %v927 = vrcp.pop 16.0
        %v928 = vmul.f32 %v926, %v927
        %v929 = vsub.f32 %v872, %v928
        %v930 = vsub.f32 %v873, %v928
        %v931 = vmul.f32 %v929, %v929
        %v932 = vmul.f32 %v930, %v930
        %v933 = vadd.f32 %v931, %v932
        %v934 = vrot.slane %v933, 4
        %v935 = vadd.f32 %v933, %v934
        %v936 = vrot.slane %v935, 2
        %v937 = vadd.f32 %v935, %v936
        %v938 = vrot.slane %v937, 1
        %v939 = vadd.f32 %v937, %v938
        %v940 = vmul.f32 %v939, %v927
        %v941 = vadd.f32 %v940, 1e-05
        %v942 = vrsqrt.pop %v941
        %v943 = vmul.f32 %v929, %v942
        %v944 = vmul.f32 %v930, %v942
        %946 = vset.pattern.permute.xlu0 0
        %947 = vperm.xlu0 %946, %v888
        %v948 = vpop.permute.xlu0 %947
        %951 = vset.pattern.permute.xlu0 0
        %952 = vperm.xlu0 %951, %v889
        %v953 = vpop.permute.xlu0 %952
        %v955 = vmul.f32 %v943, %v948
        %v956 = vmul.f32 %v944, %v953
        %958 = vset.pattern.permute.xlu0 0
        %959 = vperm.xlu0 %958, %v904
        %v960 = vpop.permute.xlu0 %959
        %963 = vset.pattern.permute.xlu0 0
        %964 = vperm.xlu0 %963, %v905
        %v965 = vpop.permute.xlu0 %964
        %v967 = vadd.f32 %v955, %v960
        %v968 = vadd.f32 %v956, %v965
        %v969 = vpack.c.bf16 %v968, %v967
        %v971 = vunpack.c.l.b16 %v969
        %v972 = vunpack.c.h.b16 %v969
        %v973 = vpack.c.b16 %v971, %v971
        %v974 = vpack.c.b16 %v972, %v972
        %977 = vst [vmem:[%s428] sm:$0xf] %v973
        %978 = vst [vmem:[%s428 + $0x4] sm:$0xf] %v974
        %v979 = vadd.f32 %v874, %v875
        %v980 = vrot.slane %v979, 4
        %v981 = vadd.f32 %v979, %v980
        %v982 = vrot.slane %v981, 2
        %v983 = vadd.f32 %v981, %v982
        %v984 = vrot.slane %v983, 1
        %v985 = vadd.f32 %v983, %v984
        %v986 = vmul.f32 %v985, %v927
        %v987 = vsub.f32 %v874, %v986
        %v988 = vsub.f32 %v875, %v986
        %v989 = vmul.f32 %v987, %v987
        %v990 = vmul.f32 %v988, %v988
        %v991 = vadd.f32 %v989, %v990
        %v992 = vrot.slane %v991, 4
        %v993 = vadd.f32 %v991, %v992
        %v994 = vrot.slane %v993, 2
        %v995 = vadd.f32 %v993, %v994
        %v996 = vrot.slane %v995, 1
        %v997 = vadd.f32 %v995, %v996
        %v998 = vmul.f32 %v997, %v927
        %v999 = vadd.f32 %v998, 1e-05
        %v1000 = vrsqrt.pop %v999
        %v1001 = vmul.f32 %v987, %v1000
        %v1002 = vmul.f32 %v988, %v1000
        %1004 = vset.pattern.permute.xlu0 0
        %1005 = vperm.xlu0 %1004, %v890
        %v1006 = vpop.permute.xlu0 %1005
        %1009 = vset.pattern.permute.xlu0 0
        %1010 = vperm.xlu0 %1009, %v891
        %v1011 = vpop.permute.xlu0 %1010
        %v1013 = vmul.f32 %v1001, %v1006
        %v1014 = vmul.f32 %v1002, %v1011
        %1016 = vset.pattern.permute.xlu0 0
        %1017 = vperm.xlu0 %1016, %v906
        %v1018 = vpop.permute.xlu0 %1017
        %1021 = vset.pattern.permute.xlu0 0
        %1022 = vperm.xlu0 %1021, %v907
        %v1023 = vpop.permute.xlu0 %1022
        %v1025 = vadd.f32 %v1013, %v1018
        %v1026 = vadd.f32 %v1014, %v1023
        %v1027 = vpack.c.bf16 %v1026, %v1025
        %v1029 = vunpack.c.l.b16 %v1027
        %v1030 = vunpack.c.h.b16 %v1027
        %v1031 = vpack.c.b16 %v1029, %v1029
        %v1032 = vpack.c.b16 %v1030, %v1030
        %s1035 = scalar_lea.vmem %s428, 8 [#allocation2]
        %1036 = vst [vmem:[%s1035] sm:$0xf] %v1031
        %1037 = vst [vmem:[%s1035 + $0x4] sm:$0xf] %v1032
        %v1038 = vadd.f32 %v876, %v877
        %v1039 = vrot.slane %v1038, 4
        %v1040 = vadd.f32 %v1038, %v1039
        %v1041 = vrot.slane %v1040, 2
        %v1042 = vadd.f32 %v1040, %v1041
        %v1043 = vrot.slane %v1042, 1
        %v1044 = vadd.f32 %v1042, %v1043
        %v1045 = vmul.f32 %v1044, %v927
        %v1046 = vsub.f32 %v876, %v1045
        %v1047 = vsub.f32 %v877, %v1045
        %v1048 = vmul.f32 %v1046, %v1046
        %v1049 = vmul.f32 %v1047, %v1047
        %v1050 = vadd.f32 %v1048, %v1049
        %v1051 = vrot.slane %v1050, 4
        %v1052 = vadd.f32 %v1050, %v1051
        %v1053 = vrot.slane %v1052, 2
        %v1054 = vadd.f32 %v1052, %v1053
        %v1055 = vrot.slane %v1054, 1
        %v1056 = vadd.f32 %v1054, %v1055
        %v1057 = vmul.f32 %v1056, %v927
        %v1058 = vadd.f32 %v1057, 1e-05
        %v1059 = vrsqrt.pop %v1058
        %v1060 = vmul.f32 %v1046, %v1059
        %v1061 = vmul.f32 %v1047, %v1059
        %1063 = vset.pattern.permute.xlu0 0
        %1064 = vperm.xlu0 %1063, %v892
        %v1065 = vpop.permute.xlu0 %1064
        %1068 = vset.pattern.permute.xlu0 0
        %1069 = vperm.xlu0 %1068, %v893
        %v1070 = vpop.permute.xlu0 %1069
        %v1072 = vmul.f32 %v1060, %v1065
        %v1073 = vmul.f32 %v1061, %v1070
        %1075 = vset.pattern.permute.xlu0 0
        %1076 = vperm.xlu0 %1075, %v908
        %v1077 = vpop.permute.xlu0 %1076
        %1080 = vset.pattern.permute.xlu0 0
        %1081 = vperm.xlu0 %1080, %v909
        %v1082 = vpop.permute.xlu0 %1081
        %v1084 = vadd.f32 %v1072, %v1077
        %v1085 = vadd.f32 %v1073, %v1082
        %v1086 = vpack.c.bf16 %v1085, %v1084
        %v1088 = vunpack.c.l.b16 %v1086
        %v1089 = vunpack.c.h.b16 %v1086
        %v1090 = vpack.c.b16 %v1088, %v1088
        %v1091 = vpack.c.b16 %v1089, %v1089
        %s1094 = scalar_lea.vmem %s428, 16 [#allocation2]
        %1095 = vst [vmem:[%s1094] sm:$0xf] %v1090
        %1096 = vst [vmem:[%s1094 + $0x4] sm:$0xf] %v1091
        %v1097 = vadd.f32 %v878, %v879
        %v1098 = vrot.slane %v1097, 4
        %v1099 = vadd.f32 %v1097, %v1098
        %v1100 = vrot.slane %v1099, 2
        %v1101 = vadd.f32 %v1099, %v1100
        %v1102 = vrot.slane %v1101, 1
        %v1103 = vadd.f32 %v1101, %v1102
        %v1104 = vmul.f32 %v1103, %v927
        %v1105 = vsub.f32 %v878, %v1104
        %v1106 = vsub.f32 %v879, %v1104
        %v1107 = vmul.f32 %v1105, %v1105
        %v1108 = vmul.f32 %v1106, %v1106
        %v1109 = vadd.f32 %v1107, %v1108
        %v1110 = vrot.slane %v1109, 4
        %v1111 = vadd.f32 %v1109, %v1110
        %v1112 = vrot.slane %v1111, 2
        %v1113 = vadd.f32 %v1111, %v1112
        %v1114 = vrot.slane %v1113, 1
        %v1115 = vadd.f32 %v1113, %v1114
        %v1116 = vmul.f32 %v1115, %v927
        %v1117 = vadd.f32 %v1116, 1e-05
        %v1118 = vrsqrt.pop %v1117
        %v1119 = vmul.f32 %v1105, %v1118
        %v1120 = vmul.f32 %v1106, %v1118
        %1122 = vset.pattern.permute.xlu0 0
        %1123 = vperm.xlu0 %1122, %v894
        %v1124 = vpop.permute.xlu0 %1123
        %1127 = vset.pattern.permute.xlu0 0
        %1128 = vperm.xlu0 %1127, %v895
        %v1129 = vpop.permute.xlu0 %1128
        %v1131 = vmul.f32 %v1119, %v1124
        %v1132 = vmul.f32 %v1120, %v1129
        %1134 = vset.pattern.permute.xlu0 0
        %1135 = vperm.xlu0 %1134, %v910
        %v1136 = vpop.permute.xlu0 %1135
        %1139 = vset.pattern.permute.xlu0 0
        %1140 = vperm.xlu0 %1139, %v911
        %v1141 = vpop.permute.xlu0 %1140
        %v1143 = vadd.f32 %v1131, %v1136
        %v1144 = vadd.f32 %v1132, %v1141
        %v1145 = vpack.c.bf16 %v1144, %v1143
        %v1147 = vunpack.c.l.b16 %v1145
        %v1148 = vunpack.c.h.b16 %v1145
        %v1149 = vpack.c.b16 %v1147, %v1147
        %v1150 = vpack.c.b16 %v1148, %v1148
        %s1153 = scalar_lea.vmem %s428, 24 [#allocation2]
        %1154 = vst [vmem:[%s1153] sm:$0xf] %v1149
        %1155 = vst [vmem:[%s1153 + $0x4] sm:$0xf] %v1150
        %v1156 = vadd.f32 %v880, %v881
        %v1157 = vrot.slane %v1156, 4
        %v1158 = vadd.f32 %v1156, %v1157
        %v1159 = vrot.slane %v1158, 2
        %v1160 = vadd.f32 %v1158, %v1159
        %v1161 = vrot.slane %v1160, 1
        %v1162 = vadd.f32 %v1160, %v1161
        %v1163 = vmul.f32 %v1162, %v927
        %v1164 = vsub.f32 %v880, %v1163
        %v1165 = vsub.f32 %v881, %v1163
        %v1166 = vmul.f32 %v1164, %v1164
        %v1167 = vmul.f32 %v1165, %v1165
        %v1168 = vadd.f32 %v1166, %v1167
        %v1169 = vrot.slane %v1168, 4
        %v1170 = vadd.f32 %v1168, %v1169
        %v1171 = vrot.slane %v1170, 2
        %v1172 = vadd.f32 %v1170, %v1171
        %v1173 = vrot.slane %v1172, 1
        %v1174 = vadd.f32 %v1172, %v1173
        %v1175 = vmul.f32 %v1174, %v927
        %v1176 = vadd.f32 %v1175, 1e-05
        %v1177 = vrsqrt.pop %v1176
        %v1178 = vmul.f32 %v1164, %v1177
        %v1179 = vmul.f32 %v1165, %v1177
        %1181 = vset.pattern.permute.xlu0 0
        %1182 = vperm.xlu0 %1181, %v896
        %v1183 = vpop.permute.xlu0 %1182
        %1186 = vset.pattern.permute.xlu0 0
        %1187 = vperm.xlu0 %1186, %v897
        %v1188 = vpop.permute.xlu0 %1187
        %v1190 = vmul.f32 %v1178, %v1183
        %v1191 = vmul.f32 %v1179, %v1188
        %1193 = vset.pattern.permute.xlu0 0
        %1194 = vperm.xlu0 %1193, %v912
        %v1195 = vpop.permute.xlu0 %1194
        %1198 = vset.pattern.permute.xlu0 0
        %1199 = vperm.xlu0 %1198, %v913
        %v1200 = vpop.permute.xlu0 %1199
        %v1202 = vadd.f32 %v1190, %v1195
        %v1203 = vadd.f32 %v1191, %v1200
        %v1204 = vpack.c.bf16 %v1203, %v1202
        %v1206 = vunpack.c.l.b16 %v1204
        %v1207 = vunpack.c.h.b16 %v1204
        %v1208 = vpack.c.b16 %v1206, %v1206
        %v1209 = vpack.c.b16 %v1207, %v1207
        %1212 = vst [vmem:[%s434] sm:$0xf] %v1208
        %1213 = vst [vmem:[%s434 + $0x4] sm:$0xf] %v1209
        %v1214 = vadd.f32 %v882, %v883
        %v1215 = vrot.slane %v1214, 4
        %v1216 = vadd.f32 %v1214, %v1215
        %v1217 = vrot.slane %v1216, 2
        %v1218 = vadd.f32 %v1216, %v1217
        %v1219 = vrot.slane %v1218, 1
        %v1220 = vadd.f32 %v1218, %v1219
        %v1221 = vmul.f32 %v1220, %v927
        %v1222 = vsub.f32 %v882, %v1221
        %v1223 = vsub.f32 %v883, %v1221
        %v1224 = vmul.f32 %v1222, %v1222
        %v1225 = vmul.f32 %v1223, %v1223
        %v1226 = vadd.f32 %v1224, %v1225
        %v1227 = vrot.slane %v1226, 4
        %v1228 = vadd.f32 %v1226, %v1227
        %v1229 = vrot.slane %v1228, 2
        %v1230 = vadd.f32 %v1228, %v1229
        %v1231 = vrot.slane %v1230, 1
        %v1232 = vadd.f32 %v1230, %v1231
        %v1233 = vmul.f32 %v1232, %v927
        %v1234 = vadd.f32 %v1233, 1e-05
        %v1235 = vrsqrt.pop %v1234
        %v1236 = vmul.f32 %v1222, %v1235
        %v1237 = vmul.f32 %v1223, %v1235
        %1239 = vset.pattern.permute.xlu0 0
        %1240 = vperm.xlu0 %1239, %v898
        %v1241 = vpop.permute.xlu0 %1240
        %1244 = vset.pattern.permute.xlu0 0
        %1245 = vperm.xlu0 %1244, %v899
        %v1246 = vpop.permute.xlu0 %1245
        %v1248 = vmul.f32 %v1236, %v1241
        %v1249 = vmul.f32 %v1237, %v1246
        %1251 = vset.pattern.permute.xlu0 0
        %1252 = vperm.xlu0 %1251, %v914
        %v1253 = vpop.permute.xlu0 %1252
        %1256 = vset.pattern.permute.xlu0 0
        %1257 = vperm.xlu0 %1256, %v915
        %v1258 = vpop.permute.xlu0 %1257
        %v1260 = vadd.f32 %v1248, %v1253
        %v1261 = vadd.f32 %v1249, %v1258
        %v1262 = vpack.c.bf16 %v1261, %v1260
        %v1264 = vunpack.c.l.b16 %v1262
        %v1265 = vunpack.c.h.b16 %v1262
        %v1266 = vpack.c.b16 %v1264, %v1264
        %v1267 = vpack.c.b16 %v1265, %v1265
        %s1270 = scalar_lea.vmem %s434, 8 [#allocation3]
        %1271 = vst [vmem:[%s1270] sm:$0xf] %v1266
        %1272 = vst [vmem:[%s1270 + $0x4] sm:$0xf] %v1267
        %v1273 = vadd.f32 %v884, %v885
        %v1274 = vrot.slane %v1273, 4
        %v1275 = vadd.f32 %v1273, %v1274
        %v1276 = vrot.slane %v1275, 2
        %v1277 = vadd.f32 %v1275, %v1276
        %v1278 = vrot.slane %v1277, 1
        %v1279 = vadd.f32 %v1277, %v1278
        %v1280 = vmul.f32 %v1279, %v927
        %v1281 = vsub.f32 %v884, %v1280
        %v1282 = vsub.f32 %v885, %v1280
        %v1283 = vmul.f32 %v1281, %v1281
        %v1284 = vmul.f32 %v1282, %v1282
        %v1285 = vadd.f32 %v1283, %v1284
        %v1286 = vrot.slane %v1285, 4
        %v1287 = vadd.f32 %v1285, %v1286
        %v1288 = vrot.slane %v1287, 2
        %v1289 = vadd.f32 %v1287, %v1288
        %v1290 = vrot.slane %v1289, 1
        %v1291 = vadd.f32 %v1289, %v1290
        %v1292 = vmul.f32 %v1291, %v927
        %v1293 = vadd.f32 %v1292, 1e-05
        %v1294 = vrsqrt.pop %v1293
        %v1295 = vmul.f32 %v1281, %v1294
        %v1296 = vmul.f32 %v1282, %v1294
        %1298 = vset.pattern.permute.xlu0 0
        %1299 = vperm.xlu0 %1298, %v900
        %v1300 = vpop.permute.xlu0 %1299
        %1303 = vset.pattern.permute.xlu0 0
        %1304 = vperm.xlu0 %1303, %v901
        %v1305 = vpop.permute.xlu0 %1304
        %v1307 = vmul.f32 %v1295, %v1300
        %v1308 = vmul.f32 %v1296, %v1305
        %1310 = vset.pattern.permute.xlu0 0
        %1311 = vperm.xlu0 %1310, %v916
        %v1312 = vpop.permute.xlu0 %1311
        %1315 = vset.pattern.permute.xlu0 0
        %1316 = vperm.xlu0 %1315, %v917
        %v1317 = vpop.permute.xlu0 %1316
        %v1319 = vadd.f32 %v1307, %v1312
        %v1320 = vadd.f32 %v1308, %v1317
        %v1321 = vpack.c.bf16 %v1320, %v1319
        %v1323 = vunpack.c.l.b16 %v1321
        %v1324 = vunpack.c.h.b16 %v1321
        %v1325 = vpack.c.b16 %v1323, %v1323
        %v1326 = vpack.c.b16 %v1324, %v1324
        %s1329 = scalar_lea.vmem %s434, 16 [#allocation3]
        %1330 = vst [vmem:[%s1329] sm:$0xf] %v1325
        %1331 = vst [vmem:[%s1329 + $0x4] sm:$0xf] %v1326
        %v1332 = vadd.f32 %v886, %v887
        %v1333 = vrot.slane %v1332, 4
        %v1334 = vadd.f32 %v1332, %v1333
        %v1335 = vrot.slane %v1334, 2
        %v1336 = vadd.f32 %v1334, %v1335
        %v1337 = vrot.slane %v1336, 1
        %v1338 = vadd.f32 %v1336, %v1337
        %v1339 = vmul.f32 %v1338, %v927
        %v1340 = vsub.f32 %v886, %v1339
        %v1341 = vsub.f32 %v887, %v1339
        %v1342 = vmul.f32 %v1340, %v1340
        %v1343 = vmul.f32 %v1341, %v1341
        %v1344 = vadd.f32 %v1342, %v1343
        %v1345 = vrot.slane %v1344, 4
        %v1346 = vadd.f32 %v1344, %v1345
        %v1347 = vrot.slane %v1346, 2
        %v1348 = vadd.f32 %v1346, %v1347
        %v1349 = vrot.slane %v1348, 1
        %v1350 = vadd.f32 %v1348, %v1349
        %v1351 = vmul.f32 %v1350, %v927
        %v1352 = vadd.f32 %v1351, 1e-05
        %v1353 = vrsqrt.pop %v1352
        %v1354 = vmul.f32 %v1340, %v1353
        %v1355 = vmul.f32 %v1341, %v1353
        %1357 = vset.pattern.permute.xlu0 0
        %1358 = vperm.xlu0 %1357, %v902
        %v1359 = vpop.permute.xlu0 %1358
        %1362 = vset.pattern.permute.xlu0 0
        %1363 = vperm.xlu0 %1362, %v903
        %v1364 = vpop.permute.xlu0 %1363
        %v1366 = vmul.f32 %v1354, %v1359
        %v1367 = vmul.f32 %v1355, %v1364
        %1369 = vset.pattern.permute.xlu0 0
        %1370 = vperm.xlu0 %1369, %v918
        %v1371 = vpop.permute.xlu0 %1370
        %1374 = vset.pattern.permute.xlu0 0
        %1375 = vperm.xlu0 %1374, %v919
        %v1376 = vpop.permute.xlu0 %1375
        %v1378 = vadd.f32 %v1366, %v1371
        %v1379 = vadd.f32 %v1367, %v1376
        %v1380 = vpack.c.bf16 %v1379, %v1378
        %v1382 = vunpack.c.l.b16 %v1380
        %v1383 = vunpack.c.h.b16 %v1380
        %v1384 = vpack.c.b16 %v1382, %v1382
        %v1385 = vpack.c.b16 %v1383, %v1383
        %s1388 = scalar_lea.vmem %s434, 24 [#allocation3]
        %1389 = vst [vmem:[%s1388] sm:$0xf] %v1384
        %1390 = vst [vmem:[%s1388 + $0x4] sm:$0xf] %v1385
        %v1391 = vld [vmem:[%s7] sm:$0xff]
        %v1392 = vld [vmem:[%s7 + $0x8] sm:$0xff]
        %v1393 = vld [vmem:[%s7 + $0x10] sm:$0xff]
        %v1394 = vld [vmem:[%s8] sm:$0xff]
        %v1395 = vld [vmem:[%s8 + $0x8] sm:$0xff]
        %v1396 = vld [vmem:[%s8 + $0x10] sm:$0xff]
        %1398 = vset.pattern.permute.xlu0 0
        %1399 = vperm.xlu0 %1398, %v1394
        %v1400 = vpop.permute.xlu0 %1399
        %1403 = vset.pattern.permute.xlu0 0
        %1404 = vperm.xlu0 %1403, %v1395
        %v1405 = vpop.permute.xlu0 %1404
        %1408 = vset.pattern.permute.xlu0 0
        %1409 = vperm.xlu0 %1408, %v1396
        %v1410 = vpop.permute.xlu0 %1409
        %v1413 = vsel %vm678, %v1391, 0
        %v1416 = vsel %vm678, %v1392, 0
        %v1419 = vsel %vm678, %v1393, 0
        %1421 = vmatprep.subr.mxu0 0.0
        %1422 = vmatpush1.msra.mxu0 %v563
        %1423 = vmatprep.subr.mxu0 0.0
        %1424 = vmatpush1.msra.mxu0 %v564
        %1425 = vmatprep.subr.mxu0 0.0
        %1426 = vmatpush1.msra.mxu0 %v565
        %1427 = vmatprep.subr.mxu0 0.0
        %1428 = vmatpush1.msra.mxu0 0.0
        %1429 = vmatprep.subr.mxu0 0.0
        %1430 = vmatpush1.msra.mxu0 0.0
        %1431 = vmatprep.subr.mxu0 0.0
        %1432 = vmatpush1.msra.mxu0 0.0
        %1433 = vmatprep.subr.mxu0 0.0
        %1434 = vmatpush1.msra.mxu0 0.0
        %1435 = vmatprep.subr.mxu0 0.0
        %1436 = vmatpush1.msra.mxu0 0.0
        %1437 = vmatprep.subr.mxu0 0.0
        %1438 = vmatpush1.msra.mxu0 0.0
        %1439 = vmatprep.subr.mxu0 0.0
        %1440 = vmatpush1.msra.mxu0 0.0
        %1441 = vmatprep.subr.mxu0 0.0
        %1442 = vmatpush1.msra.mxu0 0.0
        %1443 = vmatprep.subr.mxu0 0.0
        %1444 = vmatpush1.msra.mxu0 0.0
        %1445 = vmatprep.subr.mxu0 0.0
        %1446 = vmatpush1.msra.mxu0 0.0
        %1447 = vmatprep.subr.mxu0 0.0
        %1448 = vmatpush1.msra.mxu0 0.0
        %1449 = vmatprep.subr.mxu0 0.0
        %1450 = vmatpush1.msra.mxu0 0.0
        %1451 = vmatprep.subr.mxu0 0.0
        %1452 = vmatpush1.msra.mxu0 0.0
        %1453 = vmatprep.subr.mxu0 0.0
        %1454 = vmatpush1.msra.mxu0 0.0
        %1455 = vmatprep.subr.mxu0 0.0
        %1456 = vmatpush1.msra.mxu0 0.0
        %1457 = vmatprep.subr.mxu0 0.0
        %1458 = vmatpush1.msra.mxu0 0.0
        %1459 = vmatprep.subr.mxu0 0.0
        %1460 = vmatpush1.msra.mxu0 0.0
        %1461 = vmatprep.subr.mxu0 0.0
        %1462 = vmatpush1.msra.mxu0 0.0
        %1463 = vmatprep.subr.mxu0 0.0
        %1464 = vmatpush1.msra.mxu0 0.0
        %1465 = vmatprep.subr.mxu0 0.0
        %1466 = vmatpush1.msra.mxu0 0.0
        %1467 = vmatprep.subr.mxu0 0.0
        %1468 = vmatpush1.msra.mxu0 0.0
        %1469 = vmatprep.subr.mxu0 0.0
        %1470 = vmatpush1.msra.mxu0 0.0
        %1471 = vmatprep.subr.mxu0 0.0
        %1472 = vmatpush1.msra.mxu0 0.0
        %1473 = vmatprep.subr.mxu0 0.0
        %1474 = vmatpush1.msra.mxu0 0.0
        %1475 = vmatprep.subr.mxu0 0.0
        %1476 = vmatpush1.msra.mxu0 0.0
        %1477 = vmatprep.subr.mxu0 0.0
        %1478 = vmatpush1.msra.mxu0 0.0
        %1479 = vmatprep.subr.mxu0 0.0
        %1480 = vmatpush1.msra.mxu0 0.0
        %1481 = vmatprep.subr.mxu0 0.0
        %1482 = vmatpush1.msra.mxu0 0.0
        %1483 = vmatprep.subr.mxu0 0.0
        %1484 = vmatpush1.msra.mxu0 0.0
        %1485 = vmatprep.mubr.f32.mxu0 0.0
        %1486 = vmatmul.mubr.f32.gmra.mrb[0].mxu0 %v1413
        %v1487 = vpop.f32.mrb[0].mxu0
        %v1488 = vadd.f32 %v1400, %v1487
        %v1489 = vpop.f32.mrb[0].mxu0
        %1490 = vmatprep.mubr.f32.mxu0 0.0
        %1491 = vmatmul.mubr.f32.gmra.mrb[0].mxu0 %v1416
        %v1492 = vpop.f32.mrb[0].mxu0
        %v1493 = vadd.f32 %v1405, %v1492
        %v1494 = vpop.f32.mrb[0].mxu0
        %1495 = vmatprep.mubr.f32.mxu0 0.0
        %1496 = vmatmul.mubr.f32.gmra.mrb[0].mxu0 %v1419
        %v1497 = vpop.f32.mrb[0].mxu0
        %v1498 = vadd.f32 %v1410, %v1497
        %v1499 = vpop.f32.mrb[0].mxu0
        %1500 = vdwg.mxu0
        %v1501 = vmax.f32 %v1488, 0.0
        %v1502 = vmax.f32 %v1493, 0.0
        %v1503 = vmax.f32 %v1498, 0.0
        %v1504 = vld [vmem:[%s9] sm:$0xff]
        %v1505 = vld [vmem:[%s9 + $0x8] sm:$0xff]
        %v1506 = vld [vmem:[%s9 + $0x10] sm:$0xff]
        %v1507 = vld [vmem:[%s10] sm:$0xff]
        %v1508 = vld [vmem:[%s10 + $0x8] sm:$0xff]
        %v1509 = vld [vmem:[%s10 + $0x10] sm:$0xff]
        %vm1510 = vcmask 1045504
        %v1511 = vsel %vm1510, %v1501, 0.0
        %v1512 = vrot.slane %v1511, 4
        %v1513 = vadd.f32 %v1511, %v1512
        %v1514 = vrot.slane %v1513, 2
        %v1515 = vadd.f32 %v1513, %v1514
        %v1516 = vrot.slane %v1515, 1
        %v1517 = vadd.f32 %v1515, %v1516
        %v1518 = vrcp.pop 6.0
        %v1519 = vmul.f32 %v1517, %v1518
        %v1520 = vsub.f32 %v1501, %v1519
        %v1521 = vmul.f32 %v1520, %v1520
        %v1522 = vsel %vm1510, %v1521, 0.0
        %v1523 = vrot.slane %v1522, 4
        %v1524 = vadd.f32 %v1522, %v1523
        %v1525 = vrot.slane %v1524, 2
        %v1526 = vadd.f32 %v1524, %v1525
        %v1527 = vrot.slane %v1526, 1
        %v1528 = vadd.f32 %v1526, %v1527
        %v1529 = vmul.f32 %v1528, %v1518
        %v1530 = vadd.f32 %v1529, 1e-05
        %v1531 = vrsqrt.pop %v1530
        %v1532 = vmul.f32 %v1520, %v1531
        %1534 = vset.pattern.permute.xlu0 0
        %1535 = vperm.xlu0 %1534, %v1504
        %v1536 = vpop.permute.xlu0 %1535
        %v1538 = vmul.f32 %v1532, %v1536
        %1540 = vset.pattern.permute.xlu0 0
        %1541 = vperm.xlu0 %1540, %v1507
        %v1542 = vpop.permute.xlu0 %1541
        %v1544 = vadd.f32 %v1538, %v1542
        %v1545 = vpack.c.bf16 %v1544, %v1544
        %1546 = vst [vmem:[%s440] sm:$0x7] %v1545
        %vm1549 = vcmask 1041408
        %v1550 = vrot.slane %v1501, 6
        %v1551 = vrot.slane %v1502, 6
        %v1552 = vsel %vm1549, %v1550, %v1551
        %v1554 = vsel %vm1510, %v1552, 0.0
        %v1555 = vrot.slane %v1554, 4
        %v1556 = vadd.f32 %v1554, %v1555
        %v1557 = vrot.slane %v1556, 2
        %v1558 = vadd.f32 %v1556, %v1557
        %v1559 = vrot.slane %v1558, 1
        %v1560 = vadd.f32 %v1558, %v1559
        %v1561 = vmul.f32 %v1560, %v1518
        %v1562 = vsub.f32 %v1501, %v1561
        %v1563 = vsub.f32 %v1502, %v1561
        %v1564 = vmul.f32 %v1562, %v1562
        %v1565 = vmul.f32 %v1563, %v1563
        %v1568 = vrot.slane %v1564, 6
        %v1569 = vrot.slane %v1565, 6
        %v1570 = vsel %vm1549, %v1568, %v1569
        %v1572 = vsel %vm1510, %v1570, 0.0
        %v1573 = vrot.slane %v1572, 4
        %v1574 = vadd.f32 %v1572, %v1573
        %v1575 = vrot.slane %v1574, 2
        %v1576 = vadd.f32 %v1574, %v1575
        %v1577 = vrot.slane %v1576, 1
        %v1578 = vadd.f32 %v1576, %v1577
        %v1579 = vmul.f32 %v1578, %v1518
        %v1580 = vadd.f32 %v1579, 1e-05
        %v1581 = vrsqrt.pop %v1580
        %v1582 = vmul.f32 %v1562, %v1581
        %v1583 = vmul.f32 %v1563, %v1581
        %1585 = vset.pattern.permute.xlu0 0
        %1586 = vperm.xlu0 %1585, %v1505
        %v1587 = vpop.permute.xlu0 %1586
        %v1589 = vmul.f32 %v1582, %v1536
        %v1590 = vmul.f32 %v1583, %v1587
        %1592 = vset.pattern.permute.xlu0 0
        %1593 = vperm.xlu0 %1592, %v1508
        %v1594 = vpop.permute.xlu0 %1593
        %v1596 = vadd.f32 %v1589, %v1542
        %v1597 = vadd.f32 %v1590, %v1594
        %v1598 = vpack.c.bf16 %v1597, %v1596
        %v1600 = vunpack.c.l.b16 %v1598
        %v1601 = vunpack.c.h.b16 %v1598
        %v1602 = vpack.c.b16 %v1600, %v1600
        %v1603 = vpack.c.b16 %v1601, %v1601
        %vm1604 = vcmask 1040384
        %vm1605 = vcmask 1044484
        %vm1606 = vmor %vm1604, %vm1605
        %v1607 = vrot.slane %v1602, 7
        %v1608 = vrot.slane %v1607, 4
        %v1609 = vrot.slane %v1603, 7
        %v1610 = vsel %vm1606, %v1608, %v1609
        %s1612 = scalar_lea.vmem %s440, 4 [#allocation4]
        %1613 = vst [vmem:[%s1612] sm:$0x7] %v1610
        %vm1615 = vcmask 1043456
        %v1616 = vrot.slane %v1502, 4
        %v1617 = vrot.slane %v1503, 4
        %v1618 = vsel %vm1615, %v1616, %v1617
        %v1620 = vsel %vm1510, %v1618, 0.0
        %v1621 = vrot.slane %v1620, 4
        %v1622 = vadd.f32 %v1620, %v1621
        %v1623 = vrot.slane %v1622, 2
        %v1624 = vadd.f32 %v1622, %v1623
        %v1625 = vrot.slane %v1624, 1
        %v1626 = vadd.f32 %v1624, %v1625
        %v1627 = vmul.f32 %v1626, %v1518
        %v1628 = vsub.f32 %v1502, %v1627
        %v1629 = vsub.f32 %v1503, %v1627
        %v1630 = vmul.f32 %v1628, %v1628
        %v1631 = vmul.f32 %v1629, %v1629
        %v1634 = vrot.slane %v1630, 4
        %v1635 = vrot.slane %v1631, 4
        %v1636 = vsel %vm1615, %v1634, %v1635
        %v1638 = vsel %vm1510, %v1636, 0.0
        %v1639 = vrot.slane %v1638, 4
        %v1640 = vadd.f32 %v1638, %v1639
        %v1641 = vrot.slane %v1640, 2
        %v1642 = vadd.f32 %v1640, %v1641
        %v1643 = vrot.slane %v1642, 1
        %v1644 = vadd.f32 %v1642, %v1643
        %v1645 = vmul.f32 %v1644, %v1518
        %v1646 = vadd.f32 %v1645, 1e-05
        %v1647 = vrsqrt.pop %v1646
        %v1648 = vmul.f32 %v1628, %v1647
        %v1649 = vmul.f32 %v1629, %v1647
        %1651 = vset.pattern.permute.xlu0 0
        %1652 = vperm.xlu0 %1651, %v1506
        %v1653 = vpop.permute.xlu0 %1652
        %v1655 = vmul.f32 %v1648, %v1587
        %v1656 = vmul.f32 %v1649, %v1653
        %1658 = vset.pattern.permute.xlu0 0
        %1659 = vperm.xlu0 %1658, %v1509
        %v1660 = vpop.permute.xlu0 %1659
        %v1662 = vadd.f32 %v1655, %v1594
        %v1663 = vadd.f32 %v1656, %v1660
        %v1664 = vpack.c.bf16 %v1663, %v1662
        %v1666 = vunpack.c.l.b16 %v1664
        %v1667 = vunpack.c.h.b16 %v1664
        %v1668 = vpack.c.b16 %v1666, %v1666
        %v1669 = vpack.c.b16 %v1667, %v1667
        %vm1670 = vcmask 1041408
        %vm1671 = vcmask 1045508
        %vm1672 = vmor %vm1670, %vm1671
        %v1673 = vrot.slane %v1668, 6
        %v1674 = vrot.slane %v1673, 4
        %v1675 = vrot.slane %v1669, 6
        %v1676 = vsel %vm1672, %v1674, %v1675
        %s1678 = scalar_lea.vmem %s440, 8 [#allocation4]
        %1679 = vst [vmem:[%s1678] sm:$0x7] %v1676
        %v1680 = vrot.slane %v1503, 2
        %v1682 = vsel %vm1510, %v1680, 0.0
        %v1683 = vrot.slane %v1682, 4
        %v1684 = vadd.f32 %v1682, %v1683
        %v1685 = vrot.slane %v1684, 2
        %v1686 = vadd.f32 %v1684, %v1685
        %v1687 = vrot.slane %v1686, 1
        %v1688 = vadd.f32 %v1686, %v1687
        %v1689 = vmul.f32 %v1688, %v1518
        %v1690 = vsub.f32 %v1503, %v1689
        %v1691 = vmul.f32 %v1690, %v1690
        %v1693 = vrot.slane %v1691, 2
        %v1695 = vsel %vm1510, %v1693, 0.0
        %v1696 = vrot.slane %v1695, 4
        %v1697 = vadd.f32 %v1695, %v1696
        %v1698 = vrot.slane %v1697, 2
        %v1699 = vadd.f32 %v1697, %v1698
        %v1700 = vrot.slane %v1699, 1
        %v1701 = vadd.f32 %v1699, %v1700
        %v1702 = vmul.f32 %v1701, %v1518
        %v1703 = vadd.f32 %v1702, 1e-05
        %v1704 = vrsqrt.pop %v1703
        %v1705 = vmul.f32 %v1690, %v1704
        %v1706 = vmul.f32 %v1705, %v1653
        %v1707 = vadd.f32 %v1706, %v1660
        %v1708 = vpack.c.bf16 %v1707, %v1707
        %v1710 = vunpack.c.l.b16 %v1708
        %v1711 = vpack.c.b16 %v1710, %v1710
        %v1712 = vrot.slane %v1711, 5
        %v1713 = vrot.slane %v1712, 4
        %s1715 = scalar_lea.vmem %s440, 12 [#allocation4]
        %1716 = vst [vmem:[%s1715] sm:$0x7] %v1713
        %s1717 = sand.u32 %s269, 1
        %s1718 = sand.u32 %s269, 1
        %s1719 = smul.addr %s1718, 32
        %s1720 = scalar_lea.vmem [#allocation2], %s1719
        %s1721 = sand.u32 %s295, 1
        %s1722 = sand.u32 %s295, 1
        %s1723 = smul.addr %s1722, 32
        %s1724 = scalar_lea.vmem [#allocation3], %s1723
        %s1725 = sand.u32 %s321, 1
        %s1726 = sand.u32 %s321, 1
        %s1727 = smul.addr %s1726, 16
        %s1728 = scalar_lea.vmem [#allocation4], %s1727
        // Predicated region
        $region65: #{channel_attention_tac.3} parent=63 // pred_check
          %p1729 = pneg %p279
        $region66: #{channel_attention_tac.3} parent=63 // pred_check_branch
          %1731 = sbr.rel (%p1729) target = $region68
        $region67: #{channel_attention_tac.3} parent=63 // pred_region
          %s1732 = smul.addr %s25, 4
          %s1733 = scalar_lea.vmem %s11, %s1732
          // Predicated region
          $region69: #{channel_attention_tac.3} parent=67 // pred_check
            _
          $region70: #{channel_attention_tac.3} parent=67 // pred_check_branch
            %1735 = sbr.rel (0) target = $region72
          $region71: #{channel_attention_tac.3} parent=67 // pred_region
            // Predicated region
            $region73: #{channel_attention_tac.3} parent=71 // pred_check
              _
            $region74: #{channel_attention_tac.3} parent=71 // pred_check_branch
              %1737 = sbr.rel target = $region76
            $region75: #{channel_attention_tac.3} parent=71 // pred_region
              // Predicated region
              $region88: #{channel_attention_tac.3} parent=75 // pred_check
                _
              $region89: #{channel_attention_tac.3} parent=75 // pred_check_branch
                %1766 = sbr.rel (0) target = $region91
              $region90: #{channel_attention_tac.3} parent=75 // pred_region
                loop: start=0, step=1, limit=1
                $region92: #{channel_attention_tac.3} parent=90 // loop_pre_header
                  _
                $region93: #{channel_attention_tac.3} parent=90 // loop_header
                  %s1768 = sphi 0, %s1772
                  %p1769 = scmp.ge.s32.totalorder %s1768, 1
                  %s1773 = sphi %s1720, %s1720
                  %s1774 = sphi %s1733, %s1733
                $region94: #{channel_attention_tac.3} parent=90 // loop_header_branch
                  %1771 = sbr.rel (%p1769) target = $region98
                $region95: #{channel_attention_tac.3} parent=90 // loop_body
                  _
                $region96: #{channel_attention_tac.3} parent=90 // loop_footer
                  %s1772 = sadd.s32 1, %s1768
                $region97: #{channel_attention_tac.3} parent=90 // loop_footer_branch
                  %1767 = sbr.rel target = $region93
                $region98: #{channel_attention_tac.3} parent=90 // loop_exit
                  _
                loop: start=0, step=1, limit=1
                $region99: #{channel_attention_tac.3} parent=90 // loop_pre_header
                  _
                $region100: #{channel_attention_tac.3} parent=90 // loop_header
                  %s1777 = sphi 0, %s1781
                  %p1778 = scmp.ge.s32.totalorder %s1777, 1
                  %s1782 = sphi %s1720, %s1720
                  %s1783 = sphi %s1733, %s1733
                $region101: #{channel_attention_tac.3} parent=90 // loop_header_branch
                  %1780 = sbr.rel (%p1778) target = $region105
                $region102: #{channel_attention_tac.3} parent=90 // loop_body
                  %v1784 = vld [vmem:[%s1782] sm:$0xf]
                  %1785 = vst [vmem:[%s1783] sm:$0xf] %v1784
                  %v1786 = vld [vmem:[%s1782 + $0x4] sm:$0xf]
                  %1787 = vst [vmem:[%s1783 + $0x10] sm:$0xf] %v1786
                  %v1788 = vld [vmem:[%s1782 + $0x8] sm:$0xf]
                  %1789 = vst [vmem:[%s1783 + $0x20] sm:$0xf] %v1788
                  %v1790 = vld [vmem:[%s1782 + $0xc] sm:$0xf]
                  %1791 = vst [vmem:[%s1783 + $0x30] sm:$0xf] %v1790
                  %v1792 = vld [vmem:[%s1782 + $0x10] sm:$0xf]
                  %1793 = vst [vmem:[%s1783 + $0x40] sm:$0xf] %v1792
                  %v1794 = vld [vmem:[%s1782 + $0x14] sm:$0xf]
                  %1795 = vst [vmem:[%s1783 + $0x50] sm:$0xf] %v1794
                  %v1796 = vld [vmem:[%s1782 + $0x18] sm:$0xf]
                  %1797 = vst [vmem:[%s1783 + $0x60] sm:$0xf] %v1796
                  %v1798 = vld [vmem:[%s1782 + $0x1c] sm:$0xf]
                  %1799 = vst [vmem:[%s1783 + $0x70] sm:$0xf] %v1798
                $region103: #{channel_attention_tac.3} parent=90 // loop_footer
                  %s1781 = sadd.s32 1, %s1777
                $region104: #{channel_attention_tac.3} parent=90 // loop_footer_branch
                  %1776 = sbr.rel target = $region100
                $region105: #{channel_attention_tac.3} parent=90 // loop_exit
                  _
              $region91: #{channel_attention_tac.3} parent=75 // pred_fallthru
                _
            $region76: #{channel_attention_tac.3} parent=71 // pred_fallthru
              _
            // Predicated region
            $region77: #{channel_attention_tac.3} parent=71 // pred_check
              _
            $region78: #{channel_attention_tac.3} parent=71 // pred_check_branch
              %1739 = sbr.rel (0) target = $region80
            $region79: #{channel_attention_tac.3} parent=71 // pred_region
              loop: start=0, step=1, limit=1
              $region81: #{channel_attention_tac.3} parent=79 // loop_pre_header
                _
              $region82: #{channel_attention_tac.3} parent=79 // loop_header
                %s1742 = sphi 0, %s1746
                %p1743 = scmp.ge.s32.totalorder %s1742, 1
                %s1747 = sphi %s1720, %s1720
                %s1748 = sphi %s1733, %s1733
              $region83: #{channel_attention_tac.3} parent=79 // loop_header_branch
                %1745 = sbr.rel (%p1743) target = $region87
              $region84: #{channel_attention_tac.3} parent=79 // loop_body
                %v1749 = vld [vmem:[%s1747] sm:$0xf]
                %1750 = vst [vmem:[%s1748] sm:$0xf] %v1749
                %v1751 = vld [vmem:[%s1747 + $0x4] sm:$0xf]
                %1752 = vst [vmem:[%s1748 + $0x10] sm:$0xf] %v1751
                %v1753 = vld [vmem:[%s1747 + $0x8] sm:$0xf]
                %1754 = vst [vmem:[%s1748 + $0x20] sm:$0xf] %v1753
                %v1755 = vld [vmem:[%s1747 + $0xc] sm:$0xf]
                %1756 = vst [vmem:[%s1748 + $0x30] sm:$0xf] %v1755
                %v1757 = vld [vmem:[%s1747 + $0x10] sm:$0xf]
                %1758 = vst [vmem:[%s1748 + $0x40] sm:$0xf] %v1757
                %v1759 = vld [vmem:[%s1747 + $0x14] sm:$0xf]
                %1760 = vst [vmem:[%s1748 + $0x50] sm:$0xf] %v1759
                %v1761 = vld [vmem:[%s1747 + $0x18] sm:$0xf]
                %1762 = vst [vmem:[%s1748 + $0x60] sm:$0xf] %v1761
                %v1763 = vld [vmem:[%s1747 + $0x1c] sm:$0xf]
                %1764 = vst [vmem:[%s1748 + $0x70] sm:$0xf] %v1763
              $region85: #{channel_attention_tac.3} parent=79 // loop_footer
                %s1746 = sadd.s32 1, %s1742
              $region86: #{channel_attention_tac.3} parent=79 // loop_footer_branch
                %1741 = sbr.rel target = $region82
              $region87: #{channel_attention_tac.3} parent=79 // loop_exit
                _
            $region80: #{channel_attention_tac.3} parent=71 // pred_fallthru
              _
          $region72: #{channel_attention_tac.3} parent=67 // pred_fallthru
            _
          %1800 = vnop
        $region68: #{channel_attention_tac.3} parent=63 // pred_fallthru
          _
        // Predicated region
        $region106: #{channel_attention_tac.3} parent=63 // pred_check
          %p1801 = pneg %p305
        $region107: #{channel_attention_tac.3} parent=63 // pred_check_branch
          %1803 = sbr.rel (%p1801) target = $region109
        $region108: #{channel_attention_tac.3} parent=63 // pred_region
          %s1804 = smul.addr %s25, 4
          %s1805 = scalar_lea.vmem %s12, %s1804
          // Predicated region
          $region110: #{channel_attention_tac.3} parent=108 // pred_check
            _
          $region111: #{channel_attention_tac.3} parent=108 // pred_check_branch
            %1807 = sbr.rel (0) target = $region113
          $region112: #{channel_attention_tac.3} parent=108 // pred_region
            // Predicated region
            $region114: #{channel_attention_tac.3} parent=112 // pred_check
              _
            $region115: #{channel_attention_tac.3} parent=112 // pred_check_branch
              %1809 = sbr.rel target = $region117
            $region116: #{channel_attention_tac.3} parent=112 // pred_region
              // Predicated region
              $region129: #{channel_attention_tac.3} parent=116 // pred_check
                _
              $region130: #{channel_attention_tac.3} parent=116 // pred_check_branch
                %1838 = sbr.rel (0) target = $region132
              $region131: #{channel_attention_tac.3} parent=116 // pred_region
                loop: start=0, step=1, limit=1
                $region133: #{channel_attention_tac.3} parent=131 // loop_pre_header
                  _
                $region134: #{channel_attention_tac.3} parent=131 // loop_header
                  %s1840 = sphi 0, %s1844
                  %p1841 = scmp.ge.s32.totalorder %s1840, 1
                  %s1845 = sphi %s1724, %s1724
                  %s1846 = sphi %s1805, %s1805
                $region135: #{channel_attention_tac.3} parent=131 // loop_header_branch
                  %1843 = sbr.rel (%p1841) target = $region139
                $region136: #{channel_attention_tac.3} parent=131 // loop_body
                  _
                $region137: #{channel_attention_tac.3} parent=131 // loop_footer
                  %s1844 = sadd.s32 1, %s1840
                $region138: #{channel_attention_tac.3} parent=131 // loop_footer_branch
                  %1839 = sbr.rel target = $region134
                $region139: #{channel_attention_tac.3} parent=131 // loop_exit
                  _
                loop: start=0, step=1, limit=1
                $region140: #{channel_attention_tac.3} parent=131 // loop_pre_header
                  _
                $region141: #{channel_attention_tac.3} parent=131 // loop_header
                  %s1849 = sphi 0, %s1853
                  %p1850 = scmp.ge.s32.totalorder %s1849, 1
                  %s1854 = sphi %s1724, %s1724
                  %s1855 = sphi %s1805, %s1805
                $region142: #{channel_attention_tac.3} parent=131 // loop_header_branch
                  %1852 = sbr.rel (%p1850) target = $region146
                $region143: #{channel_attention_tac.3} parent=131 // loop_body
                  %v1856 = vld [vmem:[%s1854] sm:$0xf]
                  %1857 = vst [vmem:[%s1855] sm:$0xf] %v1856
                  %v1858 = vld [vmem:[%s1854 + $0x4] sm:$0xf]
                  %1859 = vst [vmem:[%s1855 + $0x10] sm:$0xf] %v1858
                  %v1860 = vld [vmem:[%s1854 + $0x8] sm:$0xf]
                  %1861 = vst [vmem:[%s1855 + $0x20] sm:$0xf] %v1860
                  %v1862 = vld [vmem:[%s1854 + $0xc] sm:$0xf]
                  %1863 = vst [vmem:[%s1855 + $0x30] sm:$0xf] %v1862
                  %v1864 = vld [vmem:[%s1854 + $0x10] sm:$0xf]
                  %1865 = vst [vmem:[%s1855 + $0x40] sm:$0xf] %v1864
                  %v1866 = vld [vmem:[%s1854 + $0x14] sm:$0xf]
                  %1867 = vst [vmem:[%s1855 + $0x50] sm:$0xf] %v1866
                  %v1868 = vld [vmem:[%s1854 + $0x18] sm:$0xf]
                  %1869 = vst [vmem:[%s1855 + $0x60] sm:$0xf] %v1868
                  %v1870 = vld [vmem:[%s1854 + $0x1c] sm:$0xf]
                  %1871 = vst [vmem:[%s1855 + $0x70] sm:$0xf] %v1870
                $region144: #{channel_attention_tac.3} parent=131 // loop_footer
                  %s1853 = sadd.s32 1, %s1849
                $region145: #{channel_attention_tac.3} parent=131 // loop_footer_branch
                  %1848 = sbr.rel target = $region141
                $region146: #{channel_attention_tac.3} parent=131 // loop_exit
                  _
              $region132: #{channel_attention_tac.3} parent=116 // pred_fallthru
                _
            $region117: #{channel_attention_tac.3} parent=112 // pred_fallthru
              _
            // Predicated region
            $region118: #{channel_attention_tac.3} parent=112 // pred_check
              _
            $region119: #{channel_attention_tac.3} parent=112 // pred_check_branch
              %1811 = sbr.rel (0) target = $region121
            $region120: #{channel_attention_tac.3} parent=112 // pred_region
              loop: start=0, step=1, limit=1
              $region122: #{channel_attention_tac.3} parent=120 // loop_pre_header
                _
              $region123: #{channel_attention_tac.3} parent=120 // loop_header
                %s1814 = sphi 0, %s1818
                %p1815 = scmp.ge.s32.totalorder %s1814, 1
                %s1819 = sphi %s1724, %s1724
                %s1820 = sphi %s1805, %s1805
              $region124: #{channel_attention_tac.3} parent=120 // loop_header_branch
                %1817 = sbr.rel (%p1815) target = $region128
              $region125: #{channel_attention_tac.3} parent=120 // loop_body
                %v1821 = vld [vmem:[%s1819] sm:$0xf]
                %1822 = vst [vmem:[%s1820] sm:$0xf] %v1821
                %v1823 = vld [vmem:[%s1819 + $0x4] sm:$0xf]
                %1824 = vst [vmem:[%s1820 + $0x10] sm:$0xf] %v1823
                %v1825 = vld [vmem:[%s1819 + $0x8] sm:$0xf]
                %1826 = vst [vmem:[%s1820 + $0x20] sm:$0xf] %v1825
                %v1827 = vld [vmem:[%s1819 + $0xc] sm:$0xf]
                %1828 = vst [vmem:[%s1820 + $0x30] sm:$0xf] %v1827
                %v1829 = vld [vmem:[%s1819 + $0x10] sm:$0xf]
                %1830 = vst [vmem:[%s1820 + $0x40] sm:$0xf] %v1829
                %v1831 = vld [vmem:[%s1819 + $0x14] sm:$0xf]
                %1832 = vst [vmem:[%s1820 + $0x50] sm:$0xf] %v1831
                %v1833 = vld [vmem:[%s1819 + $0x18] sm:$0xf]
                %1834 = vst [vmem:[%s1820 + $0x60] sm:$0xf] %v1833
                %v1835 = vld [vmem:[%s1819 + $0x1c] sm:$0xf]
                %1836 = vst [vmem:[%s1820 + $0x70] sm:$0xf] %v1835
              $region126: #{channel_attention_tac.3} parent=120 // loop_footer
                %s1818 = sadd.s32 1, %s1814
              $region127: #{channel_attention_tac.3} parent=120 // loop_footer_branch
                %1813 = sbr.rel target = $region123
              $region128: #{channel_attention_tac.3} parent=120 // loop_exit
                _
            $region121: #{channel_attention_tac.3} parent=112 // pred_fallthru
              _
          $region113: #{channel_attention_tac.3} parent=108 // pred_fallthru
            _
          %1872 = vnop
        $region109: #{channel_attention_tac.3} parent=63 // pred_fallthru
          _
        // Predicated region
        $region147: #{channel_attention_tac.3} parent=63 // pred_check
          %p1873 = pneg %p331
        $region148: #{channel_attention_tac.3} parent=63 // pred_check_branch
          %1875 = sbr.rel (%p1873) target = $region150
        $region149: #{channel_attention_tac.3} parent=63 // pred_region
          %s1876 = smul.addr %s25, 4
          %s1877 = scalar_lea.vmem %s13, %s1876
          // Predicated region
          $region151: #{channel_attention_tac.3} parent=149 // pred_check
            _
          $region152: #{channel_attention_tac.3} parent=149 // pred_check_branch
            %1879 = sbr.rel (0) target = $region154
          $region153: #{channel_attention_tac.3} parent=149 // pred_region
            // Predicated region
            $region155: #{channel_attention_tac.3} parent=153 // pred_check
              _
            $region156: #{channel_attention_tac.3} parent=153 // pred_check_branch
              %1881 = sbr.rel target = $region158
            $region157: #{channel_attention_tac.3} parent=153 // pred_region
              // Predicated region
              $region170: #{channel_attention_tac.3} parent=157 // pred_check
                _
              $region171: #{channel_attention_tac.3} parent=157 // pred_check_branch
                %1902 = sbr.rel (0) target = $region173
              $region172: #{channel_attention_tac.3} parent=157 // pred_region
                loop: start=0, step=1, limit=1
                $region174: #{channel_attention_tac.3} parent=172 // loop_pre_header
                  _
                $region175: #{channel_attention_tac.3} parent=172 // loop_header
                  %s1904 = sphi 0, %s1908
                  %p1905 = scmp.ge.s32.totalorder %s1904, 1
                  %s1909 = sphi %s1728, %s1728
                  %s1910 = sphi %s1877, %s1877
                $region176: #{channel_attention_tac.3} parent=172 // loop_header_branch
                  %1907 = sbr.rel (%p1905) target = $region180
                $region177: #{channel_attention_tac.3} parent=172 // loop_body
                  _
                $region178: #{channel_attention_tac.3} parent=172 // loop_footer
                  %s1908 = sadd.s32 1, %s1904
                $region179: #{channel_attention_tac.3} parent=172 // loop_footer_branch
                  %1903 = sbr.rel target = $region175
                $region180: #{channel_attention_tac.3} parent=172 // loop_exit
                  _
                loop: start=0, step=1, limit=1
                $region181: #{channel_attention_tac.3} parent=172 // loop_pre_header
                  _
                $region182: #{channel_attention_tac.3} parent=172 // loop_header
                  %s1913 = sphi 0, %s1917
                  %p1914 = scmp.ge.s32.totalorder %s1913, 1
                  %s1918 = sphi %s1728, %s1728
                  %s1919 = sphi %s1877, %s1877
                $region183: #{channel_attention_tac.3} parent=172 // loop_header_branch
                  %1916 = sbr.rel (%p1914) target = $region187
                $region184: #{channel_attention_tac.3} parent=172 // loop_body
                  %v1920 = vld [vmem:[%s1918] sm:$0xf]
                  %1921 = vst [vmem:[%s1919] sm:$0xf] %v1920
                  %v1922 = vld [vmem:[%s1918 + $0x4] sm:$0xf]
                  %1923 = vst [vmem:[%s1919 + $0x10] sm:$0xf] %v1922
                  %v1924 = vld [vmem:[%s1918 + $0x8] sm:$0xf]
                  %1925 = vst [vmem:[%s1919 + $0x20] sm:$0xf] %v1924
                  %v1926 = vld [vmem:[%s1918 + $0xc] sm:$0xf]
                  %1927 = vst [vmem:[%s1919 + $0x30] sm:$0xf] %v1926
                $region185: #{channel_attention_tac.3} parent=172 // loop_footer
                  %s1917 = sadd.s32 1, %s1913
                $region186: #{channel_attention_tac.3} parent=172 // loop_footer_branch
                  %1912 = sbr.rel target = $region182
                $region187: #{channel_attention_tac.3} parent=172 // loop_exit
                  _
              $region173: #{channel_attention_tac.3} parent=157 // pred_fallthru
                _
            $region158: #{channel_attention_tac.3} parent=153 // pred_fallthru
              _
            // Predicated region
            $region159: #{channel_attention_tac.3} parent=153 // pred_check
              _
            $region160: #{channel_attention_tac.3} parent=153 // pred_check_branch
              %1883 = sbr.rel (0) target = $region162
            $region161: #{channel_attention_tac.3} parent=153 // pred_region
              loop: start=0, step=1, limit=1
              $region163: #{channel_attention_tac.3} parent=161 // loop_pre_header
                _
              $region164: #{channel_attention_tac.3} parent=161 // loop_header
                %s1886 = sphi 0, %s1890
                %p1887 = scmp.ge.s32.totalorder %s1886, 1
                %s1891 = sphi %s1728, %s1728
                %s1892 = sphi %s1877, %s1877
              $region165: #{channel_attention_tac.3} parent=161 // loop_header_branch
                %1889 = sbr.rel (%p1887) target = $region169
              $region166: #{channel_attention_tac.3} parent=161 // loop_body
                %v1893 = vld [vmem:[%s1891] sm:$0xf]
                %1894 = vst [vmem:[%s1892] sm:$0xf] %v1893
                %v1895 = vld [vmem:[%s1891 + $0x4] sm:$0xf]
                %1896 = vst [vmem:[%s1892 + $0x10] sm:$0xf] %v1895
                %v1897 = vld [vmem:[%s1891 + $0x8] sm:$0xf]
                %1898 = vst [vmem:[%s1892 + $0x20] sm:$0xf] %v1897
                %v1899 = vld [vmem:[%s1891 + $0xc] sm:$0xf]
                %1900 = vst [vmem:[%s1892 + $0x30] sm:$0xf] %v1899
              $region167: #{channel_attention_tac.3} parent=161 // loop_footer
                %s1890 = sadd.s32 1, %s1886
              $region168: #{channel_attention_tac.3} parent=161 // loop_footer_branch
                %1885 = sbr.rel target = $region164
              $region169: #{channel_attention_tac.3} parent=161 // loop_exit
                _
            $region162: #{channel_attention_tac.3} parent=153 // pred_fallthru
              _
          $region154: #{channel_attention_tac.3} parent=149 // pred_fallthru
            _
          %1928 = vnop
        $region150: #{channel_attention_tac.3} parent=63 // pred_fallthru
          _
      $region64: #{channel_attention_tac.3} parent=5 // pred_fallthru
        _
      %p1929 = scmp.le.s32.totalorder 2, %s20
      // Predicated region
      $region188: #{channel_attention_tac.3} parent=5 // pred_check
        %p1930 = pneg %p1929
      $region189: #{channel_attention_tac.3} parent=5 // pred_check_branch
        %1932 = sbr.rel (%p1930) target = $region191
      $region190: #{channel_attention_tac.3} parent=5 // pred_region
        %s1933 = ssub.s32 %s20, 2
        // Predicated region
        $region192: #{channel_attention_tac.3} parent=190 // pred_check
          %p1934 = pneg %p285
        $region193: #{channel_attention_tac.3} parent=190 // pred_check_branch
          %1936 = sbr.rel (%p1934) target = $region195
        $region194: #{channel_attention_tac.3} parent=190 // pred_region
          %s1937 = sand.u32 %s270, 1
          %s1938 = sand.u32 %s270, 1
          %s1939 = smul.addr %s1938, 32
          %s1940 = scalar_lea.vmem [#allocation2], %s1939
        $region195: #{channel_attention_tac.3} parent=190 // pred_fallthru
          _
        // Predicated region
        $region196: #{channel_attention_tac.3} parent=190 // pred_check
          %p1941 = pneg %p311
        $region197: #{channel_attention_tac.3} parent=190 // pred_check_branch
          %1943 = sbr.rel (%p1941) target = $region199
        $region198: #{channel_attention_tac.3} parent=190 // pred_region
          %s1944 = sand.u32 %s296, 1
          %s1945 = sand.u32 %s296, 1
          %s1946 = smul.addr %s1945, 32
          %s1947 = scalar_lea.vmem [#allocation3], %s1946
        $region199: #{channel_attention_tac.3} parent=190 // pred_fallthru
          _
        // Predicated region
        $region200: #{channel_attention_tac.3} parent=190 // pred_check
          %p1948 = pneg %p337
        $region201: #{channel_attention_tac.3} parent=190 // pred_check_branch
          %1950 = sbr.rel (%p1948) target = $region203
        $region202: #{channel_attention_tac.3} parent=190 // pred_region
          %s1951 = sand.u32 %s322, 1
          %s1952 = sand.u32 %s322, 1
          %s1953 = smul.addr %s1952, 16
          %s1954 = scalar_lea.vmem [#allocation4], %s1953
        $region203: #{channel_attention_tac.3} parent=190 // pred_fallthru
          _
      $region191: #{channel_attention_tac.3} parent=5 // pred_fallthru
        _
    $region6: #{channel_attention_tac.3} parent=1 // loop_footer
      %s24 = sadd.s32 1, %s20
    $region7: #{channel_attention_tac.3} parent=1 // loop_footer_branch
      %19 = sbr.rel target = $region3
    $region8: #{channel_attention_tac.3} parent=1 // loop_exit
      _

</llo_original>
